<compile_context>
chip_gen: v7x
topology: tpu7x:2x2x1
jax: 0.10.0
libtpu: 0.0.40
codegen_flags: <defaults>
</compile_context>

<pallas_src>
import jax
import jax.numpy as jnp
from jax.experimental import pallas as pl
from jax.experimental.pallas import tpu as pltpu

N_OUT = 10          # real number of classes
OUT_PAD = 128       # lane-dense padded output width
NEG_BIG = -1e30     # effectively -inf for f32 softmax masking


def fcblock_kernel(x_ref,
                   w1_ref, b1_ref,
                   w2_ref, b2_ref,
                   w3_ref, b3_ref,
                   w4_ref, b4_ref,
                   w5_ref, b5_ref,
                   o_ref):
    # Activations in f32; matmul inputs cast to bf16; accumulate in f32.
    h = x_ref[...]  # (TB, 512) f32

    def dense(h, w_ref, b_ref, relu):
        y = jnp.dot(h.astype(jnp.bfloat16), w_ref[...],
                    preferred_element_type=jnp.float32) + b_ref[...]
        return jnp.maximum(y, 0.0) if relu else y

    h = dense(h, w1_ref, b1_ref, relu=True)      # (TB, 512)
    h = dense(h, w2_ref, b2_ref, relu=True)      # (TB, 512)
    h = dense(h, w3_ref, b3_ref, relu=True)      # (TB, 256)
    h = dense(h, w4_ref, b4_ref, relu=True)      # (TB, 256)
    logits = dense(h, w5_ref, b5_ref, relu=False)  # (TB, 128) lane-dense, padded

    # Mask the padded output lanes so they contribute nothing to the softmax.
    lane = jax.lax.broadcasted_iota(jnp.int32, logits.shape, 1)
    logits = jnp.where(lane < N_OUT, logits, jnp.float32(NEG_BIG))

    # Numerically stable log_softmax over the (padded) feature axis.
    m = jnp.max(logits, axis=-1, keepdims=True)
    shifted = logits - m
    lse = jnp.log(jnp.sum(jnp.exp(shifted), axis=-1, keepdims=True))
    o_ref[...] = (shifted - lse).astype(o_ref.dtype)


def fcblock_forward(x, params, *, tb=128):
    """x: (B, 512) float32. Returns (B, 10) float32 log-probabilities."""
    B, D = x.shape
    assert D == 512

    num_tiles = -(-B // tb)
    Bp = num_tiles * tb
    if Bp != B:
        x = jnp.pad(x, ((0, Bp - B), (0, 0)))

    def x_map(i):
        return (i, 0)

    def const_map(i):
        return (0, 0)

    in_specs = [
        pl.BlockSpec((tb, 512), x_map),
        pl.BlockSpec((512, 512), const_map), pl.BlockSpec((1, 512), const_map),
        pl.BlockSpec((512, 512), const_map), pl.BlockSpec((1, 512), const_map),
        pl.BlockSpec((512, 256), const_map), pl.BlockSpec((1, 256), const_map),
        pl.BlockSpec((256, 256), const_map), pl.BlockSpec((1, 256), const_map),
        pl.BlockSpec((256, OUT_PAD), const_map), pl.BlockSpec((1, OUT_PAD), const_map),
    ]
    out_specs = pl.BlockSpec((tb, OUT_PAD), x_map)

    out_padded = pl.pallas_call(
        fcblock_kernel,
        out_shape=jax.ShapeDtypeStruct((Bp, OUT_PAD), jnp.float32),
        grid=(num_tiles,),
        in_specs=in_specs,
        out_specs=out_specs,
        compiler_params=pltpu.CompilerParams(
            dimension_semantics=("parallel",)),
    )(
        x,
        params["w1"], params["b1"],
        params["w2"], params["b2"],
        params["w3"], params["b3"],
        params["w4"], params["b4"],
        params["w5"], params["b5"],
    )
    return out_padded[:B, :N_OUT]


def init_params(key):
    """Deterministic init matching FCBlock's layer shapes.

    PyTorch nn.Linear(in, out) has weight (out, in); we store its transpose
    (in, out) as bf16, biases as (1, out) f32.  The final layer is zero-padded
    from 10 to OUT_PAD output lanes (masked inside the kernel).
    """
    dims = [(512, 512), (512, 512), (512, 256), (256, 256), (256, N_OUT)]
    params = {}
    for idx, (din, dout) in enumerate(dims, start=1):
        key, kw, kb = jax.random.split(key, 3)
        bound = 1.0 / jnp.sqrt(din)  # PyTorch default uniform(-1/sqrt(in), 1/sqrt(in))
        w = jax.random.uniform(kw, (din, dout), jnp.float32, -bound, bound)
        b = jax.random.uniform(kb, (1, dout), jnp.float32, -bound, bound)
        if dout == N_OUT:  # pad the final layer to a lane-dense width
            w = jnp.pad(w, ((0, 0), (0, OUT_PAD - N_OUT)))
            b = jnp.pad(b, ((0, 0), (0, OUT_PAD - N_OUT)))
        params[f"w{idx}"] = w.astype(jnp.bfloat16)
        params[f"b{idx}"] = b.astype(jnp.float32)
    return params


def reference_forward(x, params):
    """Pure-JAX reference with identical precision semantics (bf16 in, f32 acc)."""
    h = x
    for i in range(1, 5):
        y = jnp.dot(h.astype(jnp.bfloat16), params[f"w{i}"],
                    preferred_element_type=jnp.float32) + params[f"b{i}"]
        h = jnp.maximum(y, 0.0)
    logits = jnp.dot(h.astype(jnp.bfloat16), params["w5"],
                     preferred_element_type=jnp.float32) + params["b5"]
    logits = logits[:, :N_OUT]
    return jax.nn.log_softmax(logits, axis=1)


if __name__ == "__main__":
    key = jax.random.PRNGKey(0)
    key, kx = jax.random.split(key)
    B = 8
    x = jax.random.normal(kx, (B, 512), jnp.float32)
    params = init_params(key)

    out = fcblock_forward(x, params)
    out = jax.block_until_ready(out)

    ref = reference_forward(x, params)
    assert out.shape == (B, N_OUT)
    assert jnp.allclose(out, ref, atol=2e-3, rtol=2e-3), "mismatch vs reference"
    print("KERNEL_OK")
</pallas_src>

<mosaic_0001>
module attributes {stable_mosaic.version = 11 : i64} {
  func.func @fcblock_kernel(%arg0: i32, %arg1: memref<128x512xf32, #tpu.memory_space<vmem>>, %arg2: memref<512x512xbf16, #tpu.memory_space<vmem>>, %arg3: memref<1x512xf32, #tpu.memory_space<vmem>>, %arg4: memref<512x512xbf16, #tpu.memory_space<vmem>>, %arg5: memref<1x512xf32, #tpu.memory_space<vmem>>, %arg6: memref<512x256xbf16, #tpu.memory_space<vmem>>, %arg7: memref<1x256xf32, #tpu.memory_space<vmem>>, %arg8: memref<256x256xbf16, #tpu.memory_space<vmem>>, %arg9: memref<1x256xf32, #tpu.memory_space<vmem>>, %arg10: memref<256x128xbf16, #tpu.memory_space<vmem>>, %arg11: memref<1x128xf32, #tpu.memory_space<vmem>>, %arg12: memref<128x128xf32, #tpu.memory_space<vmem>>) attributes {dimension_semantics = [#tpu.dimension_semantics<parallel>], iteration_bounds = array<i64: 1>, scalar_prefetch = 0 : i64, scratch_operands = 0 : i64, tpu.core_type = #tpu.core_type<tc>, window_params = [{transform_indices = @transform_0, window_bounds = array<i64: 128, 512>}, {pipeline_mode = #tpu.pipeline_mode<synchronous>, transform_indices = @transform_1, window_bounds = array<i64: 512, 512>}, {pipeline_mode = #tpu.pipeline_mode<synchronous>, transform_indices = @transform_2, window_bounds = array<i64: 1, 512>}, {pipeline_mode = #tpu.pipeline_mode<synchronous>, transform_indices = @transform_3, window_bounds = array<i64: 512, 512>}, {pipeline_mode = #tpu.pipeline_mode<synchronous>, transform_indices = @transform_4, window_bounds = array<i64: 1, 512>}, {pipeline_mode = #tpu.pipeline_mode<synchronous>, transform_indices = @transform_5, window_bounds = array<i64: 512, 256>}, {pipeline_mode = #tpu.pipeline_mode<synchronous>, transform_indices = @transform_6, window_bounds = array<i64: 1, 256>}, {pipeline_mode = #tpu.pipeline_mode<synchronous>, transform_indices = @transform_7, window_bounds = array<i64: 256, 256>}, {pipeline_mode = #tpu.pipeline_mode<synchronous>, transform_indices = @transform_8, window_bounds = array<i64: 1, 256>}, {pipeline_mode = #tpu.pipeline_mode<synchronous>, transform_indices = @transform_9, window_bounds = array<i64: 256, 128>}, {pipeline_mode = #tpu.pipeline_mode<synchronous>, transform_indices = @transform_10, window_bounds = array<i64: 1, 128>}, {transform_indices = @transform_11, window_bounds = array<i64: 128, 128>}]} {
    %c0 = arith.constant 0 : index
    %c0_0 = arith.constant 0 : index
    %0 = vector.load %arg1[%c0, %c0_0] : memref<128x512xf32, #tpu.memory_space<vmem>>, vector<128x512xf32>
    %1 = arith.truncf %0 : vector<128x512xf32> to vector<128x512xbf16>
    %c0_1 = arith.constant 0 : index
    %c0_2 = arith.constant 0 : index
    %2 = vector.load %arg2[%c0_1, %c0_2] : memref<512x512xbf16, #tpu.memory_space<vmem>>, vector<512x512xbf16>
    %cst = arith.constant dense<0.000000e+00> : vector<128x512xf32>
    %3 = tpu.matmul %1, %2, %cst {dimension_numbers = #tpu.dot_dimension_numbers<[1], [0], [0], [1], [0, 0, 1, 1], [], []>} : vector<128x512xbf16>, vector<512x512xbf16>, vector<128x512xf32> -> vector<128x512xf32>
    %c0_3 = arith.constant 0 : index
    %c0_4 = arith.constant 0 : index
    %4 = vector.load %arg3[%c0_3, %c0_4] : memref<1x512xf32, #tpu.memory_space<vmem>>, vector<1x512xf32>
    %5 = vector.broadcast %4 : vector<1x512xf32> to vector<128x512xf32>
    %6 = arith.addf %3, %5 : vector<128x512xf32>
    %cst_5 = arith.constant 0.000000e+00 : f32
    %7 = vector.broadcast %cst_5 : f32 to vector<128x512xf32>
    %8 = arith.maximumf %6, %7 : vector<128x512xf32>
    %9 = arith.truncf %8 : vector<128x512xf32> to vector<128x512xbf16>
    %c0_6 = arith.constant 0 : index
    %c0_7 = arith.constant 0 : index
    %10 = vector.load %arg4[%c0_6, %c0_7] : memref<512x512xbf16, #tpu.memory_space<vmem>>, vector<512x512xbf16>
    %cst_8 = arith.constant dense<0.000000e+00> : vector<128x512xf32>
    %11 = tpu.matmul %9, %10, %cst_8 {dimension_numbers = #tpu.dot_dimension_numbers<[1], [0], [0], [1], [0, 0, 1, 1], [], []>} : vector<128x512xbf16>, vector<512x512xbf16>, vector<128x512xf32> -> vector<128x512xf32>
    %c0_9 = arith.constant 0 : index
    %c0_10 = arith.constant 0 : index
    %12 = vector.load %arg5[%c0_9, %c0_10] : memref<1x512xf32, #tpu.memory_space<vmem>>, vector<1x512xf32>
    %13 = vector.broadcast %12 : vector<1x512xf32> to vector<128x512xf32>
    %14 = arith.addf %11, %13 : vector<128x512xf32>
    %cst_11 = arith.constant 0.000000e+00 : f32
    %15 = vector.broadcast %cst_11 : f32 to vector<128x512xf32>
    %16 = arith.maximumf %14, %15 : vector<128x512xf32>
    %17 = arith.truncf %16 : vector<128x512xf32> to vector<128x512xbf16>
    %c0_12 = arith.constant 0 : index
    %c0_13 = arith.constant 0 : index
    %18 = vector.load %arg6[%c0_12, %c0_13] : memref<512x256xbf16, #tpu.memory_space<vmem>>, vector<512x256xbf16>
    %cst_14 = arith.constant dense<0.000000e+00> : vector<128x256xf32>
    %19 = tpu.matmul %17, %18, %cst_14 {dimension_numbers = #tpu.dot_dimension_numbers<[1], [0], [0], [1], [0, 0, 1, 1], [], []>} : vector<128x512xbf16>, vector<512x256xbf16>, vector<128x256xf32> -> vector<128x256xf32>
    %c0_15 = arith.constant 0 : index
    %c0_16 = arith.constant 0 : index
    %20 = vector.load %arg7[%c0_15, %c0_16] : memref<1x256xf32, #tpu.memory_space<vmem>>, vector<1x256xf32>
    %21 = vector.broadcast %20 : vector<1x256xf32> to vector<128x256xf32>
    %22 = arith.addf %19, %21 : vector<128x256xf32>
    %cst_17 = arith.constant 0.000000e+00 : f32
    %23 = vector.broadcast %cst_17 : f32 to vector<128x256xf32>
    %24 = arith.maximumf %22, %23 : vector<128x256xf32>
    %25 = arith.truncf %24 : vector<128x256xf32> to vector<128x256xbf16>
    %c0_18 = arith.constant 0 : index
    %c0_19 = arith.constant 0 : index
    %26 = vector.load %arg8[%c0_18, %c0_19] : memref<256x256xbf16, #tpu.memory_space<vmem>>, vector<256x256xbf16>
    %cst_20 = arith.constant dense<0.000000e+00> : vector<128x256xf32>
    %27 = tpu.matmul %25, %26, %cst_20 {dimension_numbers = #tpu.dot_dimension_numbers<[1], [0], [0], [1], [0, 0, 1, 1], [], []>} : vector<128x256xbf16>, vector<256x256xbf16>, vector<128x256xf32> -> vector<128x256xf32>
    %c0_21 = arith.constant 0 : index
    %c0_22 = arith.constant 0 : index
    %28 = vector.load %arg9[%c0_21, %c0_22] : memref<1x256xf32, #tpu.memory_space<vmem>>, vector<1x256xf32>
    %29 = vector.broadcast %28 : vector<1x256xf32> to vector<128x256xf32>
    %30 = arith.addf %27, %29 : vector<128x256xf32>
    %cst_23 = arith.constant 0.000000e+00 : f32
    %31 = vector.broadcast %cst_23 : f32 to vector<128x256xf32>
    %32 = arith.maximumf %30, %31 : vector<128x256xf32>
    %33 = arith.truncf %32 : vector<128x256xf32> to vector<128x256xbf16>
    %c0_24 = arith.constant 0 : index
    %c0_25 = arith.constant 0 : index
    %34 = vector.load %arg10[%c0_24, %c0_25] : memref<256x128xbf16, #tpu.memory_space<vmem>>, vector<256x128xbf16>
    %cst_26 = arith.constant dense<0.000000e+00> : vector<128x128xf32>
    %35 = tpu.matmul %33, %34, %cst_26 {dimension_numbers = #tpu.dot_dimension_numbers<[1], [0], [0], [1], [0, 0, 1, 1], [], []>} : vector<128x256xbf16>, vector<256x128xbf16>, vector<128x128xf32> -> vector<128x128xf32>
    %c0_27 = arith.constant 0 : index
    %c0_28 = arith.constant 0 : index
    %36 = vector.load %arg11[%c0_27, %c0_28] : memref<1x128xf32, #tpu.memory_space<vmem>>, vector<1x128xf32>
    %37 = vector.broadcast %36 : vector<1x128xf32> to vector<128x128xf32>
    %38 = arith.addf %35, %37 : vector<128x128xf32>
    %39 = tpu.iota {dimensions = array<i32: 1>} : vector<128x128xi32>
    %c10_i32 = arith.constant 10 : i32
    %40 = vector.broadcast %c10_i32 : i32 to vector<128x128xi32>
    %41 = arith.cmpi slt, %39, %40 : vector<128x128xi32>
    %cst_29 = arith.constant -1.000000e+30 : f32
    %42 = vector.broadcast %cst_29 : f32 to vector<128x128xf32>
    %43 = arith.select %41, %38, %42 : vector<128x128xi1>, vector<128x128xf32>
    %cst_30 = arith.constant dense<0xFF800000> : vector<128xf32>
    %44 = vector.multi_reduction <maximumf>, %43, %cst_30 [1] : vector<128x128xf32> to vector<128xf32>
    %45 = vector.shape_cast %44 : vector<128xf32> to vector<128x1xf32>
    %46 = vector.broadcast %45 : vector<128x1xf32> to vector<128x128xf32>
    %47 = arith.subf %43, %46 : vector<128x128xf32>
    %48 = math.exp %47 : vector<128x128xf32>
    %cst_31 = arith.constant dense<0.000000e+00> : vector<128xf32>
    %49 = vector.multi_reduction <add>, %48, %cst_31 [1] : vector<128x128xf32> to vector<128xf32>
    %50 = vector.shape_cast %49 : vector<128xf32> to vector<128x1xf32>
    %51 = math.log %50 : vector<128x1xf32>
    %52 = vector.broadcast %51 : vector<128x1xf32> to vector<128x128xf32>
    %53 = arith.subf %47, %52 : vector<128x128xf32>
    %c0_32 = arith.constant 0 : index
    %c0_33 = arith.constant 0 : index
    %54 = vector.load %arg12[%c0_32, %c0_33] : memref<128x128xf32, #tpu.memory_space<vmem>>, vector<128x128xf32>
    tpu.vector_store %arg12[%c0_32, %c0_33], %53 {strides = array<i32>} : memref<128x128xf32, #tpu.memory_space<vmem>>, vector<128x128xf32>,
    return
  }
  func.func @transform_0(%arg0: i32) -> (i32, i32) {
    %c0_i32 = arith.constant 0 : i32
    %c0_i32_0 = arith.constant 0 : i32
    return %arg0, %c0_i32 : i32, i32
  }
  func.func @transform_1(%arg0: i32) -> (i32, i32) {
    %c0_i32 = arith.constant 0 : i32
    %c0_i32_0 = arith.constant 0 : i32
    %c0_i32_1 = arith.constant 0 : i32
    return %c0_i32, %c0_i32_0 : i32, i32
  }
  func.func @transform_2(%arg0: i32) -> (i32, i32) {
    %c0_i32 = arith.constant 0 : i32
    %c0_i32_0 = arith.constant 0 : i32
    %c0_i32_1 = arith.constant 0 : i32
    return %c0_i32, %c0_i32_0 : i32, i32
  }
  func.func @transform_3(%arg0: i32) -> (i32, i32) {
    %c0_i32 = arith.constant 0 : i32
    %c0_i32_0 = arith.constant 0 : i32
    %c0_i32_1 = arith.constant 0 : i32
    return %c0_i32, %c0_i32_0 : i32, i32
  }
  func.func @transform_4(%arg0: i32) -> (i32, i32) {
    %c0_i32 = arith.constant 0 : i32
    %c0_i32_0 = arith.constant 0 : i32
    %c0_i32_1 = arith.constant 0 : i32
    return %c0_i32, %c0_i32_0 : i32, i32
  }
  func.func @transform_5(%arg0: i32) -> (i32, i32) {
    %c0_i32 = arith.constant 0 : i32
    %c0_i32_0 = arith.constant 0 : i32
    %c0_i32_1 = arith.constant 0 : i32
    return %c0_i32, %c0_i32_0 : i32, i32
  }
  func.func @transform_6(%arg0: i32) -> (i32, i32) {
    %c0_i32 = arith.constant 0 : i32
    %c0_i32_0 = arith.constant 0 : i32
    %c0_i32_1 = arith.constant 0 : i32
    return %c0_i32, %c0_i32_0 : i32, i32
  }
  func.func @transform_7(%arg0: i32) -> (i32, i32) {
    %c0_i32 = arith.constant 0 : i32
    %c0_i32_0 = arith.constant 0 : i32
    %c0_i32_1 = arith.constant 0 : i32
    return %c0_i32, %c0_i32_0 : i32, i32
  }
  func.func @transform_8(%arg0: i32) -> (i32, i32) {
    %c0_i32 = arith.constant 0 : i32
    %c0_i32_0 = arith.constant 0 : i32
    %c0_i32_1 = arith.constant 0 : i32
    return %c0_i32, %c0_i32_0 : i32, i32
  }
  func.func @transform_9(%arg0: i32) -> (i32, i32) {
    %c0_i32 = arith.constant 0 : i32
    %c0_i32_0 = arith.constant 0 : i32
    %c0_i32_1 = arith.constant 0 : i32
    return %c0_i32, %c0_i32_0 : i32, i32
  }
  func.func @transform_10(%arg0: i32) -> (i32, i32) {
    %c0_i32 = arith.constant 0 : i32
    %c0_i32_0 = arith.constant 0 : i32
    %c0_i32_1 = arith.constant 0 : i32
    return %c0_i32, %c0_i32_0 : i32, i32
  }
  func.func @transform_11(%arg0: i32) -> (i32, i32) {
    %c0_i32 = arith.constant 0 : i32
    %c0_i32_0 = arith.constant 0 : i32
    return %arg0, %c0_i32 : i32, i32
  }
}

</mosaic_0001>

<llo_original>
// kernel: tpu_custom_call.1
$region0: #{tpu_custom_call.1}
  #allocation0 [shape = 'u32[]', space=smem, size = 0x4, offset = 0x4, fixed_abs, tag = 'smem constant byte address 0x4 - core index']
  #allocation1 [shape = 'u32[144,128]{1,0:T(1,128)}', space=vmem, size = 0x12000, scoped, tag = 'internal scratch']
  %s0 = inlined_call_operand.hbm [shape: f32[128,512], index: 0, kind: input, shape index: {}]
  %s1 = inlined_call_operand.hbm [shape: bf16[512,512], index: 1, kind: input, shape index: {}]
  %s2 = inlined_call_operand.vmem [shape: f32[1,512], index: 2, kind: input, shape index: {}]
  %s3 = inlined_call_operand.hbm [shape: bf16[512,512], index: 3, kind: input, shape index: {}]
  %s4 = inlined_call_operand.vmem [shape: f32[1,512], index: 4, kind: input, shape index: {}]
  %s5 = inlined_call_operand.hbm [shape: bf16[512,256], index: 5, kind: input, shape index: {}]
  %s6 = inlined_call_operand.vmem [shape: f32[1,256], index: 6, kind: input, shape index: {}]
  %s7 = inlined_call_operand.hbm [shape: bf16[256,256], index: 7, kind: input, shape index: {}]
  %s8 = inlined_call_operand.vmem [shape: f32[1,256], index: 8, kind: input, shape index: {}]
  %s9 = inlined_call_operand.hbm [shape: bf16[256,128], index: 9, kind: input, shape index: {}]
  %s10 = inlined_call_operand.vmem [shape: f32[1,128], index: 10, kind: input, shape index: {}]
  %s11 = inlined_call_operand.hbm [shape: f32[128,128], index: 11, kind: output, shape index: {}]
  %s12 = sld [smem:[#allocation0]]
  $region78: #{tpu_custom_call.1} parent=0
    _
  %s14 = ssub.s32 1, %s12
  %s15 = scalar_select 0, %s14, %s12
  $region1: #{tpu_custom_call.1} parent=0
    #allocation2 [shape = 'u8[262144]{0}', space=vmem, size = 0x40000, scoped, tag = 'input window, operand 0, single buffered']
    #allocation3 [shape = 's32[1]{0}', space=sflag, size = 0x4, scoped, tag = 'scoped memory for tpu_custom_call.1']
    #allocation4 [shape = 's32[1]{0}', space=sflag, size = 0x4, scoped, tag = 'scoped memory for tpu_custom_call.1']
    #allocation5 [shape = 'u8[524288]{0}', space=vmem, size = 0x80000, scoped, tag = 'input window, operand 1, single buffered']
    #allocation6 [shape = 's32[1]{0}', space=sflag, size = 0x4, scoped, tag = 'scoped memory for tpu_custom_call.1']
    #allocation7 [shape = 'u8[524288]{0}', space=vmem, size = 0x80000, scoped, tag = 'input window, operand 3, single buffered']
    #allocation8 [shape = 'u8[262144]{0}', space=vmem, size = 0x40000, scoped, tag = 'input window, operand 5, single buffered']
    #allocation9 [shape = 's32[1]{0}', space=sflag, size = 0x4, scoped, tag = 'scoped memory for tpu_custom_call.1']
    #allocation10 [shape = 'u8[131072]{0}', space=vmem, size = 0x20000, scoped, tag = 'input window, operand 7, single buffered']
    #allocation11 [shape = 'u8[65536]{0}', space=vmem, size = 0x10000, scoped, tag = 'input window, operand 9, single buffered']
    #allocation12 [shape = 's32[1]{0}', space=sflag, size = 0x4, scoped, tag = 'scoped memory for tpu_custom_call.1']
    #allocation13 [shape = 'u8[65536]{0}', space=vmem, size = 0x10000, scoped, tag = 'output window, operand 0, single buffered']
    %16 = vsyncpa [#allocation3], 0
    %17 = vsyncpa [#allocation6], 0
    %18 = vsyncpa [#allocation9], 0
    %19 = vsyncpa [#allocation12], 0
    %20 = vsyncpa [#allocation4], 0
    // Predicated region
    $region2: #{tpu_custom_call.1} parent=1 // pred_check
      _
    $region3: #{tpu_custom_call.1} parent=1 // pred_check_branch
      %22 = sbr.rel (0) target = $region5
    $region4: #{tpu_custom_call.1} parent=1 // pred_region
      %s24 = ssub.s32 8192, 8192
      %25 = vsyncadd [#allocation3], %s24
      %s26 = sshll.u32 [#allocation2], 4
      %s27 = int_to_ptr.vmem [resolvable:$true] %s26
      %32 = dma.hbm_to_vmem [thread:$0]  %s0, 8192, %s27, [#allocation3], 512, 512, 32
    $region5: #{tpu_custom_call.1} parent=1 // pred_fallthru
      _
    // Predicated region
    $region6: #{tpu_custom_call.1} parent=1 // pred_check
      _
    $region7: #{tpu_custom_call.1} parent=1 // pred_check_branch
      %34 = sbr.rel (0) target = $region9
    $region8: #{tpu_custom_call.1} parent=1 // pred_region
      %s36 = ssub.s32 16384, 16384
      %37 = vsyncadd [#allocation6], %s36
      %s38 = sshll.u32 [#allocation5], 4
      %s39 = int_to_ptr.vmem [resolvable:$true] %s38
      %44 = dma.hbm_to_vmem [thread:$0]  %s1, 16384, %s39, [#allocation6], 256, 256, 16
    $region9: #{tpu_custom_call.1} parent=1 // pred_fallthru
      _
    // Predicated region
    $region10: #{tpu_custom_call.1} parent=1 // pred_check
      _
    $region11: #{tpu_custom_call.1} parent=1 // pred_check_branch
      %46 = sbr.rel (0) target = $region13
    $region12: #{tpu_custom_call.1} parent=1 // pred_region
      _
    $region13: #{tpu_custom_call.1} parent=1 // pred_fallthru
      _
    // Predicated region
    $region14: #{tpu_custom_call.1} parent=1 // pred_check
      _
    $region15: #{tpu_custom_call.1} parent=1 // pred_check_branch
      %48 = sbr.rel (0) target = $region17
    $region16: #{tpu_custom_call.1} parent=1 // pred_region
      %s50 = ssub.s32 16384, 16384
      %51 = vsyncadd [#allocation6], %s50
      %s52 = sshll.u32 [#allocation7], 4
      %s53 = int_to_ptr.vmem [resolvable:$true] %s52
      %58 = dma.hbm_to_vmem [thread:$0]  %s3, 16384, %s53, [#allocation6], 256, 256, 16
    $region17: #{tpu_custom_call.1} parent=1 // pred_fallthru
      _
    // Predicated region
    $region18: #{tpu_custom_call.1} parent=1 // pred_check
      _
    $region19: #{tpu_custom_call.1} parent=1 // pred_check_branch
      %60 = sbr.rel (0) target = $region21
    $region20: #{tpu_custom_call.1} parent=1 // pred_region
      _
    $region21: #{tpu_custom_call.1} parent=1 // pred_fallthru
      _
    // Predicated region
    $region22: #{tpu_custom_call.1} parent=1 // pred_check
      _
    $region23: #{tpu_custom_call.1} parent=1 // pred_check_branch
      %62 = sbr.rel (0) target = $region25
    $region24: #{tpu_custom_call.1} parent=1 // pred_region
      %s64 = ssub.s32 8192, 8192
      %65 = vsyncadd [#allocation9], %s64
      %s66 = sshll.u32 [#allocation8], 4
      %s67 = int_to_ptr.vmem [resolvable:$true] %s66
      %72 = dma.hbm_to_vmem [thread:$0]  %s5, 8192, %s67, [#allocation9], 128, 128, 8
    $region25: #{tpu_custom_call.1} parent=1 // pred_fallthru
      _
    // Predicated region
    $region26: #{tpu_custom_call.1} parent=1 // pred_check
      _
    $region27: #{tpu_custom_call.1} parent=1 // pred_check_branch
      %74 = sbr.rel (0) target = $region29
    $region28: #{tpu_custom_call.1} parent=1 // pred_region
      _
    $region29: #{tpu_custom_call.1} parent=1 // pred_fallthru
      _
    // Predicated region
    $region30: #{tpu_custom_call.1} parent=1 // pred_check
      _
    $region31: #{tpu_custom_call.1} parent=1 // pred_check_branch
      %76 = sbr.rel (0) target = $region33
    $region32: #{tpu_custom_call.1} parent=1 // pred_region
      %s78 = ssub.s32 4096, 4096
      %79 = vsyncadd [#allocation9], %s78
      %s80 = sshll.u32 [#allocation10], 4
      %s81 = int_to_ptr.vmem [resolvable:$true] %s80
      %86 = dma.hbm_to_vmem [thread:$0]  %s7, 4096, %s81, [#allocation9], 128, 128, 8
    $region33: #{tpu_custom_call.1} parent=1 // pred_fallthru
      _
    // Predicated region
    $region34: #{tpu_custom_call.1} parent=1 // pred_check
      _
    $region35: #{tpu_custom_call.1} parent=1 // pred_check_branch
      %88 = sbr.rel (0) target = $region37
    $region36: #{tpu_custom_call.1} parent=1 // pred_region
      _
    $region37: #{tpu_custom_call.1} parent=1 // pred_fallthru
      _
    // Predicated region
    $region38: #{tpu_custom_call.1} parent=1 // pred_check
      _
    $region39: #{tpu_custom_call.1} parent=1 // pred_check_branch
      %90 = sbr.rel (0) target = $region41
    $region40: #{tpu_custom_call.1} parent=1 // pred_region
      %s92 = ssub.s32 2048, 2048
      %93 = vsyncadd [#allocation12], %s92
      %s94 = sshll.u32 [#allocation11], 4
      %s95 = int_to_ptr.vmem [resolvable:$true] %s94
      %100 = dma.hbm_to_vmem [thread:$0]  %s9, 2048, %s95, [#allocation12], 64, 64, 4
    $region41: #{tpu_custom_call.1} parent=1 // pred_fallthru
      _
    // Predicated region
    $region42: #{tpu_custom_call.1} parent=1 // pred_check
      _
    $region43: #{tpu_custom_call.1} parent=1 // pred_check_branch
      %102 = sbr.rel (0) target = $region45
    $region44: #{tpu_custom_call.1} parent=1 // pred_region
      _
    $region45: #{tpu_custom_call.1} parent=1 // pred_fallthru
      _
    // Predicated region
    $region46: #{tpu_custom_call.1} parent=1 // pred_check
      _
    $region47: #{tpu_custom_call.1} parent=1 // pred_check_branch
      %104 = sbr.rel (0) target = $region49
    $region48: #{tpu_custom_call.1} parent=1 // pred_region
      %105 = dma.done [#allocation3], 8192
    $region49: #{tpu_custom_call.1} parent=1 // pred_fallthru
      _
    // Predicated region
    $region50: #{tpu_custom_call.1} parent=1 // pred_check
      _
    $region51: #{tpu_custom_call.1} parent=1 // pred_check_branch
      %107 = sbr.rel (0) target = $region53
    $region52: #{tpu_custom_call.1} parent=1 // pred_region
      %108 = dma.done [#allocation6], 16384
    $region53: #{tpu_custom_call.1} parent=1 // pred_fallthru
      _
    // Predicated region
    $region54: #{tpu_custom_call.1} parent=1 // pred_check
      _
    $region55: #{tpu_custom_call.1} parent=1 // pred_check_branch
      %110 = sbr.rel (0) target = $region57
    $region56: #{tpu_custom_call.1} parent=1 // pred_region
      %111 = dma.done [#allocation6], 16384
    $region57: #{tpu_custom_call.1} parent=1 // pred_fallthru
      _
    // Predicated region
    $region58: #{tpu_custom_call.1} parent=1 // pred_check
      _
    $region59: #{tpu_custom_call.1} parent=1 // pred_check_branch
      %113 = sbr.rel (0) target = $region61
    $region60: #{tpu_custom_call.1} parent=1 // pred_region
      %114 = dma.done [#allocation9], 8192
    $region61: #{tpu_custom_call.1} parent=1 // pred_fallthru
      _
    // Predicated region
    $region62: #{tpu_custom_call.1} parent=1 // pred_check
      _
    $region63: #{tpu_custom_call.1} parent=1 // pred_check_branch
      %116 = sbr.rel (0) target = $region65
    $region64: #{tpu_custom_call.1} parent=1 // pred_region
      %117 = dma.done [#allocation9], 4096
    $region65: #{tpu_custom_call.1} parent=1 // pred_fallthru
      _
    // Predicated region
    $region66: #{tpu_custom_call.1} parent=1 // pred_check
      _
    $region67: #{tpu_custom_call.1} parent=1 // pred_check_branch
      %119 = sbr.rel (0) target = $region69
    $region68: #{tpu_custom_call.1} parent=1 // pred_region
      %120 = dma.done [#allocation12], 2048
    $region69: #{tpu_custom_call.1} parent=1 // pred_fallthru
      _
    %v122 = vld [vmem:[#allocation2] sm:$0xff]
    %v123 = vld [vmem:[#allocation2 + $0x8] sm:$0xff]
    %v124 = vld [vmem:[#allocation2 + $0x10] sm:$0xff]
    %v125 = vld [vmem:[#allocation2 + $0x18] sm:$0xff]
    %v126 = vld [vmem:[#allocation2 + $0x20] sm:$0xff]
    %v127 = vld [vmem:[#allocation2 + $0x28] sm:$0xff]
    %v128 = vld [vmem:[#allocation2 + $0x30] sm:$0xff]
    %v129 = vld [vmem:[#allocation2 + $0x38] sm:$0xff]
    %v130 = vld [vmem:[#allocation2 + $0x40] sm:$0xff]
    %v131 = vld [vmem:[#allocation2 + $0x48] sm:$0xff]
    %v132 = vld [vmem:[#allocation2 + $0x50] sm:$0xff]
    %v133 = vld [vmem:[#allocation2 + $0x58] sm:$0xff]
    %v134 = vld [vmem:[#allocation2 + $0x60] sm:$0xff]
    %v135 = vld [vmem:[#allocation2 + $0x68] sm:$0xff]
    %v136 = vld [vmem:[#allocation2 + $0x70] sm:$0xff]
    %v137 = vld [vmem:[#allocation2 + $0x78] sm:$0xff]
    %v138 = vld [vmem:[#allocation2 + $0x80] sm:$0xff]
    %v139 = vld [vmem:[#allocation2 + $0x88] sm:$0xff]
    %v140 = vld [vmem:[#allocation2 + $0x90] sm:$0xff]
    %v141 = vld [vmem:[#allocation2 + $0x98] sm:$0xff]
    %v142 = vld [vmem:[#allocation2 + $0xa0] sm:$0xff]
    %v143 = vld [vmem:[#allocation2 + $0xa8] sm:$0xff]
    %v144 = vld [vmem:[#allocation2 + $0xb0] sm:$0xff]
    %v145 = vld [vmem:[#allocation2 + $0xb8] sm:$0xff]
    %v146 = vld [vmem:[#allocation2 + $0xc0] sm:$0xff]
    %v147 = vld [vmem:[#allocation2 + $0xc8] sm:$0xff]
    %v148 = vld [vmem:[#allocation2 + $0xd0] sm:$0xff]
    %v149 = vld [vmem:[#allocation2 + $0xd8] sm:$0xff]
    %v150 = vld [vmem:[#allocation2 + $0xe0] sm:$0xff]
    %v151 = vld [vmem:[#allocation2 + $0xe8] sm:$0xff]
    %v152 = vld [vmem:[#allocation2 + $0xf0] sm:$0xff]
    %v153 = vld [vmem:[#allocation2 + $0xf8] sm:$0xff]
    %v154 = vld [vmem:[#allocation2 + $0x100] sm:$0xff]
    %v155 = vld [vmem:[#allocation2 + $0x108] sm:$0xff]
    %v156 = vld [vmem:[#allocation2 + $0x110] sm:$0xff]
    %v157 = vld [vmem:[#allocation2 + $0x118] sm:$0xff]
    %v158 = vld [vmem:[#allocation2 + $0x120] sm:$0xff]
    %v159 = vld [vmem:[#allocation2 + $0x128] sm:$0xff]
    %v160 = vld [vmem:[#allocation2 + $0x130] sm:$0xff]
    %v161 = vld [vmem:[#allocation2 + $0x138] sm:$0xff]
    %v162 = vld [vmem:[#allocation2 + $0x140] sm:$0xff]
    %v163 = vld [vmem:[#allocation2 + $0x148] sm:$0xff]
    %v164 = vld [vmem:[#allocation2 + $0x150] sm:$0xff]
    %v165 = vld [vmem:[#allocation2 + $0x158] sm:$0xff]
    %v166 = vld [vmem:[#allocation2 + $0x160] sm:$0xff]
    %v167 = vld [vmem:[#allocation2 + $0x168] sm:$0xff]
    %v168 = vld [vmem:[#allocation2 + $0x170] sm:$0xff]
    %v169 = vld [vmem:[#allocation2 + $0x178] sm:$0xff]
    %v170 = vld [vmem:[#allocation2 + $0x180] sm:$0xff]
    %v171 = vld [vmem:[#allocation2 + $0x188] sm:$0xff]
    %v172 = vld [vmem:[#allocation2 + $0x190] sm:$0xff]
    %v173 = vld [vmem:[#allocation2 + $0x198] sm:$0xff]
    %v174 = vld [vmem:[#allocation2 + $0x1a0] sm:$0xff]
    %v175 = vld [vmem:[#allocation2 + $0x1a8] sm:$0xff]
    %v176 = vld [vmem:[#allocation2 + $0x1b0] sm:$0xff]
    %v177 = vld [vmem:[#allocation2 + $0x1b8] sm:$0xff]
    %v178 = vld [vmem:[#allocation2 + $0x1c0] sm:$0xff]
    %v179 = vld [vmem:[#allocation2 + $0x1c8] sm:$0xff]
    %v180 = vld [vmem:[#allocation2 + $0x1d0] sm:$0xff]
    %v181 = vld [vmem:[#allocation2 + $0x1d8] sm:$0xff]
    %v182 = vld [vmem:[#allocation2 + $0x1e0] sm:$0xff]
    %v183 = vld [vmem:[#allocation2 + $0x1e8] sm:$0xff]
    %v184 = vld [vmem:[#allocation2 + $0x1f0] sm:$0xff]
    %v185 = vld [vmem:[#allocation2 + $0x1f8] sm:$0xff]
    %v186 = vpack.c.bf16 %v126, %v122
    %v187 = vpack.c.bf16 %v127, %v123
    %v188 = vpack.c.bf16 %v128, %v124
    %v189 = vpack.c.bf16 %v129, %v125
    %v190 = vpack.c.bf16 %v134, %v130
    %v191 = vpack.c.bf16 %v135, %v131
    %v192 = vpack.c.bf16 %v136, %v132
    %v193 = vpack.c.bf16 %v137, %v133
    %v194 = vpack.c.bf16 %v142, %v138
    %v195 = vpack.c.bf16 %v143, %v139
    %v196 = vpack.c.bf16 %v144, %v140
    %v197 = vpack.c.bf16 %v145, %v141
    %v198 = vpack.c.bf16 %v150, %v146
    %v199 = vpack.c.bf16 %v151, %v147
    %v200 = vpack.c.bf16 %v152, %v148
    %v201 = vpack.c.bf16 %v153, %v149
    %v202 = vpack.c.bf16 %v158, %v154
    %v203 = vpack.c.bf16 %v159, %v155
    %v204 = vpack.c.bf16 %v160, %v156
    %v205 = vpack.c.bf16 %v161, %v157
    %v206 = vpack.c.bf16 %v166, %v162
    %v207 = vpack.c.bf16 %v167, %v163
    %v208 = vpack.c.bf16 %v168, %v164
    %v209 = vpack.c.bf16 %v169, %v165
    %v210 = vpack.c.bf16 %v174, %v170
    %v211 = vpack.c.bf16 %v175, %v171
    %v212 = vpack.c.bf16 %v176, %v172
    %v213 = vpack.c.bf16 %v177, %v173
    %v214 = vpack.c.bf16 %v182, %v178
    %v215 = vpack.c.bf16 %v183, %v179
    %v216 = vpack.c.bf16 %v184, %v180
    %v217 = vpack.c.bf16 %v185, %v181
    %v218 = vld [vmem:[#allocation5] sm:$0xff]
    %v219 = vld [vmem:[#allocation5 + $0x8] sm:$0xff]
    %v220 = vld [vmem:[#allocation5 + $0x10] sm:$0xff]
    %v221 = vld [vmem:[#allocation5 + $0x18] sm:$0xff]
    %v222 = vld [vmem:[#allocation5 + $0x20] sm:$0xff]
    %v223 = vld [vmem:[#allocation5 + $0x28] sm:$0xff]
    %v224 = vld [vmem:[#allocation5 + $0x30] sm:$0xff]
    %v225 = vld [vmem:[#allocation5 + $0x38] sm:$0xff]
    %v226 = vld [vmem:[#allocation5 + $0x40] sm:$0xff]
    %v227 = vld [vmem:[#allocation5 + $0x48] sm:$0xff]
    %v228 = vld [vmem:[#allocation5 + $0x50] sm:$0xff]
    %v229 = vld [vmem:[#allocation5 + $0x58] sm:$0xff]
    %v230 = vld [vmem:[#allocation5 + $0x60] sm:$0xff]
    %v231 = vld [vmem:[#allocation5 + $0x68] sm:$0xff]
    %v232 = vld [vmem:[#allocation5 + $0x70] sm:$0xff]
    %v233 = vld [vmem:[#allocation5 + $0x78] sm:$0xff]
    %v234 = vld [vmem:[#allocation5 + $0x80] sm:$0xff]
    %v235 = vld [vmem:[#allocation5 + $0x88] sm:$0xff]
    %v236 = vld [vmem:[#allocation5 + $0x90] sm:$0xff]
    %v237 = vld [vmem:[#allocation5 + $0x98] sm:$0xff]
    %v238 = vld [vmem:[#allocation5 + $0xa0] sm:$0xff]
    %v239 = vld [vmem:[#allocation5 + $0xa8] sm:$0xff]
    %v240 = vld [vmem:[#allocation5 + $0xb0] sm:$0xff]
    %v241 = vld [vmem:[#allocation5 + $0xb8] sm:$0xff]
    %v242 = vld [vmem:[#allocation5 + $0xc0] sm:$0xff]
    %v243 = vld [vmem:[#allocation5 + $0xc8] sm:$0xff]
    %v244 = vld [vmem:[#allocation5 + $0xd0] sm:$0xff]
    %v245 = vld [vmem:[#allocation5 + $0xd8] sm:$0xff]
    %v246 = vld [vmem:[#allocation5 + $0xe0] sm:$0xff]
    %v247 = vld [vmem:[#allocation5 + $0xe8] sm:$0xff]
    %v248 = vld [vmem:[#allocation5 + $0xf0] sm:$0xff]
    %v249 = vld [vmem:[#allocation5 + $0xf8] sm:$0xff]
    %v250 = vld [vmem:[#allocation5 + $0x100] sm:$0xff]
    %v251 = vld [vmem:[#allocation5 + $0x108] sm:$0xff]
    %v252 = vld [vmem:[#allocation5 + $0x110] sm:$0xff]
    %v253 = vld [vmem:[#allocation5 + $0x118] sm:$0xff]
    %v254 = vld [vmem:[#allocation5 + $0x120] sm:$0xff]
    %v255 = vld [vmem:[#allocation5 + $0x128] sm:$0xff]
    %v256 = vld [vmem:[#allocation5 + $0x130] sm:$0xff]
    %v257 = vld [vmem:[#allocation5 + $0x138] sm:$0xff]
    %v258 = vld [vmem:[#allocation5 + $0x140] sm:$0xff]
    %v259 = vld [vmem:[#allocation5 + $0x148] sm:$0xff]
    %v260 = vld [vmem:[#allocation5 + $0x150] sm:$0xff]
    %v261 = vld [vmem:[#allocation5 + $0x158] sm:$0xff]
    %v262 = vld [vmem:[#allocation5 + $0x160] sm:$0xff]
    %v263 = vld [vmem:[#allocation5 + $0x168] sm:$0xff]
    %v264 = vld [vmem:[#allocation5 + $0x170] sm:$0xff]
    %v265 = vld [vmem:[#allocation5 + $0x178] sm:$0xff]
    %v266 = vld [vmem:[#allocation5 + $0x180] sm:$0xff]
    %v267 = vld [vmem:[#allocation5 + $0x188] sm:$0xff]
    %v268 = vld [vmem:[#allocation5 + $0x190] sm:$0xff]
    %v269 = vld [vmem:[#allocation5 + $0x198] sm:$0xff]
    %v270 = vld [vmem:[#allocation5 + $0x1a0] sm:$0xff]
    %v271 = vld [vmem:[#allocation5 + $0x1a8] sm:$0xff]
    %v272 = vld [vmem:[#allocation5 + $0x1b0] sm:$0xff]
    %v273 = vld [vmem:[#allocation5 + $0x1b8] sm:$0xff]
    %v274 = vld [vmem:[#allocation5 + $0x1c0] sm:$0xff]
    %v275 = vld [vmem:[#allocation5 + $0x1c8] sm:$0xff]
    %v276 = vld [vmem:[#allocation5 + $0x1d0] sm:$0xff]
    %v277 = vld [vmem:[#allocation5 + $0x1d8] sm:$0xff]
    %v278 = vld [vmem:[#allocation5 + $0x1e0] sm:$0xff]
    %v279 = vld [vmem:[#allocation5 + $0x1e8] sm:$0xff]
    %v280 = vld [vmem:[#allocation5 + $0x1f0] sm:$0xff]
    %v281 = vld [vmem:[#allocation5 + $0x1f8] sm:$0xff]
    %v282 = vld [vmem:[#allocation5 + $0x200] sm:$0xff]
    %v283 = vld [vmem:[#allocation5 + $0x208] sm:$0xff]
    %v284 = vld [vmem:[#allocation5 + $0x210] sm:$0xff]
    %v285 = vld [vmem:[#allocation5 + $0x218] sm:$0xff]
    %v286 = vld [vmem:[#allocation5 + $0x220] sm:$0xff]
    %v287 = vld [vmem:[#allocation5 + $0x228] sm:$0xff]
    %v288 = vld [vmem:[#allocation5 + $0x230] sm:$0xff]
    %v289 = vld [vmem:[#allocation5 + $0x238] sm:$0xff]
    %v290 = vld [vmem:[#allocation5 + $0x240] sm:$0xff]
    %v291 = vld [vmem:[#allocation5 + $0x248] sm:$0xff]
    %v292 = vld [vmem:[#allocation5 + $0x250] sm:$0xff]
    %v293 = vld [vmem:[#allocation5 + $0x258] sm:$0xff]
    %v294 = vld [vmem:[#allocation5 + $0x260] sm:$0xff]
    %v295 = vld [vmem:[#allocation5 + $0x268] sm:$0xff]
    %v296 = vld [vmem:[#allocation5 + $0x270] sm:$0xff]
    %v297 = vld [vmem:[#allocation5 + $0x278] sm:$0xff]
    %v298 = vld [vmem:[#allocation5 + $0x280] sm:$0xff]
    %v299 = vld [vmem:[#allocation5 + $0x288] sm:$0xff]
    %v300 = vld [vmem:[#allocation5 + $0x290] sm:$0xff]
    %v301 = vld [vmem:[#allocation5 + $0x298] sm:$0xff]
    %v302 = vld [vmem:[#allocation5 + $0x2a0] sm:$0xff]
    %v303 = vld [vmem:[#allocation5 + $0x2a8] sm:$0xff]
    %v304 = vld [vmem:[#allocation5 + $0x2b0] sm:$0xff]
    %v305 = vld [vmem:[#allocation5 + $0x2b8] sm:$0xff]
    %v306 = vld [vmem:[#allocation5 + $0x2c0] sm:$0xff]
    %v307 = vld [vmem:[#allocation5 + $0x2c8] sm:$0xff]
    %v308 = vld [vmem:[#allocation5 + $0x2d0] sm:$0xff]
    %v309 = vld [vmem:[#allocation5 + $0x2d8] sm:$0xff]
    %v310 = vld [vmem:[#allocation5 + $0x2e0] sm:$0xff]
    %v311 = vld [vmem:[#allocation5 + $0x2e8] sm:$0xff]
    %v312 = vld [vmem:[#allocation5 + $0x2f0] sm:$0xff]
    %v313 = vld [vmem:[#allocation5 + $0x2f8] sm:$0xff]
    %v314 = vld [vmem:[#allocation5 + $0x300] sm:$0xff]
    %v315 = vld [vmem:[#allocation5 + $0x308] sm:$0xff]
    %v316 = vld [vmem:[#allocation5 + $0x310] sm:$0xff]
    %v317 = vld [vmem:[#allocation5 + $0x318] sm:$0xff]
    %v318 = vld [vmem:[#allocation5 + $0x320] sm:$0xff]
    %v319 = vld [vmem:[#allocation5 + $0x328] sm:$0xff]
    %v320 = vld [vmem:[#allocation5 + $0x330] sm:$0xff]
    %v321 = vld [vmem:[#allocation5 + $0x338] sm:$0xff]
    %v322 = vld [vmem:[#allocation5 + $0x340] sm:$0xff]
    %v323 = vld [vmem:[#allocation5 + $0x348] sm:$0xff]
    %v324 = vld [vmem:[#allocation5 + $0x350] sm:$0xff]
    %v325 = vld [vmem:[#allocation5 + $0x358] sm:$0xff]
    %v326 = vld [vmem:[#allocation5 + $0x360] sm:$0xff]
    %v327 = vld [vmem:[#allocation5 + $0x368] sm:$0xff]
    %v328 = vld [vmem:[#allocation5 + $0x370] sm:$0xff]
    %v329 = vld [vmem:[#allocation5 + $0x378] sm:$0xff]
    %v330 = vld [vmem:[#allocation5 + $0x380] sm:$0xff]
    %v331 = vld [vmem:[#allocation5 + $0x388] sm:$0xff]
    %v332 = vld [vmem:[#allocation5 + $0x390] sm:$0xff]
    %v333 = vld [vmem:[#allocation5 + $0x398] sm:$0xff]
    %v334 = vld [vmem:[#allocation5 + $0x3a0] sm:$0xff]
    %v335 = vld [vmem:[#allocation5 + $0x3a8] sm:$0xff]
    %v336 = vld [vmem:[#allocation5 + $0x3b0] sm:$0xff]
    %v337 = vld [vmem:[#allocation5 + $0x3b8] sm:$0xff]
    %v338 = vld [vmem:[#allocation5 + $0x3c0] sm:$0xff]
    %v339 = vld [vmem:[#allocation5 + $0x3c8] sm:$0xff]
    %v340 = vld [vmem:[#allocation5 + $0x3d0] sm:$0xff]
    %v341 = vld [vmem:[#allocation5 + $0x3d8] sm:$0xff]
    %v342 = vld [vmem:[#allocation5 + $0x3e0] sm:$0xff]
    %v343 = vld [vmem:[#allocation5 + $0x3e8] sm:$0xff]
    %v344 = vld [vmem:[#allocation5 + $0x3f0] sm:$0xff]
    %v345 = vld [vmem:[#allocation5 + $0x3f8] sm:$0xff]
    %v346 = vld [vmem:[%s2] sm:$0xf]
    %v348 = vlaneseq
    %v349 = vshrl.u32 %v348, 7
    %v350 = vsub.s32 0, %v349
    %v351 = vrot.slane %v346, %v350
    %v352 = vlaneseq
    %v353 = vshrl.u32 %v352, 7
    %v354 = vsub.s32 1, %v353
    %v355 = vrot.slane %v346, %v354
    %v356 = vlaneseq
    %v357 = vshrl.u32 %v356, 7
    %v358 = vsub.s32 2, %v357
    %v359 = vrot.slane %v346, %v358
    %v360 = vlaneseq
    %v361 = vshrl.u32 %v360, 7
    %v362 = vsub.s32 3, %v361
    %v363 = vrot.slane %v346, %v362
    %v496 = vunpack.c.l.b16 %v218
    %v497 = vunpack.c.h.b16 %v218
    %v498 = vunpack.c.l.b16 %v219
    %v499 = vunpack.c.h.b16 %v219
    %v500 = vunpack.c.l.b16 %v220
    %v501 = vunpack.c.h.b16 %v220
    %v502 = vunpack.c.l.b16 %v221
    %v503 = vunpack.c.h.b16 %v221
    %v504 = vunpack.c.l.b16 %v222
    %v505 = vunpack.c.h.b16 %v222
    %v506 = vunpack.c.l.b16 %v223
    %v507 = vunpack.c.h.b16 %v223
    %v508 = vunpack.c.l.b16 %v224
    %v509 = vunpack.c.h.b16 %v224
    %v510 = vunpack.c.l.b16 %v225
    %v511 = vunpack.c.h.b16 %v225
    %v512 = vunpack.c.l.b16 %v226
    %v513 = vunpack.c.h.b16 %v226
    %v514 = vunpack.c.l.b16 %v227
    %v515 = vunpack.c.h.b16 %v227
    %v516 = vunpack.c.l.b16 %v228
    %v517 = vunpack.c.h.b16 %v228
    %v518 = vunpack.c.l.b16 %v229
    %v519 = vunpack.c.h.b16 %v229
    %v520 = vunpack.c.l.b16 %v230
    %v521 = vunpack.c.h.b16 %v230
    %v522 = vunpack.c.l.b16 %v231
    %v523 = vunpack.c.h.b16 %v231
    %v524 = vunpack.c.l.b16 %v232
    %v525 = vunpack.c.h.b16 %v232
    %v526 = vunpack.c.l.b16 %v233
    %v527 = vunpack.c.h.b16 %v233
    %v528 = vunpack.c.l.b16 %v234
    %v529 = vunpack.c.h.b16 %v234
    %v530 = vunpack.c.l.b16 %v235
    %v531 = vunpack.c.h.b16 %v235
    %v532 = vunpack.c.l.b16 %v236
    %v533 = vunpack.c.h.b16 %v236
    %v534 = vunpack.c.l.b16 %v237
    %v535 = vunpack.c.h.b16 %v237
    %v536 = vunpack.c.l.b16 %v238
    %v537 = vunpack.c.h.b16 %v238
    %v538 = vunpack.c.l.b16 %v239
    %v539 = vunpack.c.h.b16 %v239
    %v540 = vunpack.c.l.b16 %v240
    %v541 = vunpack.c.h.b16 %v240
    %v542 = vunpack.c.l.b16 %v241
    %v543 = vunpack.c.h.b16 %v241
    %v544 = vunpack.c.l.b16 %v242
    %v545 = vunpack.c.h.b16 %v242
    %v546 = vunpack.c.l.b16 %v243
    %v547 = vunpack.c.h.b16 %v243
    %v548 = vunpack.c.l.b16 %v244
    %v549 = vunpack.c.h.b16 %v244
    %v550 = vunpack.c.l.b16 %v245
    %v551 = vunpack.c.h.b16 %v245
    %v552 = vunpack.c.l.b16 %v246
    %v553 = vunpack.c.h.b16 %v246
    %v554 = vunpack.c.l.b16 %v247
    %v555 = vunpack.c.h.b16 %v247
    %v556 = vunpack.c.l.b16 %v248
    %v557 = vunpack.c.h.b16 %v248
    %v558 = vunpack.c.l.b16 %v249
    %v559 = vunpack.c.h.b16 %v249
    %v560 = vunpack.c.l.b16 %v250
    %v561 = vunpack.c.h.b16 %v250
    %v562 = vunpack.c.l.b16 %v251
    %v563 = vunpack.c.h.b16 %v251
    %v564 = vunpack.c.l.b16 %v252
    %v565 = vunpack.c.h.b16 %v252
    %v566 = vunpack.c.l.b16 %v253
    %v567 = vunpack.c.h.b16 %v253
    %v568 = vunpack.c.l.b16 %v254
    %v569 = vunpack.c.h.b16 %v254
    %v570 = vunpack.c.l.b16 %v255
    %v571 = vunpack.c.h.b16 %v255
    %v572 = vunpack.c.l.b16 %v256
    %v573 = vunpack.c.h.b16 %v256
    %v574 = vunpack.c.l.b16 %v257
    %v575 = vunpack.c.h.b16 %v257
    %v576 = vunpack.c.l.b16 %v258
    %v577 = vunpack.c.h.b16 %v258
    %v578 = vunpack.c.l.b16 %v259
    %v579 = vunpack.c.h.b16 %v259
    %v580 = vunpack.c.l.b16 %v260
    %v581 = vunpack.c.h.b16 %v260
    %v582 = vunpack.c.l.b16 %v261
    %v583 = vunpack.c.h.b16 %v261
    %v584 = vunpack.c.l.b16 %v262
    %v585 = vunpack.c.h.b16 %v262
    %v586 = vunpack.c.l.b16 %v263
    %v587 = vunpack.c.h.b16 %v263
    %v588 = vunpack.c.l.b16 %v264
    %v589 = vunpack.c.h.b16 %v264
    %v590 = vunpack.c.l.b16 %v265
    %v591 = vunpack.c.h.b16 %v265
    %v592 = vunpack.c.l.b16 %v266
    %v593 = vunpack.c.h.b16 %v266
    %v594 = vunpack.c.l.b16 %v267
    %v595 = vunpack.c.h.b16 %v267
    %v596 = vunpack.c.l.b16 %v268
    %v597 = vunpack.c.h.b16 %v268
    %v598 = vunpack.c.l.b16 %v269
    %v599 = vunpack.c.h.b16 %v269
    %v600 = vunpack.c.l.b16 %v270
    %v601 = vunpack.c.h.b16 %v270
    %v602 = vunpack.c.l.b16 %v271
    %v603 = vunpack.c.h.b16 %v271
    %v604 = vunpack.c.l.b16 %v272
    %v605 = vunpack.c.h.b16 %v272
    %v606 = vunpack.c.l.b16 %v273
    %v607 = vunpack.c.h.b16 %v273
    %v608 = vunpack.c.l.b16 %v274
    %v609 = vunpack.c.h.b16 %v274
    %v610 = vunpack.c.l.b16 %v275
    %v611 = vunpack.c.h.b16 %v275
    %v612 = vunpack.c.l.b16 %v276
    %v613 = vunpack.c.h.b16 %v276
    %v614 = vunpack.c.l.b16 %v277
    %v615 = vunpack.c.h.b16 %v277
    %v616 = vunpack.c.l.b16 %v278
    %v617 = vunpack.c.h.b16 %v278
    %v618 = vunpack.c.l.b16 %v279
    %v619 = vunpack.c.h.b16 %v279
    %v620 = vunpack.c.l.b16 %v280
    %v621 = vunpack.c.h.b16 %v280
    %v622 = vunpack.c.l.b16 %v281
    %v623 = vunpack.c.h.b16 %v281
    %v624 = vunpack.c.l.b16 %v282
    %v625 = vunpack.c.h.b16 %v282
    %v626 = vunpack.c.l.b16 %v283
    %v627 = vunpack.c.h.b16 %v283
    %v628 = vunpack.c.l.b16 %v284
    %v629 = vunpack.c.h.b16 %v284
    %v630 = vunpack.c.l.b16 %v285
    %v631 = vunpack.c.h.b16 %v285
    %v632 = vunpack.c.l.b16 %v286
    %v633 = vunpack.c.h.b16 %v286
    %v634 = vunpack.c.l.b16 %v287
    %v635 = vunpack.c.h.b16 %v287
    %v636 = vunpack.c.l.b16 %v288
    %v637 = vunpack.c.h.b16 %v288
    %v638 = vunpack.c.l.b16 %v289
    %v639 = vunpack.c.h.b16 %v289
    %v640 = vunpack.c.l.b16 %v290
    %v641 = vunpack.c.h.b16 %v290
    %v642 = vunpack.c.l.b16 %v291
    %v643 = vunpack.c.h.b16 %v291
    %v644 = vunpack.c.l.b16 %v292
    %v645 = vunpack.c.h.b16 %v292
    %v646 = vunpack.c.l.b16 %v293
    %v647 = vunpack.c.h.b16 %v293
    %v648 = vunpack.c.l.b16 %v294
    %v649 = vunpack.c.h.b16 %v294
    %v650 = vunpack.c.l.b16 %v295
    %v651 = vunpack.c.h.b16 %v295
    %v652 = vunpack.c.l.b16 %v296
    %v653 = vunpack.c.h.b16 %v296
    %v654 = vunpack.c.l.b16 %v297
    %v655 = vunpack.c.h.b16 %v297
    %v656 = vunpack.c.l.b16 %v298
    %v657 = vunpack.c.h.b16 %v298
    %v658 = vunpack.c.l.b16 %v299
    %v659 = vunpack.c.h.b16 %v299
    %v660 = vunpack.c.l.b16 %v300
    %v661 = vunpack.c.h.b16 %v300
    %v662 = vunpack.c.l.b16 %v301
    %v663 = vunpack.c.h.b16 %v301
    %v664 = vunpack.c.l.b16 %v302
    %v665 = vunpack.c.h.b16 %v302
    %v666 = vunpack.c.l.b16 %v303
    %v667 = vunpack.c.h.b16 %v303
    %v668 = vunpack.c.l.b16 %v304
    %v669 = vunpack.c.h.b16 %v304
    %v670 = vunpack.c.l.b16 %v305
    %v671 = vunpack.c.h.b16 %v305
    %v672 = vunpack.c.l.b16 %v306
    %v673 = vunpack.c.h.b16 %v306
    %v674 = vunpack.c.l.b16 %v307
    %v675 = vunpack.c.h.b16 %v307
    %v676 = vunpack.c.l.b16 %v308
    %v677 = vunpack.c.h.b16 %v308
    %v678 = vunpack.c.l.b16 %v309
    %v679 = vunpack.c.h.b16 %v309
    %v680 = vunpack.c.l.b16 %v310
    %v681 = vunpack.c.h.b16 %v310
    %v682 = vunpack.c.l.b16 %v311
    %v683 = vunpack.c.h.b16 %v311
    %v684 = vunpack.c.l.b16 %v312
    %v685 = vunpack.c.h.b16 %v312
    %v686 = vunpack.c.l.b16 %v313
    %v687 = vunpack.c.h.b16 %v313
    %v688 = vunpack.c.l.b16 %v314
    %v689 = vunpack.c.h.b16 %v314
    %v690 = vunpack.c.l.b16 %v315
    %v691 = vunpack.c.h.b16 %v315
    %v692 = vunpack.c.l.b16 %v316
    %v693 = vunpack.c.h.b16 %v316
    %v694 = vunpack.c.l.b16 %v317
    %v695 = vunpack.c.h.b16 %v317
    %v696 = vunpack.c.l.b16 %v318
    %v697 = vunpack.c.h.b16 %v318
    %v698 = vunpack.c.l.b16 %v319
    %v699 = vunpack.c.h.b16 %v319
    %v700 = vunpack.c.l.b16 %v320
    %v701 = vunpack.c.h.b16 %v320
    %v702 = vunpack.c.l.b16 %v321
    %v703 = vunpack.c.h.b16 %v321
    %v704 = vunpack.c.l.b16 %v322
    %v705 = vunpack.c.h.b16 %v322
    %v706 = vunpack.c.l.b16 %v323
    %v707 = vunpack.c.h.b16 %v323
    %v708 = vunpack.c.l.b16 %v324
    %v709 = vunpack.c.h.b16 %v324
    %v710 = vunpack.c.l.b16 %v325
    %v711 = vunpack.c.h.b16 %v325
    %v712 = vunpack.c.l.b16 %v326
    %v713 = vunpack.c.h.b16 %v326
    %v714 = vunpack.c.l.b16 %v327
    %v715 = vunpack.c.h.b16 %v327
    %v716 = vunpack.c.l.b16 %v328
    %v717 = vunpack.c.h.b16 %v328
    %v718 = vunpack.c.l.b16 %v329
    %v719 = vunpack.c.h.b16 %v329
    %v720 = vunpack.c.l.b16 %v330
    %v721 = vunpack.c.h.b16 %v330
    %v722 = vunpack.c.l.b16 %v331
    %v723 = vunpack.c.h.b16 %v331
    %v724 = vunpack.c.l.b16 %v332
    %v725 = vunpack.c.h.b16 %v332
    %v726 = vunpack.c.l.b16 %v333
    %v727 = vunpack.c.h.b16 %v333
    %v728 = vunpack.c.l.b16 %v334
    %v729 = vunpack.c.h.b16 %v334
    %v730 = vunpack.c.l.b16 %v335
    %v731 = vunpack.c.h.b16 %v335
    %v732 = vunpack.c.l.b16 %v336
    %v733 = vunpack.c.h.b16 %v336
    %v734 = vunpack.c.l.b16 %v337
    %v735 = vunpack.c.h.b16 %v337
    %v736 = vunpack.c.l.b16 %v338
    %v737 = vunpack.c.h.b16 %v338
    %v738 = vunpack.c.l.b16 %v339
    %v739 = vunpack.c.h.b16 %v339
    %v740 = vunpack.c.l.b16 %v340
    %v741 = vunpack.c.h.b16 %v340
    %v742 = vunpack.c.l.b16 %v341
    %v743 = vunpack.c.h.b16 %v341
    %v744 = vunpack.c.l.b16 %v342
    %v745 = vunpack.c.h.b16 %v342
    %v746 = vunpack.c.l.b16 %v343
    %v747 = vunpack.c.h.b16 %v343
    %v748 = vunpack.c.l.b16 %v344
    %v749 = vunpack.c.h.b16 %v344
    %v750 = vunpack.c.l.b16 %v345
    %v751 = vunpack.c.h.b16 %v345
    %v752 = vpack.c.b16 %v500, %v496
    %v753 = vpack.c.b16 %v501, %v497
    %v754 = vpack.c.b16 %v502, %v498
    %v755 = vpack.c.b16 %v503, %v499
    %v756 = vpack.c.b16 %v508, %v504
    %v757 = vpack.c.b16 %v509, %v505
    %v758 = vpack.c.b16 %v510, %v506
    %v759 = vpack.c.b16 %v511, %v507
    %v760 = vpack.c.b16 %v516, %v512
    %v761 = vpack.c.b16 %v517, %v513
    %v762 = vpack.c.b16 %v518, %v514
    %v763 = vpack.c.b16 %v519, %v515
    %v764 = vpack.c.b16 %v524, %v520
    %v765 = vpack.c.b16 %v525, %v521
    %v766 = vpack.c.b16 %v526, %v522
    %v767 = vpack.c.b16 %v527, %v523
    %v768 = vpack.c.b16 %v532, %v528
    %v769 = vpack.c.b16 %v533, %v529
    %v770 = vpack.c.b16 %v534, %v530
    %v771 = vpack.c.b16 %v535, %v531
    %v772 = vpack.c.b16 %v540, %v536
    %v773 = vpack.c.b16 %v541, %v537
    %v774 = vpack.c.b16 %v542, %v538
    %v775 = vpack.c.b16 %v543, %v539
    %v776 = vpack.c.b16 %v548, %v544
    %v777 = vpack.c.b16 %v549, %v545
    %v778 = vpack.c.b16 %v550, %v546
    %v779 = vpack.c.b16 %v551, %v547
    %v780 = vpack.c.b16 %v556, %v552
    %v781 = vpack.c.b16 %v557, %v553
    %v782 = vpack.c.b16 %v558, %v554
    %v783 = vpack.c.b16 %v559, %v555
    %v784 = vpack.c.b16 %v564, %v560
    %v785 = vpack.c.b16 %v565, %v561
    %v786 = vpack.c.b16 %v566, %v562
    %v787 = vpack.c.b16 %v567, %v563
    %v788 = vpack.c.b16 %v572, %v568
    %v789 = vpack.c.b16 %v573, %v569
    %v790 = vpack.c.b16 %v574, %v570
    %v791 = vpack.c.b16 %v575, %v571
    %v792 = vpack.c.b16 %v580, %v576
    %v793 = vpack.c.b16 %v581, %v577
    %v794 = vpack.c.b16 %v582, %v578
    %v795 = vpack.c.b16 %v583, %v579
    %v796 = vpack.c.b16 %v588, %v584
    %v797 = vpack.c.b16 %v589, %v585
    %v798 = vpack.c.b16 %v590, %v586
    %v799 = vpack.c.b16 %v591, %v587
    %v800 = vpack.c.b16 %v596, %v592
    %v801 = vpack.c.b16 %v597, %v593
    %v802 = vpack.c.b16 %v598, %v594
    %v803 = vpack.c.b16 %v599, %v595
    %v804 = vpack.c.b16 %v604, %v600
    %v805 = vpack.c.b16 %v605, %v601
    %v806 = vpack.c.b16 %v606, %v602
    %v807 = vpack.c.b16 %v607, %v603
    %v808 = vpack.c.b16 %v612, %v608
    %v809 = vpack.c.b16 %v613, %v609
    %v810 = vpack.c.b16 %v614, %v610
    %v811 = vpack.c.b16 %v615, %v611
    %v812 = vpack.c.b16 %v620, %v616
    %v813 = vpack.c.b16 %v621, %v617
    %v814 = vpack.c.b16 %v622, %v618
    %v815 = vpack.c.b16 %v623, %v619
    %v816 = vpack.c.b16 %v628, %v624
    %v817 = vpack.c.b16 %v629, %v625
    %v818 = vpack.c.b16 %v630, %v626
    %v819 = vpack.c.b16 %v631, %v627
    %v820 = vpack.c.b16 %v636, %v632
    %v821 = vpack.c.b16 %v637, %v633
    %v822 = vpack.c.b16 %v638, %v634
    %v823 = vpack.c.b16 %v639, %v635
    %v824 = vpack.c.b16 %v644, %v640
    %v825 = vpack.c.b16 %v645, %v641
    %v826 = vpack.c.b16 %v646, %v642
    %v827 = vpack.c.b16 %v647, %v643
    %v828 = vpack.c.b16 %v652, %v648
    %v829 = vpack.c.b16 %v653, %v649
    %v830 = vpack.c.b16 %v654, %v650
    %v831 = vpack.c.b16 %v655, %v651
    %v832 = vpack.c.b16 %v660, %v656
    %v833 = vpack.c.b16 %v661, %v657
    %v834 = vpack.c.b16 %v662, %v658
    %v835 = vpack.c.b16 %v663, %v659
    %v836 = vpack.c.b16 %v668, %v664
    %v837 = vpack.c.b16 %v669, %v665
    %v838 = vpack.c.b16 %v670, %v666
    %v839 = vpack.c.b16 %v671, %v667
    %v840 = vpack.c.b16 %v676, %v672
    %v841 = vpack.c.b16 %v677, %v673
    %v842 = vpack.c.b16 %v678, %v674
    %v843 = vpack.c.b16 %v679, %v675
    %v844 = vpack.c.b16 %v684, %v680
    %v845 = vpack.c.b16 %v685, %v681
    %v846 = vpack.c.b16 %v686, %v682
    %v847 = vpack.c.b16 %v687, %v683
    %v848 = vpack.c.b16 %v692, %v688
    %v849 = vpack.c.b16 %v693, %v689
    %v850 = vpack.c.b16 %v694, %v690
    %v851 = vpack.c.b16 %v695, %v691
    %v852 = vpack.c.b16 %v700, %v696
    %v853 = vpack.c.b16 %v701, %v697
    %v854 = vpack.c.b16 %v702, %v698
    %v855 = vpack.c.b16 %v703, %v699
    %v856 = vpack.c.b16 %v708, %v704
    %v857 = vpack.c.b16 %v709, %v705
    %v858 = vpack.c.b16 %v710, %v706
    %v859 = vpack.c.b16 %v711, %v707
    %v860 = vpack.c.b16 %v716, %v712
    %v861 = vpack.c.b16 %v717, %v713
    %v862 = vpack.c.b16 %v718, %v714
    %v863 = vpack.c.b16 %v719, %v715
    %v864 = vpack.c.b16 %v724, %v720
    %v865 = vpack.c.b16 %v725, %v721
    %v866 = vpack.c.b16 %v726, %v722
    %v867 = vpack.c.b16 %v727, %v723
    %v868 = vpack.c.b16 %v732, %v728
    %v869 = vpack.c.b16 %v733, %v729
    %v870 = vpack.c.b16 %v734, %v730
    %v871 = vpack.c.b16 %v735, %v731
    %v872 = vpack.c.b16 %v740, %v736
    %v873 = vpack.c.b16 %v741, %v737
    %v874 = vpack.c.b16 %v742, %v738
    %v875 = vpack.c.b16 %v743, %v739
    %v876 = vpack.c.b16 %v748, %v744
    %v877 = vpack.c.b16 %v749, %v745
    %v878 = vpack.c.b16 %v750, %v746
    %v879 = vpack.c.b16 %v751, %v747
    %1008 = vmatprep.subr.bf16.mxu0 %v753
    %1009 = vmatpush1.bf16.msra.mxu0 %v752
    %1010 = vmatprep.subr.bf16.mxu0 %v757
    %1011 = vmatpush1.bf16.msra.mxu0 %v756
    %1012 = vmatprep.subr.bf16.mxu0 %v761
    %1013 = vmatpush1.bf16.msra.mxu0 %v760
    %1014 = vmatprep.subr.bf16.mxu0 %v765
    %1015 = vmatpush1.bf16.msra.mxu0 %v764
    %1016 = vmatprep.subr.bf16.mxu0 %v769
    %1017 = vmatpush1.bf16.msra.mxu0 %v768
    %1018 = vmatprep.subr.bf16.mxu0 %v773
    %1019 = vmatpush1.bf16.msra.mxu0 %v772
    %1020 = vmatprep.subr.bf16.mxu0 %v777
    %1021 = vmatpush1.bf16.msra.mxu0 %v776
    %1022 = vmatprep.subr.bf16.mxu0 %v781
    %1023 = vmatpush1.bf16.msra.mxu0 %v780
    %1024 = vmatprep.subr.bf16.mxu0 %v785
    %1025 = vmatpush1.bf16.msra.mxu0 %v784
    %1026 = vmatprep.subr.bf16.mxu0 %v789
    %1027 = vmatpush1.bf16.msra.mxu0 %v788
    %1028 = vmatprep.subr.bf16.mxu0 %v793
    %1029 = vmatpush1.bf16.msra.mxu0 %v792
    %1030 = vmatprep.subr.bf16.mxu0 %v797
    %1031 = vmatpush1.bf16.msra.mxu0 %v796
    %1032 = vmatprep.subr.bf16.mxu0 %v801
    %1033 = vmatpush1.bf16.msra.mxu0 %v800
    %1034 = vmatprep.subr.bf16.mxu0 %v805
    %1035 = vmatpush1.bf16.msra.mxu0 %v804
    %1036 = vmatprep.subr.bf16.mxu0 %v809
    %1037 = vmatpush1.bf16.msra.mxu0 %v808
    %1038 = vmatprep.subr.bf16.mxu0 %v813
    %1039 = vmatpush1.bf16.msra.mxu0 %v812
    %1040 = vmatprep.mubr.bf16.mxu0 %v187
    %1041 = vmatmul.mubr.bf16.gmra.mrb[0].mxu0 %v186
    %v1042 = vpop.f32.mrb[0].mxu0
    %v1043 = vadd.f32 %v351, %v1042
    %v1044 = vpop.f32.mrb[0].mxu0
    %v1045 = vadd.f32 %v355, %v1044
    %v1046 = vpop.f32.mrb[0].mxu0
    %v1047 = vadd.f32 %v351, %v1046
    %v1048 = vpop.f32.mrb[0].mxu0
    %v1049 = vadd.f32 %v355, %v1048
    %1050 = vmatprep.mubr.bf16.mxu0 %v191
    %1051 = vmatmul.mubr.bf16.gmra.mrb[0].mxu0 %v190
    %v1052 = vpop.f32.mrb[0].mxu0
    %v1053 = vadd.f32 %v351, %v1052
    %v1054 = vpop.f32.mrb[0].mxu0
    %v1055 = vadd.f32 %v355, %v1054
    %v1056 = vpop.f32.mrb[0].mxu0
    %v1057 = vadd.f32 %v351, %v1056
    %v1058 = vpop.f32.mrb[0].mxu0
    %v1059 = vadd.f32 %v355, %v1058
    %1060 = vmatprep.mubr.bf16.mxu0 %v195
    %1061 = vmatmul.mubr.bf16.gmra.mrb[0].mxu0 %v194
    %v1062 = vpop.f32.mrb[0].mxu0
    %v1063 = vadd.f32 %v351, %v1062
    %v1064 = vpop.f32.mrb[0].mxu0
    %v1065 = vadd.f32 %v355, %v1064
    %v1066 = vpop.f32.mrb[0].mxu0
    %v1067 = vadd.f32 %v351, %v1066
    %v1068 = vpop.f32.mrb[0].mxu0
    %v1069 = vadd.f32 %v355, %v1068
    %1070 = vmatprep.mubr.bf16.mxu0 %v199
    %1071 = vmatmul.mubr.bf16.gmra.mrb[0].mxu0 %v198
    %v1072 = vpop.f32.mrb[0].mxu0
    %v1073 = vadd.f32 %v351, %v1072
    %v1074 = vpop.f32.mrb[0].mxu0
    %v1075 = vadd.f32 %v355, %v1074
    %v1076 = vpop.f32.mrb[0].mxu0
    %v1077 = vadd.f32 %v351, %v1076
    %v1078 = vpop.f32.mrb[0].mxu0
    %v1079 = vadd.f32 %v355, %v1078
    %1080 = vmatprep.mubr.bf16.mxu0 %v203
    %1081 = vmatmul.mubr.bf16.gmra.mrb[0].mxu0 %v202
    %v1082 = vpop.f32.mrb[0].mxu0
    %v1083 = vadd.f32 %v351, %v1082
    %v1084 = vpop.f32.mrb[0].mxu0
    %v1085 = vadd.f32 %v355, %v1084
    %v1086 = vpop.f32.mrb[0].mxu0
    %v1087 = vadd.f32 %v351, %v1086
    %v1088 = vpop.f32.mrb[0].mxu0
    %v1089 = vadd.f32 %v355, %v1088
    %1090 = vmatprep.mubr.bf16.mxu0 %v207
    %1091 = vmatmul.mubr.bf16.gmra.mrb[0].mxu0 %v206
    %v1092 = vpop.f32.mrb[0].mxu0
    %v1093 = vadd.f32 %v351, %v1092
    %v1094 = vpop.f32.mrb[0].mxu0
    %v1095 = vadd.f32 %v355, %v1094
    %v1096 = vpop.f32.mrb[0].mxu0
    %v1097 = vadd.f32 %v351, %v1096
    %v1098 = vpop.f32.mrb[0].mxu0
    %v1099 = vadd.f32 %v355, %v1098
    %1100 = vmatprep.mubr.bf16.mxu0 %v211
    %1101 = vmatmul.mubr.bf16.gmra.mrb[0].mxu0 %v210
    %v1102 = vpop.f32.mrb[0].mxu0
    %v1103 = vadd.f32 %v351, %v1102
    %v1104 = vpop.f32.mrb[0].mxu0
    %v1105 = vadd.f32 %v355, %v1104
    %v1106 = vpop.f32.mrb[0].mxu0
    %v1107 = vadd.f32 %v351, %v1106
    %v1108 = vpop.f32.mrb[0].mxu0
    %v1109 = vadd.f32 %v355, %v1108
    %1110 = vmatprep.mubr.bf16.mxu0 %v215
    %1111 = vmatmul.mubr.bf16.gmra.mrb[0].mxu0 %v214
    %v1112 = vpop.f32.mrb[0].mxu0
    %v1113 = vadd.f32 %v351, %v1112
    %v1114 = vpop.f32.mrb[0].mxu0
    %v1115 = vadd.f32 %v355, %v1114
    %v1116 = vpop.f32.mrb[0].mxu0
    %v1117 = vadd.f32 %v351, %v1116
    %v1118 = vpop.f32.mrb[0].mxu0
    %v1119 = vadd.f32 %v355, %v1118
    %1120 = vdwg.mxu0
    %1121 = vmatprep.subr.bf16.mxu0 %v817
    %1122 = vmatpush1.bf16.msra.mxu0 %v816
    %1123 = vmatprep.subr.bf16.mxu0 %v821
    %1124 = vmatpush1.bf16.msra.mxu0 %v820
    %1125 = vmatprep.subr.bf16.mxu0 %v825
    %1126 = vmatpush1.bf16.msra.mxu0 %v824
    %1127 = vmatprep.subr.bf16.mxu0 %v829
    %1128 = vmatpush1.bf16.msra.mxu0 %v828
    %1129 = vmatprep.subr.bf16.mxu0 %v833
    %1130 = vmatpush1.bf16.msra.mxu0 %v832
    %1131 = vmatprep.subr.bf16.mxu0 %v837
    %1132 = vmatpush1.bf16.msra.mxu0 %v836
    %1133 = vmatprep.subr.bf16.mxu0 %v841
    %1134 = vmatpush1.bf16.msra.mxu0 %v840
    %1135 = vmatprep.subr.bf16.mxu0 %v845
    %1136 = vmatpush1.bf16.msra.mxu0 %v844
    %1137 = vmatprep.subr.bf16.mxu0 %v849
    %1138 = vmatpush1.bf16.msra.mxu0 %v848
    %1139 = vmatprep.subr.bf16.mxu0 %v853
    %1140 = vmatpush1.bf16.msra.mxu0 %v852
    %1141 = vmatprep.subr.bf16.mxu0 %v857
    %1142 = vmatpush1.bf16.msra.mxu0 %v856
    %1143 = vmatprep.subr.bf16.mxu0 %v861
    %1144 = vmatpush1.bf16.msra.mxu0 %v860
    %1145 = vmatprep.subr.bf16.mxu0 %v865
    %1146 = vmatpush1.bf16.msra.mxu0 %v864
    %1147 = vmatprep.subr.bf16.mxu0 %v869
    %1148 = vmatpush1.bf16.msra.mxu0 %v868
    %1149 = vmatprep.subr.bf16.mxu0 %v873
    %1150 = vmatpush1.bf16.msra.mxu0 %v872
    %1151 = vmatprep.subr.bf16.mxu0 %v877
    %1152 = vmatpush1.bf16.msra.mxu0 %v876
    %1153 = vmatprep.mubr.bf16.mxu0 %v189
    %1154 = vmatmul.mubr.bf16.gmra.mrb[0].mxu0 %v188
    %v1155 = vpop.f32.mrb[0].mxu0
    %v1156 = vadd.f32 %v1043, %v1155
    %v1157 = vpop.f32.mrb[0].mxu0
    %v1158 = vadd.f32 %v1045, %v1157
    %v1159 = vpop.f32.mrb[0].mxu0
    %v1160 = vadd.f32 %v1047, %v1159
    %v1161 = vpop.f32.mrb[0].mxu0
    %v1162 = vadd.f32 %v1049, %v1161
    %1163 = vmatprep.mubr.bf16.mxu0 %v193
    %1164 = vmatmul.mubr.bf16.gmra.mrb[0].mxu0 %v192
    %v1165 = vpop.f32.mrb[0].mxu0
    %v1166 = vadd.f32 %v1053, %v1165
    %v1167 = vpop.f32.mrb[0].mxu0
    %v1168 = vadd.f32 %v1055, %v1167
    %v1169 = vpop.f32.mrb[0].mxu0
    %v1170 = vadd.f32 %v1057, %v1169
    %v1171 = vpop.f32.mrb[0].mxu0
    %v1172 = vadd.f32 %v1059, %v1171
    %1173 = vmatprep.mubr.bf16.mxu0 %v197
    %1174 = vmatmul.mubr.bf16.gmra.mrb[0].mxu0 %v196
    %v1175 = vpop.f32.mrb[0].mxu0
    %v1176 = vadd.f32 %v1063, %v1175
    %v1177 = vpop.f32.mrb[0].mxu0
    %v1178 = vadd.f32 %v1065, %v1177
    %v1179 = vpop.f32.mrb[0].mxu0
    %v1180 = vadd.f32 %v1067, %v1179
    %v1181 = vpop.f32.mrb[0].mxu0
    %v1182 = vadd.f32 %v1069, %v1181
    %1183 = vmatprep.mubr.bf16.mxu0 %v201
    %1184 = vmatmul.mubr.bf16.gmra.mrb[0].mxu0 %v200
    %v1185 = vpop.f32.mrb[0].mxu0
    %v1186 = vadd.f32 %v1073, %v1185
    %v1187 = vpop.f32.mrb[0].mxu0
    %v1188 = vadd.f32 %v1075, %v1187
    %v1189 = vpop.f32.mrb[0].mxu0
    %v1190 = vadd.f32 %v1077, %v1189
    %v1191 = vpop.f32.mrb[0].mxu0
    %v1192 = vadd.f32 %v1079, %v1191
    %1193 = vmatprep.mubr.bf16.mxu0 %v205
    %1194 = vmatmul.mubr.bf16.gmra.mrb[0].mxu0 %v204
    %v1195 = vpop.f32.mrb[0].mxu0
    %v1196 = vadd.f32 %v1083, %v1195
    %v1197 = vpop.f32.mrb[0].mxu0
    %v1198 = vadd.f32 %v1085, %v1197
    %v1199 = vpop.f32.mrb[0].mxu0
    %v1200 = vadd.f32 %v1087, %v1199
    %v1201 = vpop.f32.mrb[0].mxu0
    %v1202 = vadd.f32 %v1089, %v1201
    %1203 = vmatprep.mubr.bf16.mxu0 %v209
    %1204 = vmatmul.mubr.bf16.gmra.mrb[0].mxu0 %v208
    %v1205 = vpop.f32.mrb[0].mxu0
    %v1206 = vadd.f32 %v1093, %v1205
    %v1207 = vpop.f32.mrb[0].mxu0
    %v1208 = vadd.f32 %v1095, %v1207
    %v1209 = vpop.f32.mrb[0].mxu0
    %v1210 = vadd.f32 %v1097, %v1209
    %v1211 = vpop.f32.mrb[0].mxu0
    %v1212 = vadd.f32 %v1099, %v1211
    %1213 = vmatprep.mubr.bf16.mxu0 %v213
    %1214 = vmatmul.mubr.bf16.gmra.mrb[0].mxu0 %v212
    %v1215 = vpop.f32.mrb[0].mxu0
    %v1216 = vadd.f32 %v1103, %v1215
    %v1217 = vpop.f32.mrb[0].mxu0
    %v1218 = vadd.f32 %v1105, %v1217
    %v1219 = vpop.f32.mrb[0].mxu0
    %v1220 = vadd.f32 %v1107, %v1219
    %v1221 = vpop.f32.mrb[0].mxu0
    %v1222 = vadd.f32 %v1109, %v1221
    %1223 = vmatprep.mubr.bf16.mxu0 %v217
    %1224 = vmatmul.mubr.bf16.gmra.mrb[0].mxu0 %v216
    %v1225 = vpop.f32.mrb[0].mxu0
    %v1226 = vadd.f32 %v1113, %v1225
    %v1227 = vpop.f32.mrb[0].mxu0
    %v1228 = vadd.f32 %v1115, %v1227
    %v1229 = vpop.f32.mrb[0].mxu0
    %v1230 = vadd.f32 %v1117, %v1229
    %v1231 = vpop.f32.mrb[0].mxu0
    %v1232 = vadd.f32 %v1119, %v1231
    %1233 = vdwg.mxu0
    %1234 = vmatprep.subr.bf16.mxu0 %v755
    %1235 = vmatpush1.bf16.msra.mxu0 %v754
    %1236 = vmatprep.subr.bf16.mxu0 %v759
    %1237 = vmatpush1.bf16.msra.mxu0 %v758
    %1238 = vmatprep.subr.bf16.mxu0 %v763
    %1239 = vmatpush1.bf16.msra.mxu0 %v762
    %1240 = vmatprep.subr.bf16.mxu0 %v767
    %1241 = vmatpush1.bf16.msra.mxu0 %v766
    %1242 = vmatprep.subr.bf16.mxu0 %v771
    %1243 = vmatpush1.bf16.msra.mxu0 %v770
    %1244 = vmatprep.subr.bf16.mxu0 %v775
    %1245 = vmatpush1.bf16.msra.mxu0 %v774
    %1246 = vmatprep.subr.bf16.mxu0 %v779
    %1247 = vmatpush1.bf16.msra.mxu0 %v778
    %1248 = vmatprep.subr.bf16.mxu0 %v783
    %1249 = vmatpush1.bf16.msra.mxu0 %v782
    %1250 = vmatprep.subr.bf16.mxu0 %v787
    %1251 = vmatpush1.bf16.msra.mxu0 %v786
    %1252 = vmatprep.subr.bf16.mxu0 %v791
    %1253 = vmatpush1.bf16.msra.mxu0 %v790
    %1254 = vmatprep.subr.bf16.mxu0 %v795
    %1255 = vmatpush1.bf16.msra.mxu0 %v794
    %1256 = vmatprep.subr.bf16.mxu0 %v799
    %1257 = vmatpush1.bf16.msra.mxu0 %v798
    %1258 = vmatprep.subr.bf16.mxu0 %v803
    %1259 = vmatpush1.bf16.msra.mxu0 %v802
    %1260 = vmatprep.subr.bf16.mxu0 %v807
    %1261 = vmatpush1.bf16.msra.mxu0 %v806
    %1262 = vmatprep.subr.bf16.mxu0 %v811
    %1263 = vmatpush1.bf16.msra.mxu0 %v810
    %1264 = vmatprep.subr.bf16.mxu0 %v815
    %1265 = vmatpush1.bf16.msra.mxu0 %v814
    %1266 = vmatprep.mubr.bf16.mxu0 %v187
    %1267 = vmatmul.mubr.bf16.gmra.mrb[0].mxu0 %v186
    %v1268 = vpop.f32.mrb[0].mxu0
    %v1269 = vadd.f32 %v359, %v1268
    %v1270 = vpop.f32.mrb[0].mxu0
    %v1271 = vadd.f32 %v363, %v1270
    %v1272 = vpop.f32.mrb[0].mxu0
    %v1273 = vadd.f32 %v359, %v1272
    %v1274 = vpop.f32.mrb[0].mxu0
    %v1275 = vadd.f32 %v363, %v1274
    %1276 = vmatprep.mubr.bf16.mxu0 %v191
    %1277 = vmatmul.mubr.bf16.gmra.mrb[0].mxu0 %v190
    %v1278 = vpop.f32.mrb[0].mxu0
    %v1279 = vadd.f32 %v359, %v1278
    %v1280 = vpop.f32.mrb[0].mxu0
    %v1281 = vadd.f32 %v363, %v1280
    %v1282 = vpop.f32.mrb[0].mxu0
    %v1283 = vadd.f32 %v359, %v1282
    %v1284 = vpop.f32.mrb[0].mxu0
    %v1285 = vadd.f32 %v363, %v1284
    %1286 = vmatprep.mubr.bf16.mxu0 %v195
    %1287 = vmatmul.mubr.bf16.gmra.mrb[0].mxu0 %v194
    %v1288 = vpop.f32.mrb[0].mxu0
    %v1289 = vadd.f32 %v359, %v1288
    %v1290 = vpop.f32.mrb[0].mxu0
    %v1291 = vadd.f32 %v363, %v1290
    %v1292 = vpop.f32.mrb[0].mxu0
    %v1293 = vadd.f32 %v359, %v1292
    %v1294 = vpop.f32.mrb[0].mxu0
    %v1295 = vadd.f32 %v363, %v1294
    %1296 = vmatprep.mubr.bf16.mxu0 %v199
    %1297 = vmatmul.mubr.bf16.gmra.mrb[0].mxu0 %v198
    %v1298 = vpop.f32.mrb[0].mxu0
    %v1299 = vadd.f32 %v359, %v1298
    %v1300 = vpop.f32.mrb[0].mxu0
    %v1301 = vadd.f32 %v363, %v1300
    %v1302 = vpop.f32.mrb[0].mxu0
    %v1303 = vadd.f32 %v359, %v1302
    %v1304 = vpop.f32.mrb[0].mxu0
    %v1305 = vadd.f32 %v363, %v1304
    %1306 = vmatprep.mubr.bf16.mxu0 %v203
    %1307 = vmatmul.mubr.bf16.gmra.mrb[0].mxu0 %v202
    %v1308 = vpop.f32.mrb[0].mxu0
    %v1309 = vadd.f32 %v359, %v1308
    %v1310 = vpop.f32.mrb[0].mxu0
    %v1311 = vadd.f32 %v363, %v1310
    %v1312 = vpop.f32.mrb[0].mxu0
    %v1313 = vadd.f32 %v359, %v1312
    %v1314 = vpop.f32.mrb[0].mxu0
    %v1315 = vadd.f32 %v363, %v1314
    %1316 = vmatprep.mubr.bf16.mxu0 %v207
    %1317 = vmatmul.mubr.bf16.gmra.mrb[0].mxu0 %v206
    %v1318 = vpop.f32.mrb[0].mxu0
    %v1319 = vadd.f32 %v359, %v1318
    %v1320 = vpop.f32.mrb[0].mxu0
    %v1321 = vadd.f32 %v363, %v1320
    %v1322 = vpop.f32.mrb[0].mxu0
    %v1323 = vadd.f32 %v359, %v1322
    %v1324 = vpop.f32.mrb[0].mxu0
    %v1325 = vadd.f32 %v363, %v1324
    %1326 = vmatprep.mubr.bf16.mxu0 %v211
    %1327 = vmatmul.mubr.bf16.gmra.mrb[0].mxu0 %v210
    %v1328 = vpop.f32.mrb[0].mxu0
    %v1329 = vadd.f32 %v359, %v1328
    %v1330 = vpop.f32.mrb[0].mxu0
    %v1331 = vadd.f32 %v363, %v1330
    %v1332 = vpop.f32.mrb[0].mxu0
    %v1333 = vadd.f32 %v359, %v1332
    %v1334 = vpop.f32.mrb[0].mxu0
    %v1335 = vadd.f32 %v363, %v1334
    %1336 = vmatprep.mubr.bf16.mxu0 %v215
    %1337 = vmatmul.mubr.bf16.gmra.mrb[0].mxu0 %v214
    %v1338 = vpop.f32.mrb[0].mxu0
    %v1339 = vadd.f32 %v359, %v1338
    %v1340 = vpop.f32.mrb[0].mxu0
    %v1341 = vadd.f32 %v363, %v1340
    %v1342 = vpop.f32.mrb[0].mxu0
    %v1343 = vadd.f32 %v359, %v1342
    %v1344 = vpop.f32.mrb[0].mxu0
    %v1345 = vadd.f32 %v363, %v1344
    %1346 = vdwg.mxu0
    %1347 = vmatprep.subr.bf16.mxu0 %v819
    %1348 = vmatpush1.bf16.msra.mxu0 %v818
    %1349 = vmatprep.subr.bf16.mxu0 %v823
    %1350 = vmatpush1.bf16.msra.mxu0 %v822
    %1351 = vmatprep.subr.bf16.mxu0 %v827
    %1352 = vmatpush1.bf16.msra.mxu0 %v826
    %1353 = vmatprep.subr.bf16.mxu0 %v831
    %1354 = vmatpush1.bf16.msra.mxu0 %v830
    %1355 = vmatprep.subr.bf16.mxu0 %v835
    %1356 = vmatpush1.bf16.msra.mxu0 %v834
    %1357 = vmatprep.subr.bf16.mxu0 %v839
    %1358 = vmatpush1.bf16.msra.mxu0 %v838
    %1359 = vmatprep.subr.bf16.mxu0 %v843
    %1360 = vmatpush1.bf16.msra.mxu0 %v842
    %1361 = vmatprep.subr.bf16.mxu0 %v847
    %1362 = vmatpush1.bf16.msra.mxu0 %v846
    %1363 = vmatprep.subr.bf16.mxu0 %v851
    %1364 = vmatpush1.bf16.msra.mxu0 %v850
    %1365 = vmatprep.subr.bf16.mxu0 %v855
    %1366 = vmatpush1.bf16.msra.mxu0 %v854
    %1367 = vmatprep.subr.bf16.mxu0 %v859
    %1368 = vmatpush1.bf16.msra.mxu0 %v858
    %1369 = vmatprep.subr.bf16.mxu0 %v863
    %1370 = vmatpush1.bf16.msra.mxu0 %v862
    %1371 = vmatprep.subr.bf16.mxu0 %v867
    %1372 = vmatpush1.bf16.msra.mxu0 %v866
    %1373 = vmatprep.subr.bf16.mxu0 %v871
    %1374 = vmatpush1.bf16.msra.mxu0 %v870
    %1375 = vmatprep.subr.bf16.mxu0 %v875
    %1376 = vmatpush1.bf16.msra.mxu0 %v874
    %1377 = vmatprep.subr.bf16.mxu0 %v879
    %1378 = vmatpush1.bf16.msra.mxu0 %v878
    %1379 = vmatprep.mubr.bf16.mxu0 %v189
    %1380 = vmatmul.mubr.bf16.gmra.mrb[0].mxu0 %v188
    %v1381 = vpop.f32.mrb[0].mxu0
    %v1382 = vadd.f32 %v1269, %v1381
    %v1383 = vpop.f32.mrb[0].mxu0
    %v1384 = vadd.f32 %v1271, %v1383
    %v1385 = vpop.f32.mrb[0].mxu0
    %v1386 = vadd.f32 %v1273, %v1385
    %v1387 = vpop.f32.mrb[0].mxu0
    %v1388 = vadd.f32 %v1275, %v1387
    %1389 = vmatprep.mubr.bf16.mxu0 %v193
    %1390 = vmatmul.mubr.bf16.gmra.mrb[0].mxu0 %v192
    %v1391 = vpop.f32.mrb[0].mxu0
    %v1392 = vadd.f32 %v1279, %v1391
    %v1393 = vpop.f32.mrb[0].mxu0
    %v1394 = vadd.f32 %v1281, %v1393
    %v1395 = vpop.f32.mrb[0].mxu0
    %v1396 = vadd.f32 %v1283, %v1395
    %v1397 = vpop.f32.mrb[0].mxu0
    %v1398 = vadd.f32 %v1285, %v1397
    %1399 = vmatprep.mubr.bf16.mxu0 %v197
    %1400 = vmatmul.mubr.bf16.gmra.mrb[0].mxu0 %v196
    %v1401 = vpop.f32.mrb[0].mxu0
    %v1402 = vadd.f32 %v1289, %v1401
    %v1403 = vpop.f32.mrb[0].mxu0
    %v1404 = vadd.f32 %v1291, %v1403
    %v1405 = vpop.f32.mrb[0].mxu0
    %v1406 = vadd.f32 %v1293, %v1405
    %v1407 = vpop.f32.mrb[0].mxu0
    %v1408 = vadd.f32 %v1295, %v1407
    %1409 = vmatprep.mubr.bf16.mxu0 %v201
    %1410 = vmatmul.mubr.bf16.gmra.mrb[0].mxu0 %v200
    %v1411 = vpop.f32.mrb[0].mxu0
    %v1412 = vadd.f32 %v1299, %v1411
    %v1413 = vpop.f32.mrb[0].mxu0
    %v1414 = vadd.f32 %v1301, %v1413
    %v1415 = vpop.f32.mrb[0].mxu0
    %v1416 = vadd.f32 %v1303, %v1415
    %v1417 = vpop.f32.mrb[0].mxu0
    %v1418 = vadd.f32 %v1305, %v1417
    %1419 = vmatprep.mubr.bf16.mxu0 %v205
    %1420 = vmatmul.mubr.bf16.gmra.mrb[0].mxu0 %v204
    %v1421 = vpop.f32.mrb[0].mxu0
    %v1422 = vadd.f32 %v1309, %v1421
    %v1423 = vpop.f32.mrb[0].mxu0
    %v1424 = vadd.f32 %v1311, %v1423
    %v1425 = vpop.f32.mrb[0].mxu0
    %v1426 = vadd.f32 %v1313, %v1425
    %v1427 = vpop.f32.mrb[0].mxu0
    %v1428 = vadd.f32 %v1315, %v1427
    %1429 = vmatprep.mubr.bf16.mxu0 %v209
    %1430 = vmatmul.mubr.bf16.gmra.mrb[0].mxu0 %v208
    %v1431 = vpop.f32.mrb[0].mxu0
    %v1432 = vadd.f32 %v1319, %v1431
    %v1433 = vpop.f32.mrb[0].mxu0
    %v1434 = vadd.f32 %v1321, %v1433
    %v1435 = vpop.f32.mrb[0].mxu0
    %v1436 = vadd.f32 %v1323, %v1435
    %v1437 = vpop.f32.mrb[0].mxu0
    %v1438 = vadd.f32 %v1325, %v1437
    %1439 = vmatprep.mubr.bf16.mxu0 %v213
    %1440 = vmatmul.mubr.bf16.gmra.mrb[0].mxu0 %v212
    %v1441 = vpop.f32.mrb[0].mxu0
    %v1442 = vadd.f32 %v1329, %v1441
    %v1443 = vpop.f32.mrb[0].mxu0
    %v1444 = vadd.f32 %v1331, %v1443
    %v1445 = vpop.f32.mrb[0].mxu0
    %v1446 = vadd.f32 %v1333, %v1445
    %v1447 = vpop.f32.mrb[0].mxu0
    %v1448 = vadd.f32 %v1335, %v1447
    %1449 = vmatprep.mubr.bf16.mxu0 %v217
    %1450 = vmatmul.mubr.bf16.gmra.mrb[0].mxu0 %v216
    %v1451 = vpop.f32.mrb[0].mxu0
    %v1452 = vadd.f32 %v1339, %v1451
    %v1453 = vpop.f32.mrb[0].mxu0
    %v1454 = vadd.f32 %v1341, %v1453
    %v1455 = vpop.f32.mrb[0].mxu0
    %v1456 = vadd.f32 %v1343, %v1455
    %v1457 = vpop.f32.mrb[0].mxu0
    %v1458 = vadd.f32 %v1345, %v1457
    %1459 = vdwg.mxu0
    %v1460 = vmax.f32 %v1156, 0.0
    %v1461 = vmax.f32 %v1158, 0.0
    %v1462 = vmax.f32 %v1382, 0.0
    %v1463 = vmax.f32 %v1384, 0.0
    %v1464 = vmax.f32 %v1160, 0.0
    %v1465 = vmax.f32 %v1162, 0.0
    %v1466 = vmax.f32 %v1386, 0.0
    %v1467 = vmax.f32 %v1388, 0.0
    %v1468 = vmax.f32 %v1166, 0.0
    %v1469 = vmax.f32 %v1168, 0.0
    %v1470 = vmax.f32 %v1392, 0.0
    %v1471 = vmax.f32 %v1394, 0.0
    %v1472 = vmax.f32 %v1170, 0.0
    %v1473 = vmax.f32 %v1172, 0.0
    %v1474 = vmax.f32 %v1396, 0.0
    %v1475 = vmax.f32 %v1398, 0.0
    %v1476 = vmax.f32 %v1176, 0.0
    %v1477 = vmax.f32 %v1178, 0.0
    %v1478 = vmax.f32 %v1402, 0.0
    %v1479 = vmax.f32 %v1404, 0.0
    %v1480 = vmax.f32 %v1180, 0.0
    %v1481 = vmax.f32 %v1182, 0.0
    %v1482 = vmax.f32 %v1406, 0.0
    %v1483 = vmax.f32 %v1408, 0.0
    %v1484 = vmax.f32 %v1186, 0.0
    %v1485 = vmax.f32 %v1188, 0.0
    %v1486 = vmax.f32 %v1412, 0.0
    %v1487 = vmax.f32 %v1414, 0.0
    %v1488 = vmax.f32 %v1190, 0.0
    %v1489 = vmax.f32 %v1192, 0.0
    %v1490 = vmax.f32 %v1416, 0.0
    %v1491 = vmax.f32 %v1418, 0.0
    %v1492 = vmax.f32 %v1196, 0.0
    %v1493 = vmax.f32 %v1198, 0.0
    %v1494 = vmax.f32 %v1422, 0.0
    %v1495 = vmax.f32 %v1424, 0.0
    %v1496 = vmax.f32 %v1200, 0.0
    %v1497 = vmax.f32 %v1202, 0.0
    %v1498 = vmax.f32 %v1426, 0.0
    %v1499 = vmax.f32 %v1428, 0.0
    %v1500 = vmax.f32 %v1206, 0.0
    %v1501 = vmax.f32 %v1208, 0.0
    %v1502 = vmax.f32 %v1432, 0.0
    %v1503 = vmax.f32 %v1434, 0.0
    %v1504 = vmax.f32 %v1210, 0.0
    %v1505 = vmax.f32 %v1212, 0.0
    %v1506 = vmax.f32 %v1436, 0.0
    %v1507 = vmax.f32 %v1438, 0.0
    %v1508 = vmax.f32 %v1216, 0.0
    %v1509 = vmax.f32 %v1218, 0.0
    %v1510 = vmax.f32 %v1442, 0.0
    %v1511 = vmax.f32 %v1444, 0.0
    %v1512 = vmax.f32 %v1220, 0.0
    %v1513 = vmax.f32 %v1222, 0.0
    %v1514 = vmax.f32 %v1446, 0.0
    %v1515 = vmax.f32 %v1448, 0.0
    %v1516 = vmax.f32 %v1226, 0.0
    %v1517 = vmax.f32 %v1228, 0.0
    %v1518 = vmax.f32 %v1452, 0.0
    %v1519 = vmax.f32 %v1454, 0.0
    %v1520 = vmax.f32 %v1230, 0.0
    %v1521 = vmax.f32 %v1232, 0.0
    %v1522 = vmax.f32 %v1456, 0.0
    %v1523 = vmax.f32 %v1458, 0.0
    %v1524 = vpack.c.bf16 %v1464, %v1460
    %v1525 = vpack.c.bf16 %v1465, %v1461
    %v1526 = vpack.c.bf16 %v1466, %v1462
    %v1527 = vpack.c.bf16 %v1467, %v1463
    %v1528 = vpack.c.bf16 %v1472, %v1468
    %v1529 = vpack.c.bf16 %v1473, %v1469
    %v1530 = vpack.c.bf16 %v1474, %v1470
    %v1531 = vpack.c.bf16 %v1475, %v1471
    %v1532 = vpack.c.bf16 %v1480, %v1476
    %v1533 = vpack.c.bf16 %v1481, %v1477
    %v1534 = vpack.c.bf16 %v1482, %v1478
    %v1535 = vpack.c.bf16 %v1483, %v1479
    %v1536 = vpack.c.bf16 %v1488, %v1484
    %v1537 = vpack.c.bf16 %v1489, %v1485
    %v1538 = vpack.c.bf16 %v1490, %v1486
    %v1539 = vpack.c.bf16 %v1491, %v1487
    %v1540 = vpack.c.bf16 %v1496, %v1492
    %v1541 = vpack.c.bf16 %v1497, %v1493
    %v1542 = vpack.c.bf16 %v1498, %v1494
    %v1543 = vpack.c.bf16 %v1499, %v1495
    %v1544 = vpack.c.bf16 %v1504, %v1500
    %v1545 = vpack.c.bf16 %v1505, %v1501
    %v1546 = vpack.c.bf16 %v1506, %v1502
    %v1547 = vpack.c.bf16 %v1507, %v1503
    %v1548 = vpack.c.bf16 %v1512, %v1508
    %v1549 = vpack.c.bf16 %v1513, %v1509
    %v1550 = vpack.c.bf16 %v1514, %v1510
    %v1551 = vpack.c.bf16 %v1515, %v1511
    %v1552 = vpack.c.bf16 %v1520, %v1516
    %v1553 = vpack.c.bf16 %v1521, %v1517
    %v1554 = vpack.c.bf16 %v1522, %v1518
    %v1555 = vpack.c.bf16 %v1523, %v1519
    %v1556 = vld [vmem:[#allocation7] sm:$0xff]
    %v1557 = vld [vmem:[#allocation7 + $0x8] sm:$0xff]
    %v1558 = vld [vmem:[#allocation7 + $0x10] sm:$0xff]
    %v1559 = vld [vmem:[#allocation7 + $0x18] sm:$0xff]
    %v1560 = vld [vmem:[#allocation7 + $0x20] sm:$0xff]
    %v1561 = vld [vmem:[#allocation7 + $0x28] sm:$0xff]
    %v1562 = vld [vmem:[#allocation7 + $0x30] sm:$0xff]
    %v1563 = vld [vmem:[#allocation7 + $0x38] sm:$0xff]
    %v1564 = vld [vmem:[#allocation7 + $0x40] sm:$0xff]
    %v1565 = vld [vmem:[#allocation7 + $0x48] sm:$0xff]
    %v1566 = vld [vmem:[#allocation7 + $0x50] sm:$0xff]
    %v1567 = vld [vmem:[#allocation7 + $0x58] sm:$0xff]
    %v1568 = vld [vmem:[#allocation7 + $0x60] sm:$0xff]
    %v1569 = vld [vmem:[#allocation7 + $0x68] sm:$0xff]
    %v1570 = vld [vmem:[#allocation7 + $0x70] sm:$0xff]
    %v1571 = vld [vmem:[#allocation7 + $0x78] sm:$0xff]
    %v1572 = vld [vmem:[#allocation7 + $0x80] sm:$0xff]
    %v1573 = vld [vmem:[#allocation7 + $0x88] sm:$0xff]
    %v1574 = vld [vmem:[#allocation7 + $0x90] sm:$0xff]
    %v1575 = vld [vmem:[#allocation7 + $0x98] sm:$0xff]
    %v1576 = vld [vmem:[#allocation7 + $0xa0] sm:$0xff]
    %v1577 = vld [vmem:[#allocation7 + $0xa8] sm:$0xff]
    %v1578 = vld [vmem:[#allocation7 + $0xb0] sm:$0xff]
    %v1579 = vld [vmem:[#allocation7 + $0xb8] sm:$0xff]
    %v1580 = vld [vmem:[#allocation7 + $0xc0] sm:$0xff]
    %v1581 = vld [vmem:[#allocation7 + $0xc8] sm:$0xff]
    %v1582 = vld [vmem:[#allocation7 + $0xd0] sm:$0xff]
    %v1583 = vld [vmem:[#allocation7 + $0xd8] sm:$0xff]
    %v1584 = vld [vmem:[#allocation7 + $0xe0] sm:$0xff]
    %v1585 = vld [vmem:[#allocation7 + $0xe8] sm:$0xff]
    %v1586 = vld [vmem:[#allocation7 + $0xf0] sm:$0xff]
    %v1587 = vld [vmem:[#allocation7 + $0xf8] sm:$0xff]
    %v1588 = vld [vmem:[#allocation7 + $0x100] sm:$0xff]
    %v1589 = vld [vmem:[#allocation7 + $0x108] sm:$0xff]
    %v1590 = vld [vmem:[#allocation7 + $0x110] sm:$0xff]
    %v1591 = vld [vmem:[#allocation7 + $0x118] sm:$0xff]
    %v1592 = vld [vmem:[#allocation7 + $0x120] sm:$0xff]
    %v1593 = vld [vmem:[#allocation7 + $0x128] sm:$0xff]
    %v1594 = vld [vmem:[#allocation7 + $0x130] sm:$0xff]
    %v1595 = vld [vmem:[#allocation7 + $0x138] sm:$0xff]
    %v1596 = vld [vmem:[#allocation7 + $0x140] sm:$0xff]
    %v1597 = vld [vmem:[#allocation7 + $0x148] sm:$0xff]
    %v1598 = vld [vmem:[#allocation7 + $0x150] sm:$0xff]
    %v1599 = vld [vmem:[#allocation7 + $0x158] sm:$0xff]
    %v1600 = vld [vmem:[#allocation7 + $0x160] sm:$0xff]
    %v1601 = vld [vmem:[#allocation7 + $0x168] sm:$0xff]
    %v1602 = vld [vmem:[#allocation7 + $0x170] sm:$0xff]
    %v1603 = vld [vmem:[#allocation7 + $0x178] sm:$0xff]
    %v1604 = vld [vmem:[#allocation7 + $0x180] sm:$0xff]
    %v1605 = vld [vmem:[#allocation7 + $0x188] sm:$0xff]
    %v1606 = vld [vmem:[#allocation7 + $0x190] sm:$0xff]
    %v1607 = vld [vmem:[#allocation7 + $0x198] sm:$0xff]
    %v1608 = vld [vmem:[#allocation7 + $0x1a0] sm:$0xff]
    %v1609 = vld [vmem:[#allocation7 + $0x1a8] sm:$0xff]
    %v1610 = vld [vmem:[#allocation7 + $0x1b0] sm:$0xff]
    %v1611 = vld [vmem:[#allocation7 + $0x1b8] sm:$0xff]
    %v1612 = vld [vmem:[#allocation7 + $0x1c0] sm:$0xff]
    %v1613 = vld [vmem:[#allocation7 + $0x1c8] sm:$0xff]
    %v1614 = vld [vmem:[#allocation7 + $0x1d0] sm:$0xff]
    %v1615 = vld [vmem:[#allocation7 + $0x1d8] sm:$0xff]
    %v1616 = vld [vmem:[#allocation7 + $0x1e0] sm:$0xff]
    %v1617 = vld [vmem:[#allocation7 + $0x1e8] sm:$0xff]
    %v1618 = vld [vmem:[#allocation7 + $0x1f0] sm:$0xff]
    %v1619 = vld [vmem:[#allocation7 + $0x1f8] sm:$0xff]
    %v1620 = vld [vmem:[#allocation7 + $0x200] sm:$0xff]
    %v1621 = vld [vmem:[#allocation7 + $0x208] sm:$0xff]
    %v1622 = vld [vmem:[#allocation7 + $0x210] sm:$0xff]
    %v1623 = vld [vmem:[#allocation7 + $0x218] sm:$0xff]
    %v1624 = vld [vmem:[#allocation7 + $0x220] sm:$0xff]
    %v1625 = vld [vmem:[#allocation7 + $0x228] sm:$0xff]
    %v1626 = vld [vmem:[#allocation7 + $0x230] sm:$0xff]
    %v1627 = vld [vmem:[#allocation7 + $0x238] sm:$0xff]
    %v1628 = vld [vmem:[#allocation7 + $0x240] sm:$0xff]
    %v1629 = vld [vmem:[#allocation7 + $0x248] sm:$0xff]
    %v1630 = vld [vmem:[#allocation7 + $0x250] sm:$0xff]
    %v1631 = vld [vmem:[#allocation7 + $0x258] sm:$0xff]
    %v1632 = vld [vmem:[#allocation7 + $0x260] sm:$0xff]
    %v1633 = vld [vmem:[#allocation7 + $0x268] sm:$0xff]
    %v1634 = vld [vmem:[#allocation7 + $0x270] sm:$0xff]
    %v1635 = vld [vmem:[#allocation7 + $0x278] sm:$0xff]
    %v1636 = vld [vmem:[#allocation7 + $0x280] sm:$0xff]
    %v1637 = vld [vmem:[#allocation7 + $0x288] sm:$0xff]
    %v1638 = vld [vmem:[#allocation7 + $0x290] sm:$0xff]
    %v1639 = vld [vmem:[#allocation7 + $0x298] sm:$0xff]
    %v1640 = vld [vmem:[#allocation7 + $0x2a0] sm:$0xff]
    %v1641 = vld [vmem:[#allocation7 + $0x2a8] sm:$0xff]
    %v1642 = vld [vmem:[#allocation7 + $0x2b0] sm:$0xff]
    %v1643 = vld [vmem:[#allocation7 + $0x2b8] sm:$0xff]
    %v1644 = vld [vmem:[#allocation7 + $0x2c0] sm:$0xff]
    %v1645 = vld [vmem:[#allocation7 + $0x2c8] sm:$0xff]
    %v1646 = vld [vmem:[#allocation7 + $0x2d0] sm:$0xff]
    %v1647 = vld [vmem:[#allocation7 + $0x2d8] sm:$0xff]
    %v1648 = vld [vmem:[#allocation7 + $0x2e0] sm:$0xff]
    %v1649 = vld [vmem:[#allocation7 + $0x2e8] sm:$0xff]
    %v1650 = vld [vmem:[#allocation7 + $0x2f0] sm:$0xff]
    %v1651 = vld [vmem:[#allocation7 + $0x2f8] sm:$0xff]
    %v1652 = vld [vmem:[#allocation7 + $0x300] sm:$0xff]
    %v1653 = vld [vmem:[#allocation7 + $0x308] sm:$0xff]
    %v1654 = vld [vmem:[#allocation7 + $0x310] sm:$0xff]
    %v1655 = vld [vmem:[#allocation7 + $0x318] sm:$0xff]
    %v1656 = vld [vmem:[#allocation7 + $0x320] sm:$0xff]
    %v1657 = vld [vmem:[#allocation7 + $0x328] sm:$0xff]
    %v1658 = vld [vmem:[#allocation7 + $0x330] sm:$0xff]
    %v1659 = vld [vmem:[#allocation7 + $0x338] sm:$0xff]
    %v1660 = vld [vmem:[#allocation7 + $0x340] sm:$0xff]
    %v1661 = vld [vmem:[#allocation7 + $0x348] sm:$0xff]
    %v1662 = vld [vmem:[#allocation7 + $0x350] sm:$0xff]
    %v1663 = vld [vmem:[#allocation7 + $0x358] sm:$0xff]
    %v1664 = vld [vmem:[#allocation7 + $0x360] sm:$0xff]
    %v1665 = vld [vmem:[#allocation7 + $0x368] sm:$0xff]
    %v1666 = vld [vmem:[#allocation7 + $0x370] sm:$0xff]
    %v1667 = vld [vmem:[#allocation7 + $0x378] sm:$0xff]
    %v1668 = vld [vmem:[#allocation7 + $0x380] sm:$0xff]
    %v1669 = vld [vmem:[#allocation7 + $0x388] sm:$0xff]
    %v1670 = vld [vmem:[#allocation7 + $0x390] sm:$0xff]
    %v1671 = vld [vmem:[#allocation7 + $0x398] sm:$0xff]
    %v1672 = vld [vmem:[#allocation7 + $0x3a0] sm:$0xff]
    %v1673 = vld [vmem:[#allocation7 + $0x3a8] sm:$0xff]
    %v1674 = vld [vmem:[#allocation7 + $0x3b0] sm:$0xff]
    %v1675 = vld [vmem:[#allocation7 + $0x3b8] sm:$0xff]
    %v1676 = vld [vmem:[#allocation7 + $0x3c0] sm:$0xff]
    %v1677 = vld [vmem:[#allocation7 + $0x3c8] sm:$0xff]
    %v1678 = vld [vmem:[#allocation7 + $0x3d0] sm:$0xff]
    %v1679 = vld [vmem:[#allocation7 + $0x3d8] sm:$0xff]
    %v1680 = vld [vmem:[#allocation7 + $0x3e0] sm:$0xff]
    %v1681 = vld [vmem:[#allocation7 + $0x3e8] sm:$0xff]
    %v1682 = vld [vmem:[#allocation7 + $0x3f0] sm:$0xff]
    %v1683 = vld [vmem:[#allocation7 + $0x3f8] sm:$0xff]
    %v1684 = vld [vmem:[%s4] sm:$0xf]
    %v1686 = vlaneseq
    %v1687 = vshrl.u32 %v1686, 7
    %v1688 = vsub.s32 0, %v1687
    %v1689 = vrot.slane %v1684, %v1688
    %v1690 = vlaneseq
    %v1691 = vshrl.u32 %v1690, 7
    %v1692 = vsub.s32 1, %v1691
    %v1693 = vrot.slane %v1684, %v1692
    %v1694 = vlaneseq
    %v1695 = vshrl.u32 %v1694, 7
    %v1696 = vsub.s32 2, %v1695
    %v1697 = vrot.slane %v1684, %v1696
    %v1698 = vlaneseq
    %v1699 = vshrl.u32 %v1698, 7
    %v1700 = vsub.s32 3, %v1699
    %v1701 = vrot.slane %v1684, %v1700
    %v1834 = vunpack.c.l.b16 %v1556
    %v1835 = vunpack.c.h.b16 %v1556
    %v1836 = vunpack.c.l.b16 %v1557
    %v1837 = vunpack.c.h.b16 %v1557
    %v1838 = vunpack.c.l.b16 %v1558
    %v1839 = vunpack.c.h.b16 %v1558
    %v1840 = vunpack.c.l.b16 %v1559
    %v1841 = vunpack.c.h.b16 %v1559
    %v1842 = vunpack.c.l.b16 %v1560
    %v1843 = vunpack.c.h.b16 %v1560
    %v1844 = vunpack.c.l.b16 %v1561
    %v1845 = vunpack.c.h.b16 %v1561
    %v1846 = vunpack.c.l.b16 %v1562
    %v1847 = vunpack.c.h.b16 %v1562
    %v1848 = vunpack.c.l.b16 %v1563
    %v1849 = vunpack.c.h.b16 %v1563
    %v1850 = vunpack.c.l.b16 %v1564
    %v1851 = vunpack.c.h.b16 %v1564
    %v1852 = vunpack.c.l.b16 %v1565
    %v1853 = vunpack.c.h.b16 %v1565
    %v1854 = vunpack.c.l.b16 %v1566
    %v1855 = vunpack.c.h.b16 %v1566
    %v1856 = vunpack.c.l.b16 %v1567
    %v1857 = vunpack.c.h.b16 %v1567
    %v1858 = vunpack.c.l.b16 %v1568
    %v1859 = vunpack.c.h.b16 %v1568
    %v1860 = vunpack.c.l.b16 %v1569
    %v1861 = vunpack.c.h.b16 %v1569
    %v1862 = vunpack.c.l.b16 %v1570
    %v1863 = vunpack.c.h.b16 %v1570
    %v1864 = vunpack.c.l.b16 %v1571
    %v1865 = vunpack.c.h.b16 %v1571
    %v1866 = vunpack.c.l.b16 %v1572
    %v1867 = vunpack.c.h.b16 %v1572
    %v1868 = vunpack.c.l.b16 %v1573
    %v1869 = vunpack.c.h.b16 %v1573
    %v1870 = vunpack.c.l.b16 %v1574
    %v1871 = vunpack.c.h.b16 %v1574
    %v1872 = vunpack.c.l.b16 %v1575
    %v1873 = vunpack.c.h.b16 %v1575
    %v1874 = vunpack.c.l.b16 %v1576
    %v1875 = vunpack.c.h.b16 %v1576
    %v1876 = vunpack.c.l.b16 %v1577
    %v1877 = vunpack.c.h.b16 %v1577
    %v1878 = vunpack.c.l.b16 %v1578
    %v1879 = vunpack.c.h.b16 %v1578
    %v1880 = vunpack.c.l.b16 %v1579
    %v1881 = vunpack.c.h.b16 %v1579
    %v1882 = vunpack.c.l.b16 %v1580
    %v1883 = vunpack.c.h.b16 %v1580
    %v1884 = vunpack.c.l.b16 %v1581
    %v1885 = vunpack.c.h.b16 %v1581
    %v1886 = vunpack.c.l.b16 %v1582
    %v1887 = vunpack.c.h.b16 %v1582
    %v1888 = vunpack.c.l.b16 %v1583
    %v1889 = vunpack.c.h.b16 %v1583
    %v1890 = vunpack.c.l.b16 %v1584
    %v1891 = vunpack.c.h.b16 %v1584
    %v1892 = vunpack.c.l.b16 %v1585
    %v1893 = vunpack.c.h.b16 %v1585
    %v1894 = vunpack.c.l.b16 %v1586
    %v1895 = vunpack.c.h.b16 %v1586
    %v1896 = vunpack.c.l.b16 %v1587
    %v1897 = vunpack.c.h.b16 %v1587
    %v1898 = vunpack.c.l.b16 %v1588
    %v1899 = vunpack.c.h.b16 %v1588
    %v1900 = vunpack.c.l.b16 %v1589
    %v1901 = vunpack.c.h.b16 %v1589
    %v1902 = vunpack.c.l.b16 %v1590
    %v1903 = vunpack.c.h.b16 %v1590
    %v1904 = vunpack.c.l.b16 %v1591
    %v1905 = vunpack.c.h.b16 %v1591
    %v1906 = vunpack.c.l.b16 %v1592
    %v1907 = vunpack.c.h.b16 %v1592
    %v1908 = vunpack.c.l.b16 %v1593
    %v1909 = vunpack.c.h.b16 %v1593
    %v1910 = vunpack.c.l.b16 %v1594
    %v1911 = vunpack.c.h.b16 %v1594
    %v1912 = vunpack.c.l.b16 %v1595
    %v1913 = vunpack.c.h.b16 %v1595
    %v1914 = vunpack.c.l.b16 %v1596
    %v1915 = vunpack.c.h.b16 %v1596
    %v1916 = vunpack.c.l.b16 %v1597
    %v1917 = vunpack.c.h.b16 %v1597
    %v1918 = vunpack.c.l.b16 %v1598
    %v1919 = vunpack.c.h.b16 %v1598
    %v1920 = vunpack.c.l.b16 %v1599
    %v1921 = vunpack.c.h.b16 %v1599
    %v1922 = vunpack.c.l.b16 %v1600
    %v1923 = vunpack.c.h.b16 %v1600
    %v1924 = vunpack.c.l.b16 %v1601
    %v1925 = vunpack.c.h.b16 %v1601
    %v1926 = vunpack.c.l.b16 %v1602
    %v1927 = vunpack.c.h.b16 %v1602
    %v1928 = vunpack.c.l.b16 %v1603
    %v1929 = vunpack.c.h.b16 %v1603
    %v1930 = vunpack.c.l.b16 %v1604
    %v1931 = vunpack.c.h.b16 %v1604
    %v1932 = vunpack.c.l.b16 %v1605
    %v1933 = vunpack.c.h.b16 %v1605
    %v1934 = vunpack.c.l.b16 %v1606
    %v1935 = vunpack.c.h.b16 %v1606
    %v1936 = vunpack.c.l.b16 %v1607
    %v1937 = vunpack.c.h.b16 %v1607
    %v1938 = vunpack.c.l.b16 %v1608
    %v1939 = vunpack.c.h.b16 %v1608
    %v1940 = vunpack.c.l.b16 %v1609
    %v1941 = vunpack.c.h.b16 %v1609
    %v1942 = vunpack.c.l.b16 %v1610
    %v1943 = vunpack.c.h.b16 %v1610
    %v1944 = vunpack.c.l.b16 %v1611
    %v1945 = vunpack.c.h.b16 %v1611
    %v1946 = vunpack.c.l.b16 %v1612
    %v1947 = vunpack.c.h.b16 %v1612
    %v1948 = vunpack.c.l.b16 %v1613
    %v1949 = vunpack.c.h.b16 %v1613
    %v1950 = vunpack.c.l.b16 %v1614
    %v1951 = vunpack.c.h.b16 %v1614
    %v1952 = vunpack.c.l.b16 %v1615
    %v1953 = vunpack.c.h.b16 %v1615
    %v1954 = vunpack.c.l.b16 %v1616
    %v1955 = vunpack.c.h.b16 %v1616
    %v1956 = vunpack.c.l.b16 %v1617
    %v1957 = vunpack.c.h.b16 %v1617
    %v1958 = vunpack.c.l.b16 %v1618
    %v1959 = vunpack.c.h.b16 %v1618
    %v1960 = vunpack.c.l.b16 %v1619
    %v1961 = vunpack.c.h.b16 %v1619
    %v1962 = vunpack.c.l.b16 %v1620
    %v1963 = vunpack.c.h.b16 %v1620
    %v1964 = vunpack.c.l.b16 %v1621
    %v1965 = vunpack.c.h.b16 %v1621
    %v1966 = vunpack.c.l.b16 %v1622
    %v1967 = vunpack.c.h.b16 %v1622
    %v1968 = vunpack.c.l.b16 %v1623
    %v1969 = vunpack.c.h.b16 %v1623
    %v1970 = vunpack.c.l.b16 %v1624
    %v1971 = vunpack.c.h.b16 %v1624
    %v1972 = vunpack.c.l.b16 %v1625
    %v1973 = vunpack.c.h.b16 %v1625
    %v1974 = vunpack.c.l.b16 %v1626
    %v1975 = vunpack.c.h.b16 %v1626
    %v1976 = vunpack.c.l.b16 %v1627
    %v1977 = vunpack.c.h.b16 %v1627
    %v1978 = vunpack.c.l.b16 %v1628
    %v1979 = vunpack.c.h.b16 %v1628
    %v1980 = vunpack.c.l.b16 %v1629
    %v1981 = vunpack.c.h.b16 %v1629
    %v1982 = vunpack.c.l.b16 %v1630
    %v1983 = vunpack.c.h.b16 %v1630
    %v1984 = vunpack.c.l.b16 %v1631
    %v1985 = vunpack.c.h.b16 %v1631
    %v1986 = vunpack.c.l.b16 %v1632
    %v1987 = vunpack.c.h.b16 %v1632
    %v1988 = vunpack.c.l.b16 %v1633
    %v1989 = vunpack.c.h.b16 %v1633
    %v1990 = vunpack.c.l.b16 %v1634
    %v1991 = vunpack.c.h.b16 %v1634
    %v1992 = vunpack.c.l.b16 %v1635
    %v1993 = vunpack.c.h.b16 %v1635
    %v1994 = vunpack.c.l.b16 %v1636
    %v1995 = vunpack.c.h.b16 %v1636
    %v1996 = vunpack.c.l.b16 %v1637
    %v1997 = vunpack.c.h.b16 %v1637
    %v1998 = vunpack.c.l.b16 %v1638
    %v1999 = vunpack.c.h.b16 %v1638
    %v2000 = vunpack.c.l.b16 %v1639
    %v2001 = vunpack.c.h.b16 %v1639
    %v2002 = vunpack.c.l.b16 %v1640
    %v2003 = vunpack.c.h.b16 %v1640
    %v2004 = vunpack.c.l.b16 %v1641
    %v2005 = vunpack.c.h.b16 %v1641
    %v2006 = vunpack.c.l.b16 %v1642
    %v2007 = vunpack.c.h.b16 %v1642
    %v2008 = vunpack.c.l.b16 %v1643
    %v2009 = vunpack.c.h.b16 %v1643
    %v2010 = vunpack.c.l.b16 %v1644
    %v2011 = vunpack.c.h.b16 %v1644
    %v2012 = vunpack.c.l.b16 %v1645
    %v2013 = vunpack.c.h.b16 %v1645
    %v2014 = vunpack.c.l.b16 %v1646
    %v2015 = vunpack.c.h.b16 %v1646
    %v2016 = vunpack.c.l.b16 %v1647
    %v2017 = vunpack.c.h.b16 %v1647
    %v2018 = vunpack.c.l.b16 %v1648
    %v2019 = vunpack.c.h.b16 %v1648
    %v2020 = vunpack.c.l.b16 %v1649
    %v2021 = vunpack.c.h.b16 %v1649
    %v2022 = vunpack.c.l.b16 %v1650
    %v2023 = vunpack.c.h.b16 %v1650
    %v2024 = vunpack.c.l.b16 %v1651
    %v2025 = vunpack.c.h.b16 %v1651
    %v2026 = vunpack.c.l.b16 %v1652
    %v2027 = vunpack.c.h.b16 %v1652
    %v2028 = vunpack.c.l.b16 %v1653
    %v2029 = vunpack.c.h.b16 %v1653
    %v2030 = vunpack.c.l.b16 %v1654
    %v2031 = vunpack.c.h.b16 %v1654
    %v2032 = vunpack.c.l.b16 %v1655
    %v2033 = vunpack.c.h.b16 %v1655
    %v2034 = vunpack.c.l.b16 %v1656
    %v2035 = vunpack.c.h.b16 %v1656
    %v2036 = vunpack.c.l.b16 %v1657
    %v2037 = vunpack.c.h.b16 %v1657
    %v2038 = vunpack.c.l.b16 %v1658
    %v2039 = vunpack.c.h.b16 %v1658
    %v2040 = vunpack.c.l.b16 %v1659
    %v2041 = vunpack.c.h.b16 %v1659
    %v2042 = vunpack.c.l.b16 %v1660
    %v2043 = vunpack.c.h.b16 %v1660
    %v2044 = vunpack.c.l.b16 %v1661
    %v2045 = vunpack.c.h.b16 %v1661
    %v2046 = vunpack.c.l.b16 %v1662
    %v2047 = vunpack.c.h.b16 %v1662
    %v2048 = vunpack.c.l.b16 %v1663
    %v2049 = vunpack.c.h.b16 %v1663
    %v2050 = vunpack.c.l.b16 %v1664
    %v2051 = vunpack.c.h.b16 %v1664
    %v2052 = vunpack.c.l.b16 %v1665
    %v2053 = vunpack.c.h.b16 %v1665
    %v2054 = vunpack.c.l.b16 %v1666
    %v2055 = vunpack.c.h.b16 %v1666
    %v2056 = vunpack.c.l.b16 %v1667
    %v2057 = vunpack.c.h.b16 %v1667
    %v2058 = vunpack.c.l.b16 %v1668
    %v2059 = vunpack.c.h.b16 %v1668
    %v2060 = vunpack.c.l.b16 %v1669
    %v2061 = vunpack.c.h.b16 %v1669
    %v2062 = vunpack.c.l.b16 %v1670
    %v2063 = vunpack.c.h.b16 %v1670
    %v2064 = vunpack.c.l.b16 %v1671
    %v2065 = vunpack.c.h.b16 %v1671
    %v2066 = vunpack.c.l.b16 %v1672
    %v2067 = vunpack.c.h.b16 %v1672
    %v2068 = vunpack.c.l.b16 %v1673
    %v2069 = vunpack.c.h.b16 %v1673
    %v2070 = vunpack.c.l.b16 %v1674
    %v2071 = vunpack.c.h.b16 %v1674
    %v2072 = vunpack.c.l.b16 %v1675
    %v2073 = vunpack.c.h.b16 %v1675
    %v2074 = vunpack.c.l.b16 %v1676
    %v2075 = vunpack.c.h.b16 %v1676
    %v2076 = vunpack.c.l.b16 %v1677
    %v2077 = vunpack.c.h.b16 %v1677
    %v2078 = vunpack.c.l.b16 %v1678
    %v2079 = vunpack.c.h.b16 %v1678
    %v2080 = vunpack.c.l.b16 %v1679
    %v2081 = vunpack.c.h.b16 %v1679
    %v2082 = vunpack.c.l.b16 %v1680
    %v2083 = vunpack.c.h.b16 %v1680
    %v2084 = vunpack.c.l.b16 %v1681
    %v2085 = vunpack.c.h.b16 %v1681
    %v2086 = vunpack.c.l.b16 %v1682
    %v2087 = vunpack.c.h.b16 %v1682
    %v2088 = vunpack.c.l.b16 %v1683
    %v2089 = vunpack.c.h.b16 %v1683
    %v2090 = vpack.c.b16 %v1838, %v1834
    %v2091 = vpack.c.b16 %v1839, %v1835
    %v2092 = vpack.c.b16 %v1840, %v1836
    %v2093 = vpack.c.b16 %v1841, %v1837
    %v2094 = vpack.c.b16 %v1846, %v1842
    %v2095 = vpack.c.b16 %v1847, %v1843
    %v2096 = vpack.c.b16 %v1848, %v1844
    %v2097 = vpack.c.b16 %v1849, %v1845
    %v2098 = vpack.c.b16 %v1854, %v1850
    %v2099 = vpack.c.b16 %v1855, %v1851
    %v2100 = vpack.c.b16 %v1856, %v1852
    %v2101 = vpack.c.b16 %v1857, %v1853
    %v2102 = vpack.c.b16 %v1862, %v1858
    %v2103 = vpack.c.b16 %v1863, %v1859
    %v2104 = vpack.c.b16 %v1864, %v1860
    %v2105 = vpack.c.b16 %v1865, %v1861
    %v2106 = vpack.c.b16 %v1870, %v1866
    %v2107 = vpack.c.b16 %v1871, %v1867
    %v2108 = vpack.c.b16 %v1872, %v1868
    %v2109 = vpack.c.b16 %v1873, %v1869
    %v2110 = vpack.c.b16 %v1878, %v1874
    %v2111 = vpack.c.b16 %v1879, %v1875
    %v2112 = vpack.c.b16 %v1880, %v1876
    %v2113 = vpack.c.b16 %v1881, %v1877
    %v2114 = vpack.c.b16 %v1886, %v1882
    %v2115 = vpack.c.b16 %v1887, %v1883
    %v2116 = vpack.c.b16 %v1888, %v1884
    %v2117 = vpack.c.b16 %v1889, %v1885
    %v2118 = vpack.c.b16 %v1894, %v1890
    %v2119 = vpack.c.b16 %v1895, %v1891
    %v2120 = vpack.c.b16 %v1896, %v1892
    %v2121 = vpack.c.b16 %v1897, %v1893
    %v2122 = vpack.c.b16 %v1902, %v1898
    %v2123 = vpack.c.b16 %v1903, %v1899
    %v2124 = vpack.c.b16 %v1904, %v1900
    %v2125 = vpack.c.b16 %v1905, %v1901
    %v2126 = vpack.c.b16 %v1910, %v1906
    %v2127 = vpack.c.b16 %v1911, %v1907
    %v2128 = vpack.c.b16 %v1912, %v1908
    %v2129 = vpack.c.b16 %v1913, %v1909
    %v2130 = vpack.c.b16 %v1918, %v1914
    %v2131 = vpack.c.b16 %v1919, %v1915
    %v2132 = vpack.c.b16 %v1920, %v1916
    %v2133 = vpack.c.b16 %v1921, %v1917
    %v2134 = vpack.c.b16 %v1926, %v1922
    %v2135 = vpack.c.b16 %v1927, %v1923
    %v2136 = vpack.c.b16 %v1928, %v1924
    %v2137 = vpack.c.b16 %v1929, %v1925
    %v2138 = vpack.c.b16 %v1934, %v1930
    %v2139 = vpack.c.b16 %v1935, %v1931
    %v2140 = vpack.c.b16 %v1936, %v1932
    %v2141 = vpack.c.b16 %v1937, %v1933
    %v2142 = vpack.c.b16 %v1942, %v1938
    %v2143 = vpack.c.b16 %v1943, %v1939
    %v2144 = vpack.c.b16 %v1944, %v1940
    %v2145 = vpack.c.b16 %v1945, %v1941
    %v2146 = vpack.c.b16 %v1950, %v1946
    %v2147 = vpack.c.b16 %v1951, %v1947
    %v2148 = vpack.c.b16 %v1952, %v1948
    %v2149 = vpack.c.b16 %v1953, %v1949
    %v2150 = vpack.c.b16 %v1958, %v1954
    %v2151 = vpack.c.b16 %v1959, %v1955
    %v2152 = vpack.c.b16 %v1960, %v1956
    %v2153 = vpack.c.b16 %v1961, %v1957
    %v2154 = vpack.c.b16 %v1966, %v1962
    %v2155 = vpack.c.b16 %v1967, %v1963
    %v2156 = vpack.c.b16 %v1968, %v1964
    %v2157 = vpack.c.b16 %v1969, %v1965
    %v2158 = vpack.c.b16 %v1974, %v1970
    %v2159 = vpack.c.b16 %v1975, %v1971
    %v2160 = vpack.c.b16 %v1976, %v1972
    %v2161 = vpack.c.b16 %v1977, %v1973
    %v2162 = vpack.c.b16 %v1982, %v1978
    %v2163 = vpack.c.b16 %v1983, %v1979
    %v2164 = vpack.c.b16 %v1984, %v1980
    %v2165 = vpack.c.b16 %v1985, %v1981
    %v2166 = vpack.c.b16 %v1990, %v1986
    %v2167 = vpack.c.b16 %v1991, %v1987
    %v2168 = vpack.c.b16 %v1992, %v1988
    %v2169 = vpack.c.b16 %v1993, %v1989
    %v2170 = vpack.c.b16 %v1998, %v1994
    %v2171 = vpack.c.b16 %v1999, %v1995
    %v2172 = vpack.c.b16 %v2000, %v1996
    %v2173 = vpack.c.b16 %v2001, %v1997
    %v2174 = vpack.c.b16 %v2006, %v2002
    %v2175 = vpack.c.b16 %v2007, %v2003
    %v2176 = vpack.c.b16 %v2008, %v2004
    %v2177 = vpack.c.b16 %v2009, %v2005
    %v2178 = vpack.c.b16 %v2014, %v2010
    %v2179 = vpack.c.b16 %v2015, %v2011
    %v2180 = vpack.c.b16 %v2016, %v2012
    %v2181 = vpack.c.b16 %v2017, %v2013
    %v2182 = vpack.c.b16 %v2022, %v2018
    %v2183 = vpack.c.b16 %v2023, %v2019
    %v2184 = vpack.c.b16 %v2024, %v2020
    %v2185 = vpack.c.b16 %v2025, %v2021
    %v2186 = vpack.c.b16 %v2030, %v2026
    %v2187 = vpack.c.b16 %v2031, %v2027
    %v2188 = vpack.c.b16 %v2032, %v2028
    %v2189 = vpack.c.b16 %v2033, %v2029
    %v2190 = vpack.c.b16 %v2038, %v2034
    %v2191 = vpack.c.b16 %v2039, %v2035
    %v2192 = vpack.c.b16 %v2040, %v2036
    %v2193 = vpack.c.b16 %v2041, %v2037
    %v2194 = vpack.c.b16 %v2046, %v2042
    %v2195 = vpack.c.b16 %v2047, %v2043
    %v2196 = vpack.c.b16 %v2048, %v2044
    %v2197 = vpack.c.b16 %v2049, %v2045
    %v2198 = vpack.c.b16 %v2054, %v2050
    %v2199 = vpack.c.b16 %v2055, %v2051
    %v2200 = vpack.c.b16 %v2056, %v2052
    %v2201 = vpack.c.b16 %v2057, %v2053
    %v2202 = vpack.c.b16 %v2062, %v2058
    %v2203 = vpack.c.b16 %v2063, %v2059
    %v2204 = vpack.c.b16 %v2064, %v2060
    %v2205 = vpack.c.b16 %v2065, %v2061
    %v2206 = vpack.c.b16 %v2070, %v2066
    %v2207 = vpack.c.b16 %v2071, %v2067
    %v2208 = vpack.c.b16 %v2072, %v2068
    %v2209 = vpack.c.b16 %v2073, %v2069
    %v2210 = vpack.c.b16 %v2078, %v2074
    %v2211 = vpack.c.b16 %v2079, %v2075
    %v2212 = vpack.c.b16 %v2080, %v2076
    %v2213 = vpack.c.b16 %v2081, %v2077
    %v2214 = vpack.c.b16 %v2086, %v2082
    %v2215 = vpack.c.b16 %v2087, %v2083
    %v2216 = vpack.c.b16 %v2088, %v2084
    %v2217 = vpack.c.b16 %v2089, %v2085
    %2346 = vmatprep.subr.bf16.mxu0 %v2091
    %2347 = vmatpush1.bf16.msra.mxu0 %v2090
    %2348 = vmatprep.subr.bf16.mxu0 %v2095
    %2349 = vmatpush1.bf16.msra.mxu0 %v2094
    %2350 = vmatprep.subr.bf16.mxu0 %v2099
    %2351 = vmatpush1.bf16.msra.mxu0 %v2098
    %2352 = vmatprep.subr.bf16.mxu0 %v2103
    %2353 = vmatpush1.bf16.msra.mxu0 %v2102
    %2354 = vmatprep.subr.bf16.mxu0 %v2107
    %2355 = vmatpush1.bf16.msra.mxu0 %v2106
    %2356 = vmatprep.subr.bf16.mxu0 %v2111
    %2357 = vmatpush1.bf16.msra.mxu0 %v2110
    %2358 = vmatprep.subr.bf16.mxu0 %v2115
    %2359 = vmatpush1.bf16.msra.mxu0 %v2114
    %2360 = vmatprep.subr.bf16.mxu0 %v2119
    %2361 = vmatpush1.bf16.msra.mxu0 %v2118
    %2362 = vmatprep.subr.bf16.mxu0 %v2123
    %2363 = vmatpush1.bf16.msra.mxu0 %v2122
    %2364 = vmatprep.subr.bf16.mxu0 %v2127
    %2365 = vmatpush1.bf16.msra.mxu0 %v2126
    %2366 = vmatprep.subr.bf16.mxu0 %v2131
    %2367 = vmatpush1.bf16.msra.mxu0 %v2130
    %2368 = vmatprep.subr.bf16.mxu0 %v2135
    %2369 = vmatpush1.bf16.msra.mxu0 %v2134
    %2370 = vmatprep.subr.bf16.mxu0 %v2139
    %2371 = vmatpush1.bf16.msra.mxu0 %v2138
    %2372 = vmatprep.subr.bf16.mxu0 %v2143
    %2373 = vmatpush1.bf16.msra.mxu0 %v2142
    %2374 = vmatprep.subr.bf16.mxu0 %v2147
    %2375 = vmatpush1.bf16.msra.mxu0 %v2146
    %2376 = vmatprep.subr.bf16.mxu0 %v2151
    %2377 = vmatpush1.bf16.msra.mxu0 %v2150
    %2378 = vmatprep.mubr.bf16.mxu0 %v1525
    %2379 = vmatmul.mubr.bf16.gmra.mrb[0].mxu0 %v1524
    %v2380 = vpop.f32.mrb[0].mxu0
    %v2381 = vadd.f32 %v1689, %v2380
    %v2382 = vpop.f32.mrb[0].mxu0
    %v2383 = vadd.f32 %v1693, %v2382
    %v2384 = vpop.f32.mrb[0].mxu0
    %v2385 = vadd.f32 %v1689, %v2384
    %v2386 = vpop.f32.mrb[0].mxu0
    %v2387 = vadd.f32 %v1693, %v2386
    %2388 = vmatprep.mubr.bf16.mxu0 %v1529
    %2389 = vmatmul.mubr.bf16.gmra.mrb[0].mxu0 %v1528
    %v2390 = vpop.f32.mrb[0].mxu0
    %v2391 = vadd.f32 %v1689, %v2390
    %v2392 = vpop.f32.mrb[0].mxu0
    %v2393 = vadd.f32 %v1693, %v2392
    %v2394 = vpop.f32.mrb[0].mxu0
    %v2395 = vadd.f32 %v1689, %v2394
    %v2396 = vpop.f32.mrb[0].mxu0
    %v2397 = vadd.f32 %v1693, %v2396
    %2398 = vmatprep.mubr.bf16.mxu0 %v1533
    %2399 = vmatmul.mubr.bf16.gmra.mrb[0].mxu0 %v1532
    %v2400 = vpop.f32.mrb[0].mxu0
    %v2401 = vadd.f32 %v1689, %v2400
    %v2402 = vpop.f32.mrb[0].mxu0
    %v2403 = vadd.f32 %v1693, %v2402
    %v2404 = vpop.f32.mrb[0].mxu0
    %v2405 = vadd.f32 %v1689, %v2404
    %v2406 = vpop.f32.mrb[0].mxu0
    %v2407 = vadd.f32 %v1693, %v2406
    %2408 = vmatprep.mubr.bf16.mxu0 %v1537
    %2409 = vmatmul.mubr.bf16.gmra.mrb[0].mxu0 %v1536
    %v2410 = vpop.f32.mrb[0].mxu0
    %v2411 = vadd.f32 %v1689, %v2410
    %v2412 = vpop.f32.mrb[0].mxu0
    %v2413 = vadd.f32 %v1693, %v2412
    %v2414 = vpop.f32.mrb[0].mxu0
    %v2415 = vadd.f32 %v1689, %v2414
    %v2416 = vpop.f32.mrb[0].mxu0
    %v2417 = vadd.f32 %v1693, %v2416
    %2418 = vmatprep.mubr.bf16.mxu0 %v1541
    %2419 = vmatmul.mubr.bf16.gmra.mrb[0].mxu0 %v1540
    %v2420 = vpop.f32.mrb[0].mxu0
    %v2421 = vadd.f32 %v1689, %v2420
    %v2422 = vpop.f32.mrb[0].mxu0
    %v2423 = vadd.f32 %v1693, %v2422
    %v2424 = vpop.f32.mrb[0].mxu0
    %v2425 = vadd.f32 %v1689, %v2424
    %v2426 = vpop.f32.mrb[0].mxu0
    %v2427 = vadd.f32 %v1693, %v2426
    %2428 = vmatprep.mubr.bf16.mxu0 %v1545
    %2429 = vmatmul.mubr.bf16.gmra.mrb[0].mxu0 %v1544
    %v2430 = vpop.f32.mrb[0].mxu0
    %v2431 = vadd.f32 %v1689, %v2430
    %v2432 = vpop.f32.mrb[0].mxu0
    %v2433 = vadd.f32 %v1693, %v2432
    %v2434 = vpop.f32.mrb[0].mxu0
    %v2435 = vadd.f32 %v1689, %v2434
    %v2436 = vpop.f32.mrb[0].mxu0
    %v2437 = vadd.f32 %v1693, %v2436
    %2438 = vmatprep.mubr.bf16.mxu0 %v1549
    %2439 = vmatmul.mubr.bf16.gmra.mrb[0].mxu0 %v1548
    %v2440 = vpop.f32.mrb[0].mxu0
    %v2441 = vadd.f32 %v1689, %v2440
    %v2442 = vpop.f32.mrb[0].mxu0
    %v2443 = vadd.f32 %v1693, %v2442
    %v2444 = vpop.f32.mrb[0].mxu0
    %v2445 = vadd.f32 %v1689, %v2444
    %v2446 = vpop.f32.mrb[0].mxu0
    %v2447 = vadd.f32 %v1693, %v2446
    %2448 = vmatprep.mubr.bf16.mxu0 %v1553
    %2449 = vmatmul.mubr.bf16.gmra.mrb[0].mxu0 %v1552
    %v2450 = vpop.f32.mrb[0].mxu0
    %v2451 = vadd.f32 %v1689, %v2450
    %v2452 = vpop.f32.mrb[0].mxu0
    %v2453 = vadd.f32 %v1693, %v2452
    %v2454 = vpop.f32.mrb[0].mxu0
    %v2455 = vadd.f32 %v1689, %v2454
    %v2456 = vpop.f32.mrb[0].mxu0
    %v2457 = vadd.f32 %v1693, %v2456
    %2458 = vdwg.mxu0
    %2459 = vmatprep.subr.bf16.mxu0 %v2155
    %2460 = vmatpush1.bf16.msra.mxu0 %v2154
    %2461 = vmatprep.subr.bf16.mxu0 %v2159
    %2462 = vmatpush1.bf16.msra.mxu0 %v2158
    %2463 = vmatprep.subr.bf16.mxu0 %v2163
    %2464 = vmatpush1.bf16.msra.mxu0 %v2162
    %2465 = vmatprep.subr.bf16.mxu0 %v2167
    %2466 = vmatpush1.bf16.msra.mxu0 %v2166
    %2467 = vmatprep.subr.bf16.mxu0 %v2171
    %2468 = vmatpush1.bf16.msra.mxu0 %v2170
    %2469 = vmatprep.subr.bf16.mxu0 %v2175
    %2470 = vmatpush1.bf16.msra.mxu0 %v2174
    %2471 = vmatprep.subr.bf16.mxu0 %v2179
    %2472 = vmatpush1.bf16.msra.mxu0 %v2178
    %2473 = vmatprep.subr.bf16.mxu0 %v2183
    %2474 = vmatpush1.bf16.msra.mxu0 %v2182
    %2475 = vmatprep.subr.bf16.mxu0 %v2187
    %2476 = vmatpush1.bf16.msra.mxu0 %v2186
    %2477 = vmatprep.subr.bf16.mxu0 %v2191
    %2478 = vmatpush1.bf16.msra.mxu0 %v2190
    %2479 = vmatprep.subr.bf16.mxu0 %v2195
    %2480 = vmatpush1.bf16.msra.mxu0 %v2194
    %2481 = vmatprep.subr.bf16.mxu0 %v2199
    %2482 = vmatpush1.bf16.msra.mxu0 %v2198
    %2483 = vmatprep.subr.bf16.mxu0 %v2203
    %2484 = vmatpush1.bf16.msra.mxu0 %v2202
    %2485 = vmatprep.subr.bf16.mxu0 %v2207
    %2486 = vmatpush1.bf16.msra.mxu0 %v2206
    %2487 = vmatprep.subr.bf16.mxu0 %v2211
    %2488 = vmatpush1.bf16.msra.mxu0 %v2210
    %2489 = vmatprep.subr.bf16.mxu0 %v2215
    %2490 = vmatpush1.bf16.msra.mxu0 %v2214
    %2491 = vmatprep.mubr.bf16.mxu0 %v1527
    %2492 = vmatmul.mubr.bf16.gmra.mrb[0].mxu0 %v1526
    %v2493 = vpop.f32.mrb[0].mxu0
    %v2494 = vadd.f32 %v2381, %v2493
    %v2495 = vpop.f32.mrb[0].mxu0
    %v2496 = vadd.f32 %v2383, %v2495
    %v2497 = vpop.f32.mrb[0].mxu0
    %v2498 = vadd.f32 %v2385, %v2497
    %v2499 = vpop.f32.mrb[0].mxu0
    %v2500 = vadd.f32 %v2387, %v2499
    %2501 = vmatprep.mubr.bf16.mxu0 %v1531
    %2502 = vmatmul.mubr.bf16.gmra.mrb[0].mxu0 %v1530
    %v2503 = vpop.f32.mrb[0].mxu0
    %v2504 = vadd.f32 %v2391, %v2503
    %v2505 = vpop.f32.mrb[0].mxu0
    %v2506 = vadd.f32 %v2393, %v2505
    %v2507 = vpop.f32.mrb[0].mxu0
    %v2508 = vadd.f32 %v2395, %v2507
    %v2509 = vpop.f32.mrb[0].mxu0
    %v2510 = vadd.f32 %v2397, %v2509
    %2511 = vmatprep.mubr.bf16.mxu0 %v1535
    %2512 = vmatmul.mubr.bf16.gmra.mrb[0].mxu0 %v1534
    %v2513 = vpop.f32.mrb[0].mxu0
    %v2514 = vadd.f32 %v2401, %v2513
    %v2515 = vpop.f32.mrb[0].mxu0
    %v2516 = vadd.f32 %v2403, %v2515
    %v2517 = vpop.f32.mrb[0].mxu0
    %v2518 = vadd.f32 %v2405, %v2517
    %v2519 = vpop.f32.mrb[0].mxu0
    %v2520 = vadd.f32 %v2407, %v2519
    %2521 = vmatprep.mubr.bf16.mxu0 %v1539
    %2522 = vmatmul.mubr.bf16.gmra.mrb[0].mxu0 %v1538
    %v2523 = vpop.f32.mrb[0].mxu0
    %v2524 = vadd.f32 %v2411, %v2523
    %v2525 = vpop.f32.mrb[0].mxu0
    %v2526 = vadd.f32 %v2413, %v2525
    %v2527 = vpop.f32.mrb[0].mxu0
    %v2528 = vadd.f32 %v2415, %v2527
    %v2529 = vpop.f32.mrb[0].mxu0
    %v2530 = vadd.f32 %v2417, %v2529
    %2531 = vmatprep.mubr.bf16.mxu0 %v1543
    %2532 = vmatmul.mubr.bf16.gmra.mrb[0].mxu0 %v1542
    %v2533 = vpop.f32.mrb[0].mxu0
    %v2534 = vadd.f32 %v2421, %v2533
    %v2535 = vpop.f32.mrb[0].mxu0
    %v2536 = vadd.f32 %v2423, %v2535
    %v2537 = vpop.f32.mrb[0].mxu0
    %v2538 = vadd.f32 %v2425, %v2537
    %v2539 = vpop.f32.mrb[0].mxu0
    %v2540 = vadd.f32 %v2427, %v2539
    %2541 = vmatprep.mubr.bf16.mxu0 %v1547
    %2542 = vmatmul.mubr.bf16.gmra.mrb[0].mxu0 %v1546
    %v2543 = vpop.f32.mrb[0].mxu0
    %v2544 = vadd.f32 %v2431, %v2543
    %v2545 = vpop.f32.mrb[0].mxu0
    %v2546 = vadd.f32 %v2433, %v2545
    %v2547 = vpop.f32.mrb[0].mxu0
    %v2548 = vadd.f32 %v2435, %v2547
    %v2549 = vpop.f32.mrb[0].mxu0
    %v2550 = vadd.f32 %v2437, %v2549
    %2551 = vmatprep.mubr.bf16.mxu0 %v1551
    %2552 = vmatmul.mubr.bf16.gmra.mrb[0].mxu0 %v1550
    %v2553 = vpop.f32.mrb[0].mxu0
    %v2554 = vadd.f32 %v2441, %v2553
    %v2555 = vpop.f32.mrb[0].mxu0
    %v2556 = vadd.f32 %v2443, %v2555
    %v2557 = vpop.f32.mrb[0].mxu0
    %v2558 = vadd.f32 %v2445, %v2557
    %v2559 = vpop.f32.mrb[0].mxu0
    %v2560 = vadd.f32 %v2447, %v2559
    %2561 = vmatprep.mubr.bf16.mxu0 %v1555
    %2562 = vmatmul.mubr.bf16.gmra.mrb[0].mxu0 %v1554
    %v2563 = vpop.f32.mrb[0].mxu0
    %v2564 = vadd.f32 %v2451, %v2563
    %v2565 = vpop.f32.mrb[0].mxu0
    %v2566 = vadd.f32 %v2453, %v2565
    %v2567 = vpop.f32.mrb[0].mxu0
    %v2568 = vadd.f32 %v2455, %v2567
    %v2569 = vpop.f32.mrb[0].mxu0
    %v2570 = vadd.f32 %v2457, %v2569
    %2571 = vdwg.mxu0
    %2572 = vmatprep.subr.bf16.mxu0 %v2093
    %2573 = vmatpush1.bf16.msra.mxu0 %v2092
    %2574 = vmatprep.subr.bf16.mxu0 %v2097
    %2575 = vmatpush1.bf16.msra.mxu0 %v2096
    %2576 = vmatprep.subr.bf16.mxu0 %v2101
    %2577 = vmatpush1.bf16.msra.mxu0 %v2100
    %2578 = vmatprep.subr.bf16.mxu0 %v2105
    %2579 = vmatpush1.bf16.msra.mxu0 %v2104
    %2580 = vmatprep.subr.bf16.mxu0 %v2109
    %2581 = vmatpush1.bf16.msra.mxu0 %v2108
    %2582 = vmatprep.subr.bf16.mxu0 %v2113
    %2583 = vmatpush1.bf16.msra.mxu0 %v2112
    %2584 = vmatprep.subr.bf16.mxu0 %v2117
    %2585 = vmatpush1.bf16.msra.mxu0 %v2116
    %2586 = vmatprep.subr.bf16.mxu0 %v2121
    %2587 = vmatpush1.bf16.msra.mxu0 %v2120
    %2588 = vmatprep.subr.bf16.mxu0 %v2125
    %2589 = vmatpush1.bf16.msra.mxu0 %v2124
    %2590 = vmatprep.subr.bf16.mxu0 %v2129
    %2591 = vmatpush1.bf16.msra.mxu0 %v2128
    %2592 = vmatprep.subr.bf16.mxu0 %v2133
    %2593 = vmatpush1.bf16.msra.mxu0 %v2132
    %2594 = vmatprep.subr.bf16.mxu0 %v2137
    %2595 = vmatpush1.bf16.msra.mxu0 %v2136
    %2596 = vmatprep.subr.bf16.mxu0 %v2141
    %2597 = vmatpush1.bf16.msra.mxu0 %v2140
    %2598 = vmatprep.subr.bf16.mxu0 %v2145
    %2599 = vmatpush1.bf16.msra.mxu0 %v2144
    %2600 = vmatprep.subr.bf16.mxu0 %v2149
    %2601 = vmatpush1.bf16.msra.mxu0 %v2148
    %2602 = vmatprep.subr.bf16.mxu0 %v2153
    %2603 = vmatpush1.bf16.msra.mxu0 %v2152
    %2604 = vmatprep.mubr.bf16.mxu0 %v1525
    %2605 = vmatmul.mubr.bf16.gmra.mrb[0].mxu0 %v1524
    %v2606 = vpop.f32.mrb[0].mxu0
    %v2607 = vadd.f32 %v1697, %v2606
    %v2608 = vpop.f32.mrb[0].mxu0
    %v2609 = vadd.f32 %v1701, %v2608
    %v2610 = vpop.f32.mrb[0].mxu0
    %v2611 = vadd.f32 %v1697, %v2610
    %v2612 = vpop.f32.mrb[0].mxu0
    %v2613 = vadd.f32 %v1701, %v2612
    %2614 = vmatprep.mubr.bf16.mxu0 %v1529
    %2615 = vmatmul.mubr.bf16.gmra.mrb[0].mxu0 %v1528
    %v2616 = vpop.f32.mrb[0].mxu0
    %v2617 = vadd.f32 %v1697, %v2616
    %v2618 = vpop.f32.mrb[0].mxu0
    %v2619 = vadd.f32 %v1701, %v2618
    %v2620 = vpop.f32.mrb[0].mxu0
    %v2621 = vadd.f32 %v1697, %v2620
    %v2622 = vpop.f32.mrb[0].mxu0
    %v2623 = vadd.f32 %v1701, %v2622
    %2624 = vmatprep.mubr.bf16.mxu0 %v1533
    %2625 = vmatmul.mubr.bf16.gmra.mrb[0].mxu0 %v1532
    %v2626 = vpop.f32.mrb[0].mxu0
    %v2627 = vadd.f32 %v1697, %v2626
    %v2628 = vpop.f32.mrb[0].mxu0
    %v2629 = vadd.f32 %v1701, %v2628
    %v2630 = vpop.f32.mrb[0].mxu0
    %v2631 = vadd.f32 %v1697, %v2630
    %v2632 = vpop.f32.mrb[0].mxu0
    %v2633 = vadd.f32 %v1701, %v2632
    %2634 = vmatprep.mubr.bf16.mxu0 %v1537
    %2635 = vmatmul.mubr.bf16.gmra.mrb[0].mxu0 %v1536
    %v2636 = vpop.f32.mrb[0].mxu0
    %v2637 = vadd.f32 %v1697, %v2636
    %v2638 = vpop.f32.mrb[0].mxu0
    %v2639 = vadd.f32 %v1701, %v2638
    %v2640 = vpop.f32.mrb[0].mxu0
    %v2641 = vadd.f32 %v1697, %v2640
    %v2642 = vpop.f32.mrb[0].mxu0
    %v2643 = vadd.f32 %v1701, %v2642
    %2644 = vmatprep.mubr.bf16.mxu0 %v1541
    %2645 = vmatmul.mubr.bf16.gmra.mrb[0].mxu0 %v1540
    %v2646 = vpop.f32.mrb[0].mxu0
    %v2647 = vadd.f32 %v1697, %v2646
    %v2648 = vpop.f32.mrb[0].mxu0
    %v2649 = vadd.f32 %v1701, %v2648
    %v2650 = vpop.f32.mrb[0].mxu0
    %v2651 = vadd.f32 %v1697, %v2650
    %v2652 = vpop.f32.mrb[0].mxu0
    %v2653 = vadd.f32 %v1701, %v2652
    %2654 = vmatprep.mubr.bf16.mxu0 %v1545
    %2655 = vmatmul.mubr.bf16.gmra.mrb[0].mxu0 %v1544
    %v2656 = vpop.f32.mrb[0].mxu0
    %v2657 = vadd.f32 %v1697, %v2656
    %v2658 = vpop.f32.mrb[0].mxu0
    %v2659 = vadd.f32 %v1701, %v2658
    %v2660 = vpop.f32.mrb[0].mxu0
    %v2661 = vadd.f32 %v1697, %v2660
    %v2662 = vpop.f32.mrb[0].mxu0
    %v2663 = vadd.f32 %v1701, %v2662
    %2664 = vmatprep.mubr.bf16.mxu0 %v1549
    %2665 = vmatmul.mubr.bf16.gmra.mrb[0].mxu0 %v1548
    %v2666 = vpop.f32.mrb[0].mxu0
    %v2667 = vadd.f32 %v1697, %v2666
    %v2668 = vpop.f32.mrb[0].mxu0
    %v2669 = vadd.f32 %v1701, %v2668
    %v2670 = vpop.f32.mrb[0].mxu0
    %v2671 = vadd.f32 %v1697, %v2670
    %v2672 = vpop.f32.mrb[0].mxu0
    %v2673 = vadd.f32 %v1701, %v2672
    %2674 = vmatprep.mubr.bf16.mxu0 %v1553
    %2675 = vmatmul.mubr.bf16.gmra.mrb[0].mxu0 %v1552
    %v2676 = vpop.f32.mrb[0].mxu0
    %v2677 = vadd.f32 %v1697, %v2676
    %v2678 = vpop.f32.mrb[0].mxu0
    %v2679 = vadd.f32 %v1701, %v2678
    %v2680 = vpop.f32.mrb[0].mxu0
    %v2681 = vadd.f32 %v1697, %v2680
    %v2682 = vpop.f32.mrb[0].mxu0
    %v2683 = vadd.f32 %v1701, %v2682
    %2684 = vdwg.mxu0
    %2685 = vmatprep.subr.bf16.mxu0 %v2157
    %2686 = vmatpush1.bf16.msra.mxu0 %v2156
    %2687 = vmatprep.subr.bf16.mxu0 %v2161
    %2688 = vmatpush1.bf16.msra.mxu0 %v2160
    %2689 = vmatprep.subr.bf16.mxu0 %v2165
    %2690 = vmatpush1.bf16.msra.mxu0 %v2164
    %2691 = vmatprep.subr.bf16.mxu0 %v2169
    %2692 = vmatpush1.bf16.msra.mxu0 %v2168
    %2693 = vmatprep.subr.bf16.mxu0 %v2173
    %2694 = vmatpush1.bf16.msra.mxu0 %v2172
    %2695 = vmatprep.subr.bf16.mxu0 %v2177
    %2696 = vmatpush1.bf16.msra.mxu0 %v2176
    %2697 = vmatprep.subr.bf16.mxu0 %v2181
    %2698 = vmatpush1.bf16.msra.mxu0 %v2180
    %2699 = vmatprep.subr.bf16.mxu0 %v2185
    %2700 = vmatpush1.bf16.msra.mxu0 %v2184
    %2701 = vmatprep.subr.bf16.mxu0 %v2189
    %2702 = vmatpush1.bf16.msra.mxu0 %v2188
    %2703 = vmatprep.subr.bf16.mxu0 %v2193
    %2704 = vmatpush1.bf16.msra.mxu0 %v2192
    %2705 = vmatprep.subr.bf16.mxu0 %v2197
    %2706 = vmatpush1.bf16.msra.mxu0 %v2196
    %2707 = vmatprep.subr.bf16.mxu0 %v2201
    %2708 = vmatpush1.bf16.msra.mxu0 %v2200
    %2709 = vmatprep.subr.bf16.mxu0 %v2205
    %2710 = vmatpush1.bf16.msra.mxu0 %v2204
    %2711 = vmatprep.subr.bf16.mxu0 %v2209
    %2712 = vmatpush1.bf16.msra.mxu0 %v2208
    %2713 = vmatprep.subr.bf16.mxu0 %v2213
    %2714 = vmatpush1.bf16.msra.mxu0 %v2212
    %2715 = vmatprep.subr.bf16.mxu0 %v2217
    %2716 = vmatpush1.bf16.msra.mxu0 %v2216
    %2717 = vmatprep.mubr.bf16.mxu0 %v1527
    %2718 = vmatmul.mubr.bf16.gmra.mrb[0].mxu0 %v1526
    %v2719 = vpop.f32.mrb[0].mxu0
    %v2720 = vadd.f32 %v2607, %v2719
    %v2721 = vpop.f32.mrb[0].mxu0
    %v2722 = vadd.f32 %v2609, %v2721
    %v2723 = vpop.f32.mrb[0].mxu0
    %v2724 = vadd.f32 %v2611, %v2723
    %v2725 = vpop.f32.mrb[0].mxu0
    %v2726 = vadd.f32 %v2613, %v2725
    %2727 = vmatprep.mubr.bf16.mxu0 %v1531
    %2728 = vmatmul.mubr.bf16.gmra.mrb[0].mxu0 %v1530
    %v2729 = vpop.f32.mrb[0].mxu0
    %v2730 = vadd.f32 %v2617, %v2729
    %v2731 = vpop.f32.mrb[0].mxu0
    %v2732 = vadd.f32 %v2619, %v2731
    %v2733 = vpop.f32.mrb[0].mxu0
    %v2734 = vadd.f32 %v2621, %v2733
    %v2735 = vpop.f32.mrb[0].mxu0
    %v2736 = vadd.f32 %v2623, %v2735
    %2737 = vmatprep.mubr.bf16.mxu0 %v1535
    %2738 = vmatmul.mubr.bf16.gmra.mrb[0].mxu0 %v1534
    %v2739 = vpop.f32.mrb[0].mxu0
    %v2740 = vadd.f32 %v2627, %v2739
    %v2741 = vpop.f32.mrb[0].mxu0
    %v2742 = vadd.f32 %v2629, %v2741
    %v2743 = vpop.f32.mrb[0].mxu0
    %v2744 = vadd.f32 %v2631, %v2743
    %v2745 = vpop.f32.mrb[0].mxu0
    %v2746 = vadd.f32 %v2633, %v2745
    %2747 = vmatprep.mubr.bf16.mxu0 %v1539
    %2748 = vmatmul.mubr.bf16.gmra.mrb[0].mxu0 %v1538
    %v2749 = vpop.f32.mrb[0].mxu0
    %v2750 = vadd.f32 %v2637, %v2749
    %v2751 = vpop.f32.mrb[0].mxu0
    %v2752 = vadd.f32 %v2639, %v2751
    %v2753 = vpop.f32.mrb[0].mxu0
    %v2754 = vadd.f32 %v2641, %v2753
    %v2755 = vpop.f32.mrb[0].mxu0
    %v2756 = vadd.f32 %v2643, %v2755
    %2757 = vmatprep.mubr.bf16.mxu0 %v1543
    %2758 = vmatmul.mubr.bf16.gmra.mrb[0].mxu0 %v1542
    %v2759 = vpop.f32.mrb[0].mxu0
    %v2760 = vadd.f32 %v2647, %v2759
    %v2761 = vpop.f32.mrb[0].mxu0
    %v2762 = vadd.f32 %v2649, %v2761
    %v2763 = vpop.f32.mrb[0].mxu0
    %v2764 = vadd.f32 %v2651, %v2763
    %v2765 = vpop.f32.mrb[0].mxu0
    %v2766 = vadd.f32 %v2653, %v2765
    %2767 = vmatprep.mubr.bf16.mxu0 %v1547
    %2768 = vmatmul.mubr.bf16.gmra.mrb[0].mxu0 %v1546
    %v2769 = vpop.f32.mrb[0].mxu0
    %v2770 = vadd.f32 %v2657, %v2769
    %v2771 = vpop.f32.mrb[0].mxu0
    %v2772 = vadd.f32 %v2659, %v2771
    %v2773 = vpop.f32.mrb[0].mxu0
    %v2774 = vadd.f32 %v2661, %v2773
    %v2775 = vpop.f32.mrb[0].mxu0
    %v2776 = vadd.f32 %v2663, %v2775
    %2777 = vmatprep.mubr.bf16.mxu0 %v1551
    %2778 = vmatmul.mubr.bf16.gmra.mrb[0].mxu0 %v1550
    %v2779 = vpop.f32.mrb[0].mxu0
    %v2780 = vadd.f32 %v2667, %v2779
    %v2781 = vpop.f32.mrb[0].mxu0
    %v2782 = vadd.f32 %v2669, %v2781
    %v2783 = vpop.f32.mrb[0].mxu0
    %v2784 = vadd.f32 %v2671, %v2783
    %v2785 = vpop.f32.mrb[0].mxu0
    %v2786 = vadd.f32 %v2673, %v2785
    %2787 = vmatprep.mubr.bf16.mxu0 %v1555
    %2788 = vmatmul.mubr.bf16.gmra.mrb[0].mxu0 %v1554
    %v2789 = vpop.f32.mrb[0].mxu0
    %v2790 = vadd.f32 %v2677, %v2789
    %v2791 = vpop.f32.mrb[0].mxu0
    %v2792 = vadd.f32 %v2679, %v2791
    %v2793 = vpop.f32.mrb[0].mxu0
    %v2794 = vadd.f32 %v2681, %v2793
    %v2795 = vpop.f32.mrb[0].mxu0
    %v2796 = vadd.f32 %v2683, %v2795
    %2797 = vdwg.mxu0
    %v2798 = vmax.f32 %v2494, 0.0
    %v2799 = vmax.f32 %v2496, 0.0
    %v2800 = vmax.f32 %v2720, 0.0
    %v2801 = vmax.f32 %v2722, 0.0
    %v2802 = vmax.f32 %v2498, 0.0
    %v2803 = vmax.f32 %v2500, 0.0
    %v2804 = vmax.f32 %v2724, 0.0
    %v2805 = vmax.f32 %v2726, 0.0
    %v2806 = vmax.f32 %v2504, 0.0
    %v2807 = vmax.f32 %v2506, 0.0
    %v2808 = vmax.f32 %v2730, 0.0
    %v2809 = vmax.f32 %v2732, 0.0
    %v2810 = vmax.f32 %v2508, 0.0
    %v2811 = vmax.f32 %v2510, 0.0
    %v2812 = vmax.f32 %v2734, 0.0
    %v2813 = vmax.f32 %v2736, 0.0
    %v2814 = vmax.f32 %v2514, 0.0
    %v2815 = vmax.f32 %v2516, 0.0
    %v2816 = vmax.f32 %v2740, 0.0
    %v2817 = vmax.f32 %v2742, 0.0
    %v2818 = vmax.f32 %v2518, 0.0
    %v2819 = vmax.f32 %v2520, 0.0
    %v2820 = vmax.f32 %v2744, 0.0
    %v2821 = vmax.f32 %v2746, 0.0
    %v2822 = vmax.f32 %v2524, 0.0
    %v2823 = vmax.f32 %v2526, 0.0
    %v2824 = vmax.f32 %v2750, 0.0
    %v2825 = vmax.f32 %v2752, 0.0
    %v2826 = vmax.f32 %v2528, 0.0
    %v2827 = vmax.f32 %v2530, 0.0
    %v2828 = vmax.f32 %v2754, 0.0
    %v2829 = vmax.f32 %v2756, 0.0
    %v2830 = vmax.f32 %v2534, 0.0
    %v2831 = vmax.f32 %v2536, 0.0
    %v2832 = vmax.f32 %v2760, 0.0
    %v2833 = vmax.f32 %v2762, 0.0
    %v2834 = vmax.f32 %v2538, 0.0
    %v2835 = vmax.f32 %v2540, 0.0
    %v2836 = vmax.f32 %v2764, 0.0
    %v2837 = vmax.f32 %v2766, 0.0
    %v2838 = vmax.f32 %v2544, 0.0
    %v2839 = vmax.f32 %v2546, 0.0
    %v2840 = vmax.f32 %v2770, 0.0
    %v2841 = vmax.f32 %v2772, 0.0
    %v2842 = vmax.f32 %v2548, 0.0
    %v2843 = vmax.f32 %v2550, 0.0
    %v2844 = vmax.f32 %v2774, 0.0
    %v2845 = vmax.f32 %v2776, 0.0
    %v2846 = vmax.f32 %v2554, 0.0
    %v2847 = vmax.f32 %v2556, 0.0
    %v2848 = vmax.f32 %v2780, 0.0
    %v2849 = vmax.f32 %v2782, 0.0
    %v2850 = vmax.f32 %v2558, 0.0
    %v2851 = vmax.f32 %v2560, 0.0
    %v2852 = vmax.f32 %v2784, 0.0
    %v2853 = vmax.f32 %v2786, 0.0
    %v2854 = vmax.f32 %v2564, 0.0
    %v2855 = vmax.f32 %v2566, 0.0
    %v2856 = vmax.f32 %v2790, 0.0
    %v2857 = vmax.f32 %v2792, 0.0
    %v2858 = vmax.f32 %v2568, 0.0
    %v2859 = vmax.f32 %v2570, 0.0
    %v2860 = vmax.f32 %v2794, 0.0
    %v2861 = vmax.f32 %v2796, 0.0
    %v2862 = vpack.c.bf16 %v2802, %v2798
    %v2863 = vpack.c.bf16 %v2803, %v2799
    %v2864 = vpack.c.bf16 %v2804, %v2800
    %v2865 = vpack.c.bf16 %v2805, %v2801
    %v2866 = vpack.c.bf16 %v2810, %v2806
    %v2867 = vpack.c.bf16 %v2811, %v2807
    %v2868 = vpack.c.bf16 %v2812, %v2808
    %v2869 = vpack.c.bf16 %v2813, %v2809
    %v2870 = vpack.c.bf16 %v2818, %v2814
    %v2871 = vpack.c.bf16 %v2819, %v2815
    %v2872 = vpack.c.bf16 %v2820, %v2816
    %v2873 = vpack.c.bf16 %v2821, %v2817
    %v2874 = vpack.c.bf16 %v2826, %v2822
    %v2875 = vpack.c.bf16 %v2827, %v2823
    %v2876 = vpack.c.bf16 %v2828, %v2824
    %v2877 = vpack.c.bf16 %v2829, %v2825
    %v2878 = vpack.c.bf16 %v2834, %v2830
    %v2879 = vpack.c.bf16 %v2835, %v2831
    %v2880 = vpack.c.bf16 %v2836, %v2832
    %v2881 = vpack.c.bf16 %v2837, %v2833
    %v2882 = vpack.c.bf16 %v2842, %v2838
    %v2883 = vpack.c.bf16 %v2843, %v2839
    %v2884 = vpack.c.bf16 %v2844, %v2840
    %v2885 = vpack.c.bf16 %v2845, %v2841
    %v2886 = vpack.c.bf16 %v2850, %v2846
    %v2887 = vpack.c.bf16 %v2851, %v2847
    %v2888 = vpack.c.bf16 %v2852, %v2848
    %v2889 = vpack.c.bf16 %v2853, %v2849
    %v2890 = vpack.c.bf16 %v2858, %v2854
    %v2891 = vpack.c.bf16 %v2859, %v2855
    %v2892 = vpack.c.bf16 %v2860, %v2856
    %v2893 = vpack.c.bf16 %v2861, %v2857
    %v2894 = vld [vmem:[#allocation8] sm:$0xff]
    %v2895 = vld [vmem:[#allocation8 + $0x8] sm:$0xff]
    %v2896 = vld [vmem:[#allocation8 + $0x10] sm:$0xff]
    %v2897 = vld [vmem:[#allocation8 + $0x18] sm:$0xff]
    %v2898 = vld [vmem:[#allocation8 + $0x20] sm:$0xff]
    %v2899 = vld [vmem:[#allocation8 + $0x28] sm:$0xff]
    %v2900 = vld [vmem:[#allocation8 + $0x30] sm:$0xff]
    %v2901 = vld [vmem:[#allocation8 + $0x38] sm:$0xff]
    %v2902 = vld [vmem:[#allocation8 + $0x40] sm:$0xff]
    %v2903 = vld [vmem:[#allocation8 + $0x48] sm:$0xff]
    %v2904 = vld [vmem:[#allocation8 + $0x50] sm:$0xff]
    %v2905 = vld [vmem:[#allocation8 + $0x58] sm:$0xff]
    %v2906 = vld [vmem:[#allocation8 + $0x60] sm:$0xff]
    %v2907 = vld [vmem:[#allocation8 + $0x68] sm:$0xff]
    %v2908 = vld [vmem:[#allocation8 + $0x70] sm:$0xff]
    %v2909 = vld [vmem:[#allocation8 + $0x78] sm:$0xff]
    %v2910 = vld [vmem:[#allocation8 + $0x80] sm:$0xff]
    %v2911 = vld [vmem:[#allocation8 + $0x88] sm:$0xff]
    %v2912 = vld [vmem:[#allocation8 + $0x90] sm:$0xff]
    %v2913 = vld [vmem:[#allocation8 + $0x98] sm:$0xff]
    %v2914 = vld [vmem:[#allocation8 + $0xa0] sm:$0xff]
    %v2915 = vld [vmem:[#allocation8 + $0xa8] sm:$0xff]
    %v2916 = vld [vmem:[#allocation8 + $0xb0] sm:$0xff]
    %v2917 = vld [vmem:[#allocation8 + $0xb8] sm:$0xff]
    %v2918 = vld [vmem:[#allocation8 + $0xc0] sm:$0xff]
    %v2919 = vld [vmem:[#allocation8 + $0xc8] sm:$0xff]
    %v2920 = vld [vmem:[#allocation8 + $0xd0] sm:$0xff]
    %v2921 = vld [vmem:[#allocation8 + $0xd8] sm:$0xff]
    %v2922 = vld [vmem:[#allocation8 + $0xe0] sm:$0xff]
    %v2923 = vld [vmem:[#allocation8 + $0xe8] sm:$0xff]
    %v2924 = vld [vmem:[#allocation8 + $0xf0] sm:$0xff]
    %v2925 = vld [vmem:[#allocation8 + $0xf8] sm:$0xff]
    %v2926 = vld [vmem:[#allocation8 + $0x100] sm:$0xff]
    %v2927 = vld [vmem:[#allocation8 + $0x108] sm:$0xff]
    %v2928 = vld [vmem:[#allocation8 + $0x110] sm:$0xff]
    %v2929 = vld [vmem:[#allocation8 + $0x118] sm:$0xff]
    %v2930 = vld [vmem:[#allocation8 + $0x120] sm:$0xff]
    %v2931 = vld [vmem:[#allocation8 + $0x128] sm:$0xff]
    %v2932 = vld [vmem:[#allocation8 + $0x130] sm:$0xff]
    %v2933 = vld [vmem:[#allocation8 + $0x138] sm:$0xff]
    %v2934 = vld [vmem:[#allocation8 + $0x140] sm:$0xff]
    %v2935 = vld [vmem:[#allocation8 + $0x148] sm:$0xff]
    %v2936 = vld [vmem:[#allocation8 + $0x150] sm:$0xff]
    %v2937 = vld [vmem:[#allocation8 + $0x158] sm:$0xff]
    %v2938 = vld [vmem:[#allocation8 + $0x160] sm:$0xff]
    %v2939 = vld [vmem:[#allocation8 + $0x168] sm:$0xff]
    %v2940 = vld [vmem:[#allocation8 + $0x170] sm:$0xff]
    %v2941 = vld [vmem:[#allocation8 + $0x178] sm:$0xff]
    %v2942 = vld [vmem:[#allocation8 + $0x180] sm:$0xff]
    %v2943 = vld [vmem:[#allocation8 + $0x188] sm:$0xff]
    %v2944 = vld [vmem:[#allocation8 + $0x190] sm:$0xff]
    %v2945 = vld [vmem:[#allocation8 + $0x198] sm:$0xff]
    %v2946 = vld [vmem:[#allocation8 + $0x1a0] sm:$0xff]
    %v2947 = vld [vmem:[#allocation8 + $0x1a8] sm:$0xff]
    %v2948 = vld [vmem:[#allocation8 + $0x1b0] sm:$0xff]
    %v2949 = vld [vmem:[#allocation8 + $0x1b8] sm:$0xff]
    %v2950 = vld [vmem:[#allocation8 + $0x1c0] sm:$0xff]
    %v2951 = vld [vmem:[#allocation8 + $0x1c8] sm:$0xff]
    %v2952 = vld [vmem:[#allocation8 + $0x1d0] sm:$0xff]
    %v2953 = vld [vmem:[#allocation8 + $0x1d8] sm:$0xff]
    %v2954 = vld [vmem:[#allocation8 + $0x1e0] sm:$0xff]
    %v2955 = vld [vmem:[#allocation8 + $0x1e8] sm:$0xff]
    %v2956 = vld [vmem:[#allocation8 + $0x1f0] sm:$0xff]
    %v2957 = vld [vmem:[#allocation8 + $0x1f8] sm:$0xff]
    %v2958 = vld [vmem:[%s6] sm:$0x3]
    %v2960 = vlaneseq
    %v2961 = vshrl.u32 %v2960, 7
    %v2962 = vsub.s32 0, %v2961
    %v2963 = vrot.slane %v2958, %v2962
    %v2964 = vlaneseq
    %v2965 = vshrl.u32 %v2964, 7
    %v2966 = vsub.s32 1, %v2965
    %v2967 = vrot.slane %v2958, %v2966
    %v3034 = vunpack.c.l.b16 %v2894
    %v3035 = vunpack.c.h.b16 %v2894
    %v3036 = vunpack.c.l.b16 %v2895
    %v3037 = vunpack.c.h.b16 %v2895
    %v3038 = vunpack.c.l.b16 %v2896
    %v3039 = vunpack.c.h.b16 %v2896
    %v3040 = vunpack.c.l.b16 %v2897
    %v3041 = vunpack.c.h.b16 %v2897
    %v3042 = vunpack.c.l.b16 %v2898
    %v3043 = vunpack.c.h.b16 %v2898
    %v3044 = vunpack.c.l.b16 %v2899
    %v3045 = vunpack.c.h.b16 %v2899
    %v3046 = vunpack.c.l.b16 %v2900
    %v3047 = vunpack.c.h.b16 %v2900
    %v3048 = vunpack.c.l.b16 %v2901
    %v3049 = vunpack.c.h.b16 %v2901
    %v3050 = vunpack.c.l.b16 %v2902
    %v3051 = vunpack.c.h.b16 %v2902
    %v3052 = vunpack.c.l.b16 %v2903
    %v3053 = vunpack.c.h.b16 %v2903
    %v3054 = vunpack.c.l.b16 %v2904
    %v3055 = vunpack.c.h.b16 %v2904
    %v3056 = vunpack.c.l.b16 %v2905
    %v3057 = vunpack.c.h.b16 %v2905
    %v3058 = vunpack.c.l.b16 %v2906
    %v3059 = vunpack.c.h.b16 %v2906
    %v3060 = vunpack.c.l.b16 %v2907
    %v3061 = vunpack.c.h.b16 %v2907
    %v3062 = vunpack.c.l.b16 %v2908
    %v3063 = vunpack.c.h.b16 %v2908
    %v3064 = vunpack.c.l.b16 %v2909
    %v3065 = vunpack.c.h.b16 %v2909
    %v3066 = vunpack.c.l.b16 %v2910
    %v3067 = vunpack.c.h.b16 %v2910
    %v3068 = vunpack.c.l.b16 %v2911
    %v3069 = vunpack.c.h.b16 %v2911
    %v3070 = vunpack.c.l.b16 %v2912
    %v3071 = vunpack.c.h.b16 %v2912
    %v3072 = vunpack.c.l.b16 %v2913
    %v3073 = vunpack.c.h.b16 %v2913
    %v3074 = vunpack.c.l.b16 %v2914
    %v3075 = vunpack.c.h.b16 %v2914
    %v3076 = vunpack.c.l.b16 %v2915
    %v3077 = vunpack.c.h.b16 %v2915
    %v3078 = vunpack.c.l.b16 %v2916
    %v3079 = vunpack.c.h.b16 %v2916
    %v3080 = vunpack.c.l.b16 %v2917
    %v3081 = vunpack.c.h.b16 %v2917
    %v3082 = vunpack.c.l.b16 %v2918
    %v3083 = vunpack.c.h.b16 %v2918
    %v3084 = vunpack.c.l.b16 %v2919
    %v3085 = vunpack.c.h.b16 %v2919
    %v3086 = vunpack.c.l.b16 %v2920
    %v3087 = vunpack.c.h.b16 %v2920
    %v3088 = vunpack.c.l.b16 %v2921
    %v3089 = vunpack.c.h.b16 %v2921
    %v3090 = vunpack.c.l.b16 %v2922
    %v3091 = vunpack.c.h.b16 %v2922
    %v3092 = vunpack.c.l.b16 %v2923
    %v3093 = vunpack.c.h.b16 %v2923
    %v3094 = vunpack.c.l.b16 %v2924
    %v3095 = vunpack.c.h.b16 %v2924
    %v3096 = vunpack.c.l.b16 %v2925
    %v3097 = vunpack.c.h.b16 %v2925
    %v3098 = vunpack.c.l.b16 %v2926
    %v3099 = vunpack.c.h.b16 %v2926
    %v3100 = vunpack.c.l.b16 %v2927
    %v3101 = vunpack.c.h.b16 %v2927
    %v3102 = vunpack.c.l.b16 %v2928
    %v3103 = vunpack.c.h.b16 %v2928
    %v3104 = vunpack.c.l.b16 %v2929
    %v3105 = vunpack.c.h.b16 %v2929
    %v3106 = vunpack.c.l.b16 %v2930
    %v3107 = vunpack.c.h.b16 %v2930
    %v3108 = vunpack.c.l.b16 %v2931
    %v3109 = vunpack.c.h.b16 %v2931
    %v3110 = vunpack.c.l.b16 %v2932
    %v3111 = vunpack.c.h.b16 %v2932
    %v3112 = vunpack.c.l.b16 %v2933
    %v3113 = vunpack.c.h.b16 %v2933
    %v3114 = vunpack.c.l.b16 %v2934
    %v3115 = vunpack.c.h.b16 %v2934
    %v3116 = vunpack.c.l.b16 %v2935
    %v3117 = vunpack.c.h.b16 %v2935
    %v3118 = vunpack.c.l.b16 %v2936
    %v3119 = vunpack.c.h.b16 %v2936
    %v3120 = vunpack.c.l.b16 %v2937
    %v3121 = vunpack.c.h.b16 %v2937
    %v3122 = vunpack.c.l.b16 %v2938
    %v3123 = vunpack.c.h.b16 %v2938
    %v3124 = vunpack.c.l.b16 %v2939
    %v3125 = vunpack.c.h.b16 %v2939
    %v3126 = vunpack.c.l.b16 %v2940
    %v3127 = vunpack.c.h.b16 %v2940
    %v3128 = vunpack.c.l.b16 %v2941
    %v3129 = vunpack.c.h.b16 %v2941
    %v3130 = vunpack.c.l.b16 %v2942
    %v3131 = vunpack.c.h.b16 %v2942
    %v3132 = vunpack.c.l.b16 %v2943
    %v3133 = vunpack.c.h.b16 %v2943
    %v3134 = vunpack.c.l.b16 %v2944
    %v3135 = vunpack.c.h.b16 %v2944
    %v3136 = vunpack.c.l.b16 %v2945
    %v3137 = vunpack.c.h.b16 %v2945
    %v3138 = vunpack.c.l.b16 %v2946
    %v3139 = vunpack.c.h.b16 %v2946
    %v3140 = vunpack.c.l.b16 %v2947
    %v3141 = vunpack.c.h.b16 %v2947
    %v3142 = vunpack.c.l.b16 %v2948
    %v3143 = vunpack.c.h.b16 %v2948
    %v3144 = vunpack.c.l.b16 %v2949
    %v3145 = vunpack.c.h.b16 %v2949
    %v3146 = vunpack.c.l.b16 %v2950
    %v3147 = vunpack.c.h.b16 %v2950
    %v3148 = vunpack.c.l.b16 %v2951
    %v3149 = vunpack.c.h.b16 %v2951
    %v3150 = vunpack.c.l.b16 %v2952
    %v3151 = vunpack.c.h.b16 %v2952
    %v3152 = vunpack.c.l.b16 %v2953
    %v3153 = vunpack.c.h.b16 %v2953
    %v3154 = vunpack.c.l.b16 %v2954
    %v3155 = vunpack.c.h.b16 %v2954
    %v3156 = vunpack.c.l.b16 %v2955
    %v3157 = vunpack.c.h.b16 %v2955
    %v3158 = vunpack.c.l.b16 %v2956
    %v3159 = vunpack.c.h.b16 %v2956
    %v3160 = vunpack.c.l.b16 %v2957
    %v3161 = vunpack.c.h.b16 %v2957
    %v3162 = vpack.c.b16 %v3036, %v3034
    %v3163 = vpack.c.b16 %v3037, %v3035
    %v3164 = vpack.c.b16 %v3040, %v3038
    %v3165 = vpack.c.b16 %v3041, %v3039
    %v3166 = vpack.c.b16 %v3044, %v3042
    %v3167 = vpack.c.b16 %v3045, %v3043
    %v3168 = vpack.c.b16 %v3048, %v3046
    %v3169 = vpack.c.b16 %v3049, %v3047
    %v3170 = vpack.c.b16 %v3052, %v3050
    %v3171 = vpack.c.b16 %v3053, %v3051
    %v3172 = vpack.c.b16 %v3056, %v3054
    %v3173 = vpack.c.b16 %v3057, %v3055
    %v3174 = vpack.c.b16 %v3060, %v3058
    %v3175 = vpack.c.b16 %v3061, %v3059
    %v3176 = vpack.c.b16 %v3064, %v3062
    %v3177 = vpack.c.b16 %v3065, %v3063
    %v3178 = vpack.c.b16 %v3068, %v3066
    %v3179 = vpack.c.b16 %v3069, %v3067
    %v3180 = vpack.c.b16 %v3072, %v3070
    %v3181 = vpack.c.b16 %v3073, %v3071
    %v3182 = vpack.c.b16 %v3076, %v3074
    %v3183 = vpack.c.b16 %v3077, %v3075
    %v3184 = vpack.c.b16 %v3080, %v3078
    %v3185 = vpack.c.b16 %v3081, %v3079
    %v3186 = vpack.c.b16 %v3084, %v3082
    %v3187 = vpack.c.b16 %v3085, %v3083
    %v3188 = vpack.c.b16 %v3088, %v3086
    %v3189 = vpack.c.b16 %v3089, %v3087
    %v3190 = vpack.c.b16 %v3092, %v3090
    %v3191 = vpack.c.b16 %v3093, %v3091
    %v3192 = vpack.c.b16 %v3096, %v3094
    %v3193 = vpack.c.b16 %v3097, %v3095
    %v3194 = vpack.c.b16 %v3100, %v3098
    %v3195 = vpack.c.b16 %v3101, %v3099
    %v3196 = vpack.c.b16 %v3104, %v3102
    %v3197 = vpack.c.b16 %v3105, %v3103
    %v3198 = vpack.c.b16 %v3108, %v3106
    %v3199 = vpack.c.b16 %v3109, %v3107
    %v3200 = vpack.c.b16 %v3112, %v3110
    %v3201 = vpack.c.b16 %v3113, %v3111
    %v3202 = vpack.c.b16 %v3116, %v3114
    %v3203 = vpack.c.b16 %v3117, %v3115
    %v3204 = vpack.c.b16 %v3120, %v3118
    %v3205 = vpack.c.b16 %v3121, %v3119
    %v3206 = vpack.c.b16 %v3124, %v3122
    %v3207 = vpack.c.b16 %v3125, %v3123
    %v3208 = vpack.c.b16 %v3128, %v3126
    %v3209 = vpack.c.b16 %v3129, %v3127
    %v3210 = vpack.c.b16 %v3132, %v3130
    %v3211 = vpack.c.b16 %v3133, %v3131
    %v3212 = vpack.c.b16 %v3136, %v3134
    %v3213 = vpack.c.b16 %v3137, %v3135
    %v3214 = vpack.c.b16 %v3140, %v3138
    %v3215 = vpack.c.b16 %v3141, %v3139
    %v3216 = vpack.c.b16 %v3144, %v3142
    %v3217 = vpack.c.b16 %v3145, %v3143
    %v3218 = vpack.c.b16 %v3148, %v3146
    %v3219 = vpack.c.b16 %v3149, %v3147
    %v3220 = vpack.c.b16 %v3152, %v3150
    %v3221 = vpack.c.b16 %v3153, %v3151
    %v3222 = vpack.c.b16 %v3156, %v3154
    %v3223 = vpack.c.b16 %v3157, %v3155
    %v3224 = vpack.c.b16 %v3160, %v3158
    %v3225 = vpack.c.b16 %v3161, %v3159
    %3290 = vmatprep.subr.bf16.mxu0 %v3163
    %3291 = vmatpush1.bf16.msra.mxu0 %v3162
    %3292 = vmatprep.subr.bf16.mxu0 %v3165
    %3293 = vmatpush1.bf16.msra.mxu0 %v3164
    %3294 = vmatprep.subr.bf16.mxu0 %v3167
    %3295 = vmatpush1.bf16.msra.mxu0 %v3166
    %3296 = vmatprep.subr.bf16.mxu0 %v3169
    %3297 = vmatpush1.bf16.msra.mxu0 %v3168
    %3298 = vmatprep.subr.bf16.mxu0 %v3171
    %3299 = vmatpush1.bf16.msra.mxu0 %v3170
    %3300 = vmatprep.subr.bf16.mxu0 %v3173
    %3301 = vmatpush1.bf16.msra.mxu0 %v3172
    %3302 = vmatprep.subr.bf16.mxu0 %v3175
    %3303 = vmatpush1.bf16.msra.mxu0 %v3174
    %3304 = vmatprep.subr.bf16.mxu0 %v3177
    %3305 = vmatpush1.bf16.msra.mxu0 %v3176
    %3306 = vmatprep.subr.bf16.mxu0 %v3179
    %3307 = vmatpush1.bf16.msra.mxu0 %v3178
    %3308 = vmatprep.subr.bf16.mxu0 %v3181
    %3309 = vmatpush1.bf16.msra.mxu0 %v3180
    %3310 = vmatprep.subr.bf16.mxu0 %v3183
    %3311 = vmatpush1.bf16.msra.mxu0 %v3182
    %3312 = vmatprep.subr.bf16.mxu0 %v3185
    %3313 = vmatpush1.bf16.msra.mxu0 %v3184
    %3314 = vmatprep.subr.bf16.mxu0 %v3187
    %3315 = vmatpush1.bf16.msra.mxu0 %v3186
    %3316 = vmatprep.subr.bf16.mxu0 %v3189
    %3317 = vmatpush1.bf16.msra.mxu0 %v3188
    %3318 = vmatprep.subr.bf16.mxu0 %v3191
    %3319 = vmatpush1.bf16.msra.mxu0 %v3190
    %3320 = vmatprep.subr.bf16.mxu0 %v3193
    %3321 = vmatpush1.bf16.msra.mxu0 %v3192
    %3322 = vmatprep.mubr.bf16.mxu0 %v2863
    %3323 = vmatmul.mubr.bf16.gmra.mrb[0].mxu0 %v2862
    %v3324 = vpop.f32.mrb[0].mxu0
    %v3325 = vadd.f32 %v2963, %v3324
    %v3326 = vpop.f32.mrb[0].mxu0
    %v3327 = vadd.f32 %v2967, %v3326
    %v3328 = vpop.f32.mrb[0].mxu0
    %v3329 = vadd.f32 %v2963, %v3328
    %v3330 = vpop.f32.mrb[0].mxu0
    %v3331 = vadd.f32 %v2967, %v3330
    %3332 = vmatprep.mubr.bf16.mxu0 %v2867
    %3333 = vmatmul.mubr.bf16.gmra.mrb[0].mxu0 %v2866
    %v3334 = vpop.f32.mrb[0].mxu0
    %v3335 = vadd.f32 %v2963, %v3334
    %v3336 = vpop.f32.mrb[0].mxu0
    %v3337 = vadd.f32 %v2967, %v3336
    %v3338 = vpop.f32.mrb[0].mxu0
    %v3339 = vadd.f32 %v2963, %v3338
    %v3340 = vpop.f32.mrb[0].mxu0
    %v3341 = vadd.f32 %v2967, %v3340
    %3342 = vmatprep.mubr.bf16.mxu0 %v2871
    %3343 = vmatmul.mubr.bf16.gmra.mrb[0].mxu0 %v2870
    %v3344 = vpop.f32.mrb[0].mxu0
    %v3345 = vadd.f32 %v2963, %v3344
    %v3346 = vpop.f32.mrb[0].mxu0
    %v3347 = vadd.f32 %v2967, %v3346
    %v3348 = vpop.f32.mrb[0].mxu0
    %v3349 = vadd.f32 %v2963, %v3348
    %v3350 = vpop.f32.mrb[0].mxu0
    %v3351 = vadd.f32 %v2967, %v3350
    %3352 = vmatprep.mubr.bf16.mxu0 %v2875
    %3353 = vmatmul.mubr.bf16.gmra.mrb[0].mxu0 %v2874
    %v3354 = vpop.f32.mrb[0].mxu0
    %v3355 = vadd.f32 %v2963, %v3354
    %v3356 = vpop.f32.mrb[0].mxu0
    %v3357 = vadd.f32 %v2967, %v3356
    %v3358 = vpop.f32.mrb[0].mxu0
    %v3359 = vadd.f32 %v2963, %v3358
    %v3360 = vpop.f32.mrb[0].mxu0
    %v3361 = vadd.f32 %v2967, %v3360
    %3362 = vmatprep.mubr.bf16.mxu0 %v2879
    %3363 = vmatmul.mubr.bf16.gmra.mrb[0].mxu0 %v2878
    %v3364 = vpop.f32.mrb[0].mxu0
    %v3365 = vadd.f32 %v2963, %v3364
    %v3366 = vpop.f32.mrb[0].mxu0
    %v3367 = vadd.f32 %v2967, %v3366
    %v3368 = vpop.f32.mrb[0].mxu0
    %v3369 = vadd.f32 %v2963, %v3368
    %v3370 = vpop.f32.mrb[0].mxu0
    %v3371 = vadd.f32 %v2967, %v3370
    %3372 = vmatprep.mubr.bf16.mxu0 %v2883
    %3373 = vmatmul.mubr.bf16.gmra.mrb[0].mxu0 %v2882
    %v3374 = vpop.f32.mrb[0].mxu0
    %v3375 = vadd.f32 %v2963, %v3374
    %v3376 = vpop.f32.mrb[0].mxu0
    %v3377 = vadd.f32 %v2967, %v3376
    %v3378 = vpop.f32.mrb[0].mxu0
    %v3379 = vadd.f32 %v2963, %v3378
    %v3380 = vpop.f32.mrb[0].mxu0
    %v3381 = vadd.f32 %v2967, %v3380
    %3382 = vmatprep.mubr.bf16.mxu0 %v2887
    %3383 = vmatmul.mubr.bf16.gmra.mrb[0].mxu0 %v2886
    %v3384 = vpop.f32.mrb[0].mxu0
    %v3385 = vadd.f32 %v2963, %v3384
    %v3386 = vpop.f32.mrb[0].mxu0
    %v3387 = vadd.f32 %v2967, %v3386
    %v3388 = vpop.f32.mrb[0].mxu0
    %v3389 = vadd.f32 %v2963, %v3388
    %v3390 = vpop.f32.mrb[0].mxu0
    %v3391 = vadd.f32 %v2967, %v3390
    %3392 = vmatprep.mubr.bf16.mxu0 %v2891
    %3393 = vmatmul.mubr.bf16.gmra.mrb[0].mxu0 %v2890
    %v3394 = vpop.f32.mrb[0].mxu0
    %v3395 = vadd.f32 %v2963, %v3394
    %v3396 = vpop.f32.mrb[0].mxu0
    %v3397 = vadd.f32 %v2967, %v3396
    %v3398 = vpop.f32.mrb[0].mxu0
    %v3399 = vadd.f32 %v2963, %v3398
    %v3400 = vpop.f32.mrb[0].mxu0
    %v3401 = vadd.f32 %v2967, %v3400
    %3402 = vdwg.mxu0
    %3403 = vmatprep.subr.bf16.mxu0 %v3195
    %3404 = vmatpush1.bf16.msra.mxu0 %v3194
    %3405 = vmatprep.subr.bf16.mxu0 %v3197
    %3406 = vmatpush1.bf16.msra.mxu0 %v3196
    %3407 = vmatprep.subr.bf16.mxu0 %v3199
    %3408 = vmatpush1.bf16.msra.mxu0 %v3198
    %3409 = vmatprep.subr.bf16.mxu0 %v3201
    %3410 = vmatpush1.bf16.msra.mxu0 %v3200
    %3411 = vmatprep.subr.bf16.mxu0 %v3203
    %3412 = vmatpush1.bf16.msra.mxu0 %v3202
    %3413 = vmatprep.subr.bf16.mxu0 %v3205
    %3414 = vmatpush1.bf16.msra.mxu0 %v3204
    %3415 = vmatprep.subr.bf16.mxu0 %v3207
    %3416 = vmatpush1.bf16.msra.mxu0 %v3206
    %3417 = vmatprep.subr.bf16.mxu0 %v3209
    %3418 = vmatpush1.bf16.msra.mxu0 %v3208
    %3419 = vmatprep.subr.bf16.mxu0 %v3211
    %3420 = vmatpush1.bf16.msra.mxu0 %v3210
    %3421 = vmatprep.subr.bf16.mxu0 %v3213
    %3422 = vmatpush1.bf16.msra.mxu0 %v3212
    %3423 = vmatprep.subr.bf16.mxu0 %v3215
    %3424 = vmatpush1.bf16.msra.mxu0 %v3214
    %3425 = vmatprep.subr.bf16.mxu0 %v3217
    %3426 = vmatpush1.bf16.msra.mxu0 %v3216
    %3427 = vmatprep.subr.bf16.mxu0 %v3219
    %3428 = vmatpush1.bf16.msra.mxu0 %v3218
    %3429 = vmatprep.subr.bf16.mxu0 %v3221
    %3430 = vmatpush1.bf16.msra.mxu0 %v3220
    %3431 = vmatprep.subr.bf16.mxu0 %v3223
    %3432 = vmatpush1.bf16.msra.mxu0 %v3222
    %3433 = vmatprep.subr.bf16.mxu0 %v3225
    %3434 = vmatpush1.bf16.msra.mxu0 %v3224
    %3435 = vmatprep.mubr.bf16.mxu0 %v2865
    %3436 = vmatmul.mubr.bf16.gmra.mrb[0].mxu0 %v2864
    %v3437 = vpop.f32.mrb[0].mxu0
    %v3438 = vadd.f32 %v3325, %v3437
    %v3439 = vpop.f32.mrb[0].mxu0
    %v3440 = vadd.f32 %v3327, %v3439
    %v3441 = vpop.f32.mrb[0].mxu0
    %v3442 = vadd.f32 %v3329, %v3441
    %v3443 = vpop.f32.mrb[0].mxu0
    %v3444 = vadd.f32 %v3331, %v3443
    %3445 = vmatprep.mubr.bf16.mxu0 %v2869
    %3446 = vmatmul.mubr.bf16.gmra.mrb[0].mxu0 %v2868
    %v3447 = vpop.f32.mrb[0].mxu0
    %v3448 = vadd.f32 %v3335, %v3447
    %v3449 = vpop.f32.mrb[0].mxu0
    %v3450 = vadd.f32 %v3337, %v3449
    %v3451 = vpop.f32.mrb[0].mxu0
    %v3452 = vadd.f32 %v3339, %v3451
    %v3453 = vpop.f32.mrb[0].mxu0
    %v3454 = vadd.f32 %v3341, %v3453
    %3455 = vmatprep.mubr.bf16.mxu0 %v2873
    %3456 = vmatmul.mubr.bf16.gmra.mrb[0].mxu0 %v2872
    %v3457 = vpop.f32.mrb[0].mxu0
    %v3458 = vadd.f32 %v3345, %v3457
    %v3459 = vpop.f32.mrb[0].mxu0
    %v3460 = vadd.f32 %v3347, %v3459
    %v3461 = vpop.f32.mrb[0].mxu0
    %v3462 = vadd.f32 %v3349, %v3461
    %v3463 = vpop.f32.mrb[0].mxu0
    %v3464 = vadd.f32 %v3351, %v3463
    %3465 = vmatprep.mubr.bf16.mxu0 %v2877
    %3466 = vmatmul.mubr.bf16.gmra.mrb[0].mxu0 %v2876
    %v3467 = vpop.f32.mrb[0].mxu0
    %v3468 = vadd.f32 %v3355, %v3467
    %v3469 = vpop.f32.mrb[0].mxu0
    %v3470 = vadd.f32 %v3357, %v3469
    %v3471 = vpop.f32.mrb[0].mxu0
    %v3472 = vadd.f32 %v3359, %v3471
    %v3473 = vpop.f32.mrb[0].mxu0
    %v3474 = vadd.f32 %v3361, %v3473
    %3475 = vmatprep.mubr.bf16.mxu0 %v2881
    %3476 = vmatmul.mubr.bf16.gmra.mrb[0].mxu0 %v2880
    %v3477 = vpop.f32.mrb[0].mxu0
    %v3478 = vadd.f32 %v3365, %v3477
    %v3479 = vpop.f32.mrb[0].mxu0
    %v3480 = vadd.f32 %v3367, %v3479
    %v3481 = vpop.f32.mrb[0].mxu0
    %v3482 = vadd.f32 %v3369, %v3481
    %v3483 = vpop.f32.mrb[0].mxu0
    %v3484 = vadd.f32 %v3371, %v3483
    %3485 = vmatprep.mubr.bf16.mxu0 %v2885
    %3486 = vmatmul.mubr.bf16.gmra.mrb[0].mxu0 %v2884
    %v3487 = vpop.f32.mrb[0].mxu0
    %v3488 = vadd.f32 %v3375, %v3487
    %v3489 = vpop.f32.mrb[0].mxu0
    %v3490 = vadd.f32 %v3377, %v3489
    %v3491 = vpop.f32.mrb[0].mxu0
    %v3492 = vadd.f32 %v3379, %v3491
    %v3493 = vpop.f32.mrb[0].mxu0
    %v3494 = vadd.f32 %v3381, %v3493
    %3495 = vmatprep.mubr.bf16.mxu0 %v2889
    %3496 = vmatmul.mubr.bf16.gmra.mrb[0].mxu0 %v2888
    %v3497 = vpop.f32.mrb[0].mxu0
    %v3498 = vadd.f32 %v3385, %v3497
    %v3499 = vpop.f32.mrb[0].mxu0
    %v3500 = vadd.f32 %v3387, %v3499
    %v3501 = vpop.f32.mrb[0].mxu0
    %v3502 = vadd.f32 %v3389, %v3501
    %v3503 = vpop.f32.mrb[0].mxu0
    %v3504 = vadd.f32 %v3391, %v3503
    %3505 = vmatprep.mubr.bf16.mxu0 %v2893
    %3506 = vmatmul.mubr.bf16.gmra.mrb[0].mxu0 %v2892
    %v3507 = vpop.f32.mrb[0].mxu0
    %v3508 = vadd.f32 %v3395, %v3507
    %v3509 = vpop.f32.mrb[0].mxu0
    %v3510 = vadd.f32 %v3397, %v3509
    %v3511 = vpop.f32.mrb[0].mxu0
    %v3512 = vadd.f32 %v3399, %v3511
    %v3513 = vpop.f32.mrb[0].mxu0
    %v3514 = vadd.f32 %v3401, %v3513
    %3515 = vdwg.mxu0
    %v3516 = vmax.f32 %v3438, 0.0
    %v3517 = vmax.f32 %v3440, 0.0
    %v3518 = vmax.f32 %v3442, 0.0
    %v3519 = vmax.f32 %v3444, 0.0
    %v3520 = vmax.f32 %v3448, 0.0
    %v3521 = vmax.f32 %v3450, 0.0
    %v3522 = vmax.f32 %v3452, 0.0
    %v3523 = vmax.f32 %v3454, 0.0
    %v3524 = vmax.f32 %v3458, 0.0
    %v3525 = vmax.f32 %v3460, 0.0
    %v3526 = vmax.f32 %v3462, 0.0
    %v3527 = vmax.f32 %v3464, 0.0
    %v3528 = vmax.f32 %v3468, 0.0
    %v3529 = vmax.f32 %v3470, 0.0
    %v3530 = vmax.f32 %v3472, 0.0
    %v3531 = vmax.f32 %v3474, 0.0
    %v3532 = vmax.f32 %v3478, 0.0
    %v3533 = vmax.f32 %v3480, 0.0
    %v3534 = vmax.f32 %v3482, 0.0
    %v3535 = vmax.f32 %v3484, 0.0
    %v3536 = vmax.f32 %v3488, 0.0
    %v3537 = vmax.f32 %v3490, 0.0
    %v3538 = vmax.f32 %v3492, 0.0
    %v3539 = vmax.f32 %v3494, 0.0
    %v3540 = vmax.f32 %v3498, 0.0
    %v3541 = vmax.f32 %v3500, 0.0
    %v3542 = vmax.f32 %v3502, 0.0
    %v3543 = vmax.f32 %v3504, 0.0
    %v3544 = vmax.f32 %v3508, 0.0
    %v3545 = vmax.f32 %v3510, 0.0
    %v3546 = vmax.f32 %v3512, 0.0
    %v3547 = vmax.f32 %v3514, 0.0
    %v3548 = vpack.c.bf16 %v3518, %v3516
    %v3549 = vpack.c.bf16 %v3519, %v3517
    %v3550 = vpack.c.bf16 %v3522, %v3520
    %v3551 = vpack.c.bf16 %v3523, %v3521
    %v3552 = vpack.c.bf16 %v3526, %v3524
    %v3553 = vpack.c.bf16 %v3527, %v3525
    %v3554 = vpack.c.bf16 %v3530, %v3528
    %v3555 = vpack.c.bf16 %v3531, %v3529
    %v3556 = vpack.c.bf16 %v3534, %v3532
    %v3557 = vpack.c.bf16 %v3535, %v3533
    %v3558 = vpack.c.bf16 %v3538, %v3536
    %v3559 = vpack.c.bf16 %v3539, %v3537
    %v3560 = vpack.c.bf16 %v3542, %v3540
    %v3561 = vpack.c.bf16 %v3543, %v3541
    %v3562 = vpack.c.bf16 %v3546, %v3544
    %v3563 = vpack.c.bf16 %v3547, %v3545
    %v3564 = vld [vmem:[#allocation10] sm:$0xff]
    %v3565 = vld [vmem:[#allocation10 + $0x8] sm:$0xff]
    %v3566 = vld [vmem:[#allocation10 + $0x10] sm:$0xff]
    %v3567 = vld [vmem:[#allocation10 + $0x18] sm:$0xff]
    %v3568 = vld [vmem:[#allocation10 + $0x20] sm:$0xff]
    %v3569 = vld [vmem:[#allocation10 + $0x28] sm:$0xff]
    %v3570 = vld [vmem:[#allocation10 + $0x30] sm:$0xff]
    %v3571 = vld [vmem:[#allocation10 + $0x38] sm:$0xff]
    %v3572 = vld [vmem:[#allocation10 + $0x40] sm:$0xff]
    %v3573 = vld [vmem:[#allocation10 + $0x48] sm:$0xff]
    %v3574 = vld [vmem:[#allocation10 + $0x50] sm:$0xff]
    %v3575 = vld [vmem:[#allocation10 + $0x58] sm:$0xff]
    %v3576 = vld [vmem:[#allocation10 + $0x60] sm:$0xff]
    %v3577 = vld [vmem:[#allocation10 + $0x68] sm:$0xff]
    %v3578 = vld [vmem:[#allocation10 + $0x70] sm:$0xff]
    %v3579 = vld [vmem:[#allocation10 + $0x78] sm:$0xff]
    %v3580 = vld [vmem:[#allocation10 + $0x80] sm:$0xff]
    %v3581 = vld [vmem:[#allocation10 + $0x88] sm:$0xff]
    %v3582 = vld [vmem:[#allocation10 + $0x90] sm:$0xff]
    %v3583 = vld [vmem:[#allocation10 + $0x98] sm:$0xff]
    %v3584 = vld [vmem:[#allocation10 + $0xa0] sm:$0xff]
    %v3585 = vld [vmem:[#allocation10 + $0xa8] sm:$0xff]
    %v3586 = vld [vmem:[#allocation10 + $0xb0] sm:$0xff]
    %v3587 = vld [vmem:[#allocation10 + $0xb8] sm:$0xff]
    %v3588 = vld [vmem:[#allocation10 + $0xc0] sm:$0xff]
    %v3589 = vld [vmem:[#allocation10 + $0xc8] sm:$0xff]
    %v3590 = vld [vmem:[#allocation10 + $0xd0] sm:$0xff]
    %v3591 = vld [vmem:[#allocation10 + $0xd8] sm:$0xff]
    %v3592 = vld [vmem:[#allocation10 + $0xe0] sm:$0xff]
    %v3593 = vld [vmem:[#allocation10 + $0xe8] sm:$0xff]
    %v3594 = vld [vmem:[#allocation10 + $0xf0] sm:$0xff]
    %v3595 = vld [vmem:[#allocation10 + $0xf8] sm:$0xff]
    %v3596 = vld [vmem:[%s8] sm:$0x3]
    %v3598 = vlaneseq
    %v3599 = vshrl.u32 %v3598, 7
    %v3600 = vsub.s32 0, %v3599
    %v3601 = vrot.slane %v3596, %v3600
    %v3602 = vlaneseq
    %v3603 = vshrl.u32 %v3602, 7
    %v3604 = vsub.s32 1, %v3603
    %v3605 = vrot.slane %v3596, %v3604
    %v3640 = vunpack.c.l.b16 %v3564
    %v3641 = vunpack.c.h.b16 %v3564
    %v3642 = vunpack.c.l.b16 %v3565
    %v3643 = vunpack.c.h.b16 %v3565
    %v3644 = vunpack.c.l.b16 %v3566
    %v3645 = vunpack.c.h.b16 %v3566
    %v3646 = vunpack.c.l.b16 %v3567
    %v3647 = vunpack.c.h.b16 %v3567
    %v3648 = vunpack.c.l.b16 %v3568
    %v3649 = vunpack.c.h.b16 %v3568
    %v3650 = vunpack.c.l.b16 %v3569
    %v3651 = vunpack.c.h.b16 %v3569
    %v3652 = vunpack.c.l.b16 %v3570
    %v3653 = vunpack.c.h.b16 %v3570
    %v3654 = vunpack.c.l.b16 %v3571
    %v3655 = vunpack.c.h.b16 %v3571
    %v3656 = vunpack.c.l.b16 %v3572
    %v3657 = vunpack.c.h.b16 %v3572
    %v3658 = vunpack.c.l.b16 %v3573
    %v3659 = vunpack.c.h.b16 %v3573
    %v3660 = vunpack.c.l.b16 %v3574
    %v3661 = vunpack.c.h.b16 %v3574
    %v3662 = vunpack.c.l.b16 %v3575
    %v3663 = vunpack.c.h.b16 %v3575
    %v3664 = vunpack.c.l.b16 %v3576
    %v3665 = vunpack.c.h.b16 %v3576
    %v3666 = vunpack.c.l.b16 %v3577
    %v3667 = vunpack.c.h.b16 %v3577
    %v3668 = vunpack.c.l.b16 %v3578
    %v3669 = vunpack.c.h.b16 %v3578
    %v3670 = vunpack.c.l.b16 %v3579
    %v3671 = vunpack.c.h.b16 %v3579
    %v3672 = vunpack.c.l.b16 %v3580
    %v3673 = vunpack.c.h.b16 %v3580
    %v3674 = vunpack.c.l.b16 %v3581
    %v3675 = vunpack.c.h.b16 %v3581
    %v3676 = vunpack.c.l.b16 %v3582
    %v3677 = vunpack.c.h.b16 %v3582
    %v3678 = vunpack.c.l.b16 %v3583
    %v3679 = vunpack.c.h.b16 %v3583
    %v3680 = vunpack.c.l.b16 %v3584
    %v3681 = vunpack.c.h.b16 %v3584
    %v3682 = vunpack.c.l.b16 %v3585
    %v3683 = vunpack.c.h.b16 %v3585
    %v3684 = vunpack.c.l.b16 %v3586
    %v3685 = vunpack.c.h.b16 %v3586
    %v3686 = vunpack.c.l.b16 %v3587
    %v3687 = vunpack.c.h.b16 %v3587
    %v3688 = vunpack.c.l.b16 %v3588
    %v3689 = vunpack.c.h.b16 %v3588
    %v3690 = vunpack.c.l.b16 %v3589
    %v3691 = vunpack.c.h.b16 %v3589
    %v3692 = vunpack.c.l.b16 %v3590
    %v3693 = vunpack.c.h.b16 %v3590
    %v3694 = vunpack.c.l.b16 %v3591
    %v3695 = vunpack.c.h.b16 %v3591
    %v3696 = vunpack.c.l.b16 %v3592
    %v3697 = vunpack.c.h.b16 %v3592
    %v3698 = vunpack.c.l.b16 %v3593
    %v3699 = vunpack.c.h.b16 %v3593
    %v3700 = vunpack.c.l.b16 %v3594
    %v3701 = vunpack.c.h.b16 %v3594
    %v3702 = vunpack.c.l.b16 %v3595
    %v3703 = vunpack.c.h.b16 %v3595
    %v3704 = vpack.c.b16 %v3642, %v3640
    %v3705 = vpack.c.b16 %v3643, %v3641
    %v3706 = vpack.c.b16 %v3646, %v3644
    %v3707 = vpack.c.b16 %v3647, %v3645
    %v3708 = vpack.c.b16 %v3650, %v3648
    %v3709 = vpack.c.b16 %v3651, %v3649
    %v3710 = vpack.c.b16 %v3654, %v3652
    %v3711 = vpack.c.b16 %v3655, %v3653
    %v3712 = vpack.c.b16 %v3658, %v3656
    %v3713 = vpack.c.b16 %v3659, %v3657
    %v3714 = vpack.c.b16 %v3662, %v3660
    %v3715 = vpack.c.b16 %v3663, %v3661
    %v3716 = vpack.c.b16 %v3666, %v3664
    %v3717 = vpack.c.b16 %v3667, %v3665
    %v3718 = vpack.c.b16 %v3670, %v3668
    %v3719 = vpack.c.b16 %v3671, %v3669
    %v3720 = vpack.c.b16 %v3674, %v3672
    %v3721 = vpack.c.b16 %v3675, %v3673
    %v3722 = vpack.c.b16 %v3678, %v3676
    %v3723 = vpack.c.b16 %v3679, %v3677
    %v3724 = vpack.c.b16 %v3682, %v3680
    %v3725 = vpack.c.b16 %v3683, %v3681
    %v3726 = vpack.c.b16 %v3686, %v3684
    %v3727 = vpack.c.b16 %v3687, %v3685
    %v3728 = vpack.c.b16 %v3690, %v3688
    %v3729 = vpack.c.b16 %v3691, %v3689
    %v3730 = vpack.c.b16 %v3694, %v3692
    %v3731 = vpack.c.b16 %v3695, %v3693
    %v3732 = vpack.c.b16 %v3698, %v3696
    %v3733 = vpack.c.b16 %v3699, %v3697
    %v3734 = vpack.c.b16 %v3702, %v3700
    %v3735 = vpack.c.b16 %v3703, %v3701
    %3768 = vmatprep.subr.bf16.mxu0 %v3705
    %3769 = vmatpush1.bf16.msra.mxu0 %v3704
    %3770 = vmatprep.subr.bf16.mxu0 %v3707
    %3771 = vmatpush1.bf16.msra.mxu0 %v3706
    %3772 = vmatprep.subr.bf16.mxu0 %v3709
    %3773 = vmatpush1.bf16.msra.mxu0 %v3708
    %3774 = vmatprep.subr.bf16.mxu0 %v3711
    %3775 = vmatpush1.bf16.msra.mxu0 %v3710
    %3776 = vmatprep.subr.bf16.mxu0 %v3713
    %3777 = vmatpush1.bf16.msra.mxu0 %v3712
    %3778 = vmatprep.subr.bf16.mxu0 %v3715
    %3779 = vmatpush1.bf16.msra.mxu0 %v3714
    %3780 = vmatprep.subr.bf16.mxu0 %v3717
    %3781 = vmatpush1.bf16.msra.mxu0 %v3716
    %3782 = vmatprep.subr.bf16.mxu0 %v3719
    %3783 = vmatpush1.bf16.msra.mxu0 %v3718
    %3784 = vmatprep.subr.bf16.mxu0 %v3721
    %3785 = vmatpush1.bf16.msra.mxu0 %v3720
    %3786 = vmatprep.subr.bf16.mxu0 %v3723
    %3787 = vmatpush1.bf16.msra.mxu0 %v3722
    %3788 = vmatprep.subr.bf16.mxu0 %v3725
    %3789 = vmatpush1.bf16.msra.mxu0 %v3724
    %3790 = vmatprep.subr.bf16.mxu0 %v3727
    %3791 = vmatpush1.bf16.msra.mxu0 %v3726
    %3792 = vmatprep.subr.bf16.mxu0 %v3729
    %3793 = vmatpush1.bf16.msra.mxu0 %v3728
    %3794 = vmatprep.subr.bf16.mxu0 %v3731
    %3795 = vmatpush1.bf16.msra.mxu0 %v3730
    %3796 = vmatprep.subr.bf16.mxu0 %v3733
    %3797 = vmatpush1.bf16.msra.mxu0 %v3732
    %3798 = vmatprep.subr.bf16.mxu0 %v3735
    %3799 = vmatpush1.bf16.msra.mxu0 %v3734
    %3800 = vmatprep.mubr.bf16.mxu0 %v3549
    %3801 = vmatmul.mubr.bf16.gmra.mrb[0].mxu0 %v3548
    %v3802 = vpop.f32.mrb[0].mxu0
    %v3803 = vadd.f32 %v3601, %v3802
    %v3804 = vpop.f32.mrb[0].mxu0
    %v3805 = vadd.f32 %v3605, %v3804
    %v3806 = vpop.f32.mrb[0].mxu0
    %v3807 = vadd.f32 %v3601, %v3806
    %v3808 = vpop.f32.mrb[0].mxu0
    %v3809 = vadd.f32 %v3605, %v3808
    %3810 = vmatprep.mubr.bf16.mxu0 %v3551
    %3811 = vmatmul.mubr.bf16.gmra.mrb[0].mxu0 %v3550
    %v3812 = vpop.f32.mrb[0].mxu0
    %v3813 = vadd.f32 %v3601, %v3812
    %v3814 = vpop.f32.mrb[0].mxu0
    %v3815 = vadd.f32 %v3605, %v3814
    %v3816 = vpop.f32.mrb[0].mxu0
    %v3817 = vadd.f32 %v3601, %v3816
    %v3818 = vpop.f32.mrb[0].mxu0
    %v3819 = vadd.f32 %v3605, %v3818
    %3820 = vmatprep.mubr.bf16.mxu0 %v3553
    %3821 = vmatmul.mubr.bf16.gmra.mrb[0].mxu0 %v3552
    %v3822 = vpop.f32.mrb[0].mxu0
    %v3823 = vadd.f32 %v3601, %v3822
    %v3824 = vpop.f32.mrb[0].mxu0
    %v3825 = vadd.f32 %v3605, %v3824
    %v3826 = vpop.f32.mrb[0].mxu0
    %v3827 = vadd.f32 %v3601, %v3826
    %v3828 = vpop.f32.mrb[0].mxu0
    %v3829 = vadd.f32 %v3605, %v3828
    %3830 = vmatprep.mubr.bf16.mxu0 %v3555
    %3831 = vmatmul.mubr.bf16.gmra.mrb[0].mxu0 %v3554
    %v3832 = vpop.f32.mrb[0].mxu0
    %v3833 = vadd.f32 %v3601, %v3832
    %v3834 = vpop.f32.mrb[0].mxu0
    %v3835 = vadd.f32 %v3605, %v3834
    %v3836 = vpop.f32.mrb[0].mxu0
    %v3837 = vadd.f32 %v3601, %v3836
    %v3838 = vpop.f32.mrb[0].mxu0
    %v3839 = vadd.f32 %v3605, %v3838
    %3840 = vmatprep.mubr.bf16.mxu0 %v3557
    %3841 = vmatmul.mubr.bf16.gmra.mrb[0].mxu0 %v3556
    %v3842 = vpop.f32.mrb[0].mxu0
    %v3843 = vadd.f32 %v3601, %v3842
    %v3844 = vpop.f32.mrb[0].mxu0
    %v3845 = vadd.f32 %v3605, %v3844
    %v3846 = vpop.f32.mrb[0].mxu0
    %v3847 = vadd.f32 %v3601, %v3846
    %v3848 = vpop.f32.mrb[0].mxu0
    %v3849 = vadd.f32 %v3605, %v3848
    %3850 = vmatprep.mubr.bf16.mxu0 %v3559
    %3851 = vmatmul.mubr.bf16.gmra.mrb[0].mxu0 %v3558
    %v3852 = vpop.f32.mrb[0].mxu0
    %v3853 = vadd.f32 %v3601, %v3852
    %v3854 = vpop.f32.mrb[0].mxu0
    %v3855 = vadd.f32 %v3605, %v3854
    %v3856 = vpop.f32.mrb[0].mxu0
    %v3857 = vadd.f32 %v3601, %v3856
    %v3858 = vpop.f32.mrb[0].mxu0
    %v3859 = vadd.f32 %v3605, %v3858
    %3860 = vmatprep.mubr.bf16.mxu0 %v3561
    %3861 = vmatmul.mubr.bf16.gmra.mrb[0].mxu0 %v3560
    %v3862 = vpop.f32.mrb[0].mxu0
    %v3863 = vadd.f32 %v3601, %v3862
    %v3864 = vpop.f32.mrb[0].mxu0
    %v3865 = vadd.f32 %v3605, %v3864
    %v3866 = vpop.f32.mrb[0].mxu0
    %v3867 = vadd.f32 %v3601, %v3866
    %v3868 = vpop.f32.mrb[0].mxu0
    %v3869 = vadd.f32 %v3605, %v3868
    %3870 = vmatprep.mubr.bf16.mxu0 %v3563
    %3871 = vmatmul.mubr.bf16.gmra.mrb[0].mxu0 %v3562
    %v3872 = vpop.f32.mrb[0].mxu0
    %v3873 = vadd.f32 %v3601, %v3872
    %v3874 = vpop.f32.mrb[0].mxu0
    %v3875 = vadd.f32 %v3605, %v3874
    %v3876 = vpop.f32.mrb[0].mxu0
    %v3877 = vadd.f32 %v3601, %v3876
    %v3878 = vpop.f32.mrb[0].mxu0
    %v3879 = vadd.f32 %v3605, %v3878
    %3880 = vdwg.mxu0
    %v3881 = vmax.f32 %v3803, 0.0
    %v3882 = vmax.f32 %v3805, 0.0
    %v3883 = vmax.f32 %v3807, 0.0
    %v3884 = vmax.f32 %v3809, 0.0
    %v3885 = vmax.f32 %v3813, 0.0
    %v3886 = vmax.f32 %v3815, 0.0
    %v3887 = vmax.f32 %v3817, 0.0
    %v3888 = vmax.f32 %v3819, 0.0
    %v3889 = vmax.f32 %v3823, 0.0
    %v3890 = vmax.f32 %v3825, 0.0
    %v3891 = vmax.f32 %v3827, 0.0
    %v3892 = vmax.f32 %v3829, 0.0
    %v3893 = vmax.f32 %v3833, 0.0
    %v3894 = vmax.f32 %v3835, 0.0
    %v3895 = vmax.f32 %v3837, 0.0
    %v3896 = vmax.f32 %v3839, 0.0
    %v3897 = vmax.f32 %v3843, 0.0
    %v3898 = vmax.f32 %v3845, 0.0
    %v3899 = vmax.f32 %v3847, 0.0
    %v3900 = vmax.f32 %v3849, 0.0
    %v3901 = vmax.f32 %v3853, 0.0
    %v3902 = vmax.f32 %v3855, 0.0
    %v3903 = vmax.f32 %v3857, 0.0
    %v3904 = vmax.f32 %v3859, 0.0
    %v3905 = vmax.f32 %v3863, 0.0
    %v3906 = vmax.f32 %v3865, 0.0
    %v3907 = vmax.f32 %v3867, 0.0
    %v3908 = vmax.f32 %v3869, 0.0
    %v3909 = vmax.f32 %v3873, 0.0
    %v3910 = vmax.f32 %v3875, 0.0
    %v3911 = vmax.f32 %v3877, 0.0
    %v3912 = vmax.f32 %v3879, 0.0
    %v3913 = vpack.c.bf16 %v3883, %v3881
    %v3914 = vpack.c.bf16 %v3884, %v3882
    %v3915 = vpack.c.bf16 %v3887, %v3885
    %v3916 = vpack.c.bf16 %v3888, %v3886
    %v3917 = vpack.c.bf16 %v3891, %v3889
    %v3918 = vpack.c.bf16 %v3892, %v3890
    %v3919 = vpack.c.bf16 %v3895, %v3893
    %v3920 = vpack.c.bf16 %v3896, %v3894
    %v3921 = vpack.c.bf16 %v3899, %v3897
    %v3922 = vpack.c.bf16 %v3900, %v3898
    %v3923 = vpack.c.bf16 %v3903, %v3901
    %v3924 = vpack.c.bf16 %v3904, %v3902
    %v3925 = vpack.c.bf16 %v3907, %v3905
    %v3926 = vpack.c.bf16 %v3908, %v3906
    %v3927 = vpack.c.bf16 %v3911, %v3909
    %v3928 = vpack.c.bf16 %v3912, %v3910
    %v3929 = vld [vmem:[#allocation11] sm:$0xf]
    %v3930 = vld [vmem:[#allocation11 + $0x4] sm:$0xf]
    %v3931 = vld [vmem:[#allocation11 + $0x8] sm:$0xf]
    %v3932 = vld [vmem:[#allocation11 + $0xc] sm:$0xf]
    %v3933 = vld [vmem:[#allocation11 + $0x10] sm:$0xf]
    %v3934 = vld [vmem:[#allocation11 + $0x14] sm:$0xf]
    %v3935 = vld [vmem:[#allocation11 + $0x18] sm:$0xf]
    %v3936 = vld [vmem:[#allocation11 + $0x1c] sm:$0xf]
    %v3937 = vld [vmem:[#allocation11 + $0x20] sm:$0xf]
    %v3938 = vld [vmem:[#allocation11 + $0x24] sm:$0xf]
    %v3939 = vld [vmem:[#allocation11 + $0x28] sm:$0xf]
    %v3940 = vld [vmem:[#allocation11 + $0x2c] sm:$0xf]
    %v3941 = vld [vmem:[#allocation11 + $0x30] sm:$0xf]
    %v3942 = vld [vmem:[#allocation11 + $0x34] sm:$0xf]
    %v3943 = vld [vmem:[#allocation11 + $0x38] sm:$0xf]
    %v3944 = vld [vmem:[#allocation11 + $0x3c] sm:$0xf]
    %v3945 = vld [vmem:[#allocation11 + $0x40] sm:$0xf]
    %v3946 = vld [vmem:[#allocation11 + $0x44] sm:$0xf]
    %v3947 = vld [vmem:[#allocation11 + $0x48] sm:$0xf]
    %v3948 = vld [vmem:[#allocation11 + $0x4c] sm:$0xf]
    %v3949 = vld [vmem:[#allocation11 + $0x50] sm:$0xf]
    %v3950 = vld [vmem:[#allocation11 + $0x54] sm:$0xf]
    %v3951 = vld [vmem:[#allocation11 + $0x58] sm:$0xf]
    %v3952 = vld [vmem:[#allocation11 + $0x5c] sm:$0xf]
    %v3953 = vld [vmem:[#allocation11 + $0x60] sm:$0xf]
    %v3954 = vld [vmem:[#allocation11 + $0x64] sm:$0xf]
    %v3955 = vld [vmem:[#allocation11 + $0x68] sm:$0xf]
    %v3956 = vld [vmem:[#allocation11 + $0x6c] sm:$0xf]
    %v3957 = vld [vmem:[#allocation11 + $0x70] sm:$0xf]
    %v3958 = vld [vmem:[#allocation11 + $0x74] sm:$0xf]
    %v3959 = vld [vmem:[#allocation11 + $0x78] sm:$0xf]
    %v3960 = vld [vmem:[#allocation11 + $0x7c] sm:$0xf]
    %v3961 = vld [vmem:[%s10] sm:$0x1]
    %v3963 = vlaneseq
    %v3964 = vshrl.u32 %v3963, 7
    %v3965 = vsub.s32 0, %v3964
    %v3966 = vrot.slane %v3961, %v3965
    %v4000 = vunpack.c.l.b16 %v3929
    %v4001 = vunpack.c.l.b16 %v3930
    %v4002 = vunpack.c.l.b16 %v3931
    %v4003 = vunpack.c.l.b16 %v3932
    %v4004 = vunpack.c.l.b16 %v3933
    %v4005 = vunpack.c.l.b16 %v3934
    %v4006 = vunpack.c.l.b16 %v3935
    %v4007 = vunpack.c.l.b16 %v3936
    %v4008 = vunpack.c.l.b16 %v3937
    %v4009 = vunpack.c.l.b16 %v3938
    %v4010 = vunpack.c.l.b16 %v3939
    %v4011 = vunpack.c.l.b16 %v3940
    %v4012 = vunpack.c.l.b16 %v3941
    %v4013 = vunpack.c.l.b16 %v3942
    %v4014 = vunpack.c.l.b16 %v3943
    %v4015 = vunpack.c.l.b16 %v3944
    %v4016 = vunpack.c.l.b16 %v3945
    %v4017 = vunpack.c.l.b16 %v3946
    %v4018 = vunpack.c.l.b16 %v3947
    %v4019 = vunpack.c.l.b16 %v3948
    %v4020 = vunpack.c.l.b16 %v3949
    %v4021 = vunpack.c.l.b16 %v3950
    %v4022 = vunpack.c.l.b16 %v3951
    %v4023 = vunpack.c.l.b16 %v3952
    %v4024 = vunpack.c.l.b16 %v3953
    %v4025 = vunpack.c.l.b16 %v3954
    %v4026 = vunpack.c.l.b16 %v3955
    %v4027 = vunpack.c.l.b16 %v3956
    %v4028 = vunpack.c.l.b16 %v3957
    %v4029 = vunpack.c.l.b16 %v3958
    %v4030 = vunpack.c.l.b16 %v3959
    %v4031 = vunpack.c.l.b16 %v3960
    %v4032 = vpack.c.b16 %v4001, %v4000
    %v4033 = vpack.c.b16 %v4003, %v4002
    %v4034 = vpack.c.b16 %v4005, %v4004
    %v4035 = vpack.c.b16 %v4007, %v4006
    %v4036 = vpack.c.b16 %v4009, %v4008
    %v4037 = vpack.c.b16 %v4011, %v4010
    %v4038 = vpack.c.b16 %v4013, %v4012
    %v4039 = vpack.c.b16 %v4015, %v4014
    %v4040 = vpack.c.b16 %v4017, %v4016
    %v4041 = vpack.c.b16 %v4019, %v4018
    %v4042 = vpack.c.b16 %v4021, %v4020
    %v4043 = vpack.c.b16 %v4023, %v4022
    %v4044 = vpack.c.b16 %v4025, %v4024
    %v4045 = vpack.c.b16 %v4027, %v4026
    %v4046 = vpack.c.b16 %v4029, %v4028
    %v4047 = vpack.c.b16 %v4031, %v4030
    %4064 = vmatprep.subr.bf16.mxu0 0
    %4065 = vmatpush1.bf16.msra.mxu0 %v4032
    %4066 = vmatprep.subr.bf16.mxu0 0
    %4067 = vmatpush1.bf16.msra.mxu0 %v4033
    %4068 = vmatprep.subr.bf16.mxu0 0
    %4069 = vmatpush1.bf16.msra.mxu0 %v4034
    %4070 = vmatprep.subr.bf16.mxu0 0
    %4071 = vmatpush1.bf16.msra.mxu0 %v4035
    %4072 = vmatprep.subr.bf16.mxu0 0
    %4073 = vmatpush1.bf16.msra.mxu0 %v4036
    %4074 = vmatprep.subr.bf16.mxu0 0
    %4075 = vmatpush1.bf16.msra.mxu0 %v4037
    %4076 = vmatprep.subr.bf16.mxu0 0
    %4077 = vmatpush1.bf16.msra.mxu0 %v4038
    %4078 = vmatprep.subr.bf16.mxu0 0
    %4079 = vmatpush1.bf16.msra.mxu0 %v4039
    %4080 = vmatprep.subr.bf16.mxu0 0
    %4081 = vmatpush1.bf16.msra.mxu0 %v4040
    %4082 = vmatprep.subr.bf16.mxu0 0
    %4083 = vmatpush1.bf16.msra.mxu0 %v4041
    %4084 = vmatprep.subr.bf16.mxu0 0
    %4085 = vmatpush1.bf16.msra.mxu0 %v4042
    %4086 = vmatprep.subr.bf16.mxu0 0
    %4087 = vmatpush1.bf16.msra.mxu0 %v4043
    %4088 = vmatprep.subr.bf16.mxu0 0
    %4089 = vmatpush1.bf16.msra.mxu0 %v4044
    %4090 = vmatprep.subr.bf16.mxu0 0
    %4091 = vmatpush1.bf16.msra.mxu0 %v4045
    %4092 = vmatprep.subr.bf16.mxu0 0
    %4093 = vmatpush1.bf16.msra.mxu0 %v4046
    %4094 = vmatprep.subr.bf16.mxu0 0
    %4095 = vmatpush1.bf16.msra.mxu0 %v4047
    %4096 = vmatprep.mubr.bf16.mxu0 %v3914
    %4097 = vmatmul.mubr.bf16.gmra.mrb[0].mxu0 %v3913
    %v4098 = vpop.f32.mrb[0].mxu0
    %v4099 = vadd.f32 %v3966, %v4098
    %v4100 = vpop.f32.mrb[0].mxu0
    %v4101 = vpop.f32.mrb[0].mxu0
    %v4102 = vadd.f32 %v3966, %v4101
    %v4103 = vpop.f32.mrb[0].mxu0
    %4104 = vmatprep.mubr.bf16.mxu0 %v3916
    %4105 = vmatmul.mubr.bf16.gmra.mrb[0].mxu0 %v3915
    %v4106 = vpop.f32.mrb[0].mxu0
    %v4107 = vadd.f32 %v3966, %v4106
    %v4108 = vpop.f32.mrb[0].mxu0
    %v4109 = vpop.f32.mrb[0].mxu0
    %v4110 = vadd.f32 %v3966, %v4109
    %v4111 = vpop.f32.mrb[0].mxu0
    %4112 = vmatprep.mubr.bf16.mxu0 %v3918
    %4113 = vmatmul.mubr.bf16.gmra.mrb[0].mxu0 %v3917
    %v4114 = vpop.f32.mrb[0].mxu0
    %v4115 = vadd.f32 %v3966, %v4114
    %v4116 = vpop.f32.mrb[0].mxu0
    %v4117 = vpop.f32.mrb[0].mxu0
    %v4118 = vadd.f32 %v3966, %v4117
    %v4119 = vpop.f32.mrb[0].mxu0
    %4120 = vmatprep.mubr.bf16.mxu0 %v3920
    %4121 = vmatmul.mubr.bf16.gmra.mrb[0].mxu0 %v3919
    %v4122 = vpop.f32.mrb[0].mxu0
    %v4123 = vadd.f32 %v3966, %v4122
    %v4124 = vpop.f32.mrb[0].mxu0
    %v4125 = vpop.f32.mrb[0].mxu0
    %v4126 = vadd.f32 %v3966, %v4125
    %v4127 = vpop.f32.mrb[0].mxu0
    %4128 = vmatprep.mubr.bf16.mxu0 %v3922
    %4129 = vmatmul.mubr.bf16.gmra.mrb[0].mxu0 %v3921
    %v4130 = vpop.f32.mrb[0].mxu0
    %v4131 = vadd.f32 %v3966, %v4130
    %v4132 = vpop.f32.mrb[0].mxu0
    %v4133 = vpop.f32.mrb[0].mxu0
    %v4134 = vadd.f32 %v3966, %v4133
    %v4135 = vpop.f32.mrb[0].mxu0
    %4136 = vmatprep.mubr.bf16.mxu0 %v3924
    %4137 = vmatmul.mubr.bf16.gmra.mrb[0].mxu0 %v3923
    %v4138 = vpop.f32.mrb[0].mxu0
    %v4139 = vadd.f32 %v3966, %v4138
    %v4140 = vpop.f32.mrb[0].mxu0
    %v4141 = vpop.f32.mrb[0].mxu0
    %v4142 = vadd.f32 %v3966, %v4141
    %v4143 = vpop.f32.mrb[0].mxu0
    %4144 = vmatprep.mubr.bf16.mxu0 %v3926
    %4145 = vmatmul.mubr.bf16.gmra.mrb[0].mxu0 %v3925
    %v4146 = vpop.f32.mrb[0].mxu0
    %v4147 = vadd.f32 %v3966, %v4146
    %v4148 = vpop.f32.mrb[0].mxu0
    %v4149 = vpop.f32.mrb[0].mxu0
    %v4150 = vadd.f32 %v3966, %v4149
    %v4151 = vpop.f32.mrb[0].mxu0
    %4152 = vmatprep.mubr.bf16.mxu0 %v3928
    %4153 = vmatmul.mubr.bf16.gmra.mrb[0].mxu0 %v3927
    %v4154 = vpop.f32.mrb[0].mxu0
    %v4155 = vadd.f32 %v3966, %v4154
    %v4156 = vpop.f32.mrb[0].mxu0
    %v4157 = vpop.f32.mrb[0].mxu0
    %v4158 = vadd.f32 %v3966, %v4157
    %v4159 = vpop.f32.mrb[0].mxu0
    %4160 = vdwg.mxu0
    %v4161 = vlaneseq
    %v4162 = vand.u32 %v4161, 127
    %vm4163 = vcmp.lt.s32.totalorder %v4162, 10
    %v4164 = vsel %vm4163, %v4099, -1e+30
    %v4165 = vsel %vm4163, %v4102, -1e+30
    %v4166 = vsel %vm4163, %v4107, -1e+30
    %v4167 = vsel %vm4163, %v4110, -1e+30
    %v4168 = vsel %vm4163, %v4115, -1e+30
    %v4169 = vsel %vm4163, %v4118, -1e+30
    %v4170 = vsel %vm4163, %v4123, -1e+30
    %v4171 = vsel %vm4163, %v4126, -1e+30
    %v4172 = vsel %vm4163, %v4131, -1e+30
    %v4173 = vsel %vm4163, %v4134, -1e+30
    %v4174 = vsel %vm4163, %v4139, -1e+30
    %v4175 = vsel %vm4163, %v4142, -1e+30
    %v4176 = vsel %vm4163, %v4147, -1e+30
    %v4177 = vsel %vm4163, %v4150, -1e+30
    %v4178 = vsel %vm4163, %v4155, -1e+30
    %v4179 = vsel %vm4163, %v4158, -1e+30
    %4180 = vmax.xlane.f32.xlu0 %v4164
    %v4181 = vpop.xlane.xlu0 %4180
    %4182 = vmax.xlane.f32.xlu0 %v4165
    %v4183 = vpop.xlane.xlu0 %4182
    %4184 = vmax.xlane.f32.xlu0 %v4166
    %v4185 = vpop.xlane.xlu0 %4184
    %4186 = vmax.xlane.f32.xlu0 %v4167
    %v4187 = vpop.xlane.xlu0 %4186
    %4188 = vmax.xlane.f32.xlu0 %v4168
    %v4189 = vpop.xlane.xlu0 %4188
    %4190 = vmax.xlane.f32.xlu0 %v4169
    %v4191 = vpop.xlane.xlu0 %4190
    %4192 = vmax.xlane.f32.xlu0 %v4170
    %v4193 = vpop.xlane.xlu0 %4192
    %4194 = vmax.xlane.f32.xlu0 %v4171
    %v4195 = vpop.xlane.xlu0 %4194
    %4196 = vmax.xlane.f32.xlu0 %v4172
    %v4197 = vpop.xlane.xlu0 %4196
    %4198 = vmax.xlane.f32.xlu0 %v4173
    %v4199 = vpop.xlane.xlu0 %4198
    %4200 = vmax.xlane.f32.xlu0 %v4174
    %v4201 = vpop.xlane.xlu0 %4200
    %4202 = vmax.xlane.f32.xlu0 %v4175
    %v4203 = vpop.xlane.xlu0 %4202
    %4204 = vmax.xlane.f32.xlu0 %v4176
    %v4205 = vpop.xlane.xlu0 %4204
    %4206 = vmax.xlane.f32.xlu0 %v4177
    %v4207 = vpop.xlane.xlu0 %4206
    %4208 = vmax.xlane.f32.xlu0 %v4178
    %v4209 = vpop.xlane.xlu0 %4208
    %4210 = vmax.xlane.f32.xlu0 %v4179
    %v4211 = vpop.xlane.xlu0 %4210
    %v4212 = vsub.f32 %v4164, %v4181
    %v4213 = vsub.f32 %v4165, %v4183
    %v4214 = vsub.f32 %v4166, %v4185
    %v4215 = vsub.f32 %v4167, %v4187
    %v4216 = vsub.f32 %v4168, %v4189
    %v4217 = vsub.f32 %v4169, %v4191
    %v4218 = vsub.f32 %v4170, %v4193
    %v4219 = vsub.f32 %v4171, %v4195
    %v4220 = vsub.f32 %v4172, %v4197
    %v4221 = vsub.f32 %v4173, %v4199
    %v4222 = vsub.f32 %v4174, %v4201
    %v4223 = vsub.f32 %v4175, %v4203
    %v4224 = vsub.f32 %v4176, %v4205
    %v4225 = vsub.f32 %v4177, %v4207
    %v4226 = vsub.f32 %v4178, %v4209
    %v4227 = vsub.f32 %v4179, %v4211
    %v4228 = vmul.f32 %v4212, 1.442695
    %v4229 = vpow.pop %v4228
    %v4230 = vmul.f32 %v4213, 1.442695
    %v4231 = vpow.pop %v4230
    %v4232 = vmul.f32 %v4214, 1.442695
    %v4233 = vpow.pop %v4232
    %v4234 = vmul.f32 %v4215, 1.442695
    %v4235 = vpow.pop %v4234
    %v4236 = vmul.f32 %v4216, 1.442695
    %v4237 = vpow.pop %v4236
    %v4238 = vmul.f32 %v4217, 1.442695
    %v4239 = vpow.pop %v4238
    %v4240 = vmul.f32 %v4218, 1.442695
    %v4241 = vpow.pop %v4240
    %v4242 = vmul.f32 %v4219, 1.442695
    %v4243 = vpow.pop %v4242
    %v4244 = vmul.f32 %v4220, 1.442695
    %v4245 = vpow.pop %v4244
    %v4246 = vmul.f32 %v4221, 1.442695
    %v4247 = vpow.pop %v4246
    %v4248 = vmul.f32 %v4222, 1.442695
    %v4249 = vpow.pop %v4248
    %v4250 = vmul.f32 %v4223, 1.442695
    %v4251 = vpow.pop %v4250
    %v4252 = vmul.f32 %v4224, 1.442695
    %v4253 = vpow.pop %v4252
    %v4254 = vmul.f32 %v4225, 1.442695
    %v4255 = vpow.pop %v4254
    %v4256 = vmul.f32 %v4226, 1.442695
    %v4257 = vpow.pop %v4256
    %v4258 = vmul.f32 %v4227, 1.442695
    %v4259 = vpow.pop %v4258
    %4260 = vadd.xlane.f32.xlu0 %v4229
    %v4261 = vpop.xlane.xlu0 %4260
    %4262 = vadd.xlane.f32.xlu0 %v4231
    %v4263 = vpop.xlane.xlu0 %4262
    %4264 = vadd.xlane.f32.xlu0 %v4233
    %v4265 = vpop.xlane.xlu0 %4264
    %4266 = vadd.xlane.f32.xlu0 %v4235
    %v4267 = vpop.xlane.xlu0 %4266
    %4268 = vadd.xlane.f32.xlu0 %v4237
    %v4269 = vpop.xlane.xlu0 %4268
    %4270 = vadd.xlane.f32.xlu0 %v4239
    %v4271 = vpop.xlane.xlu0 %4270
    %4272 = vadd.xlane.f32.xlu0 %v4241
    %v4273 = vpop.xlane.xlu0 %4272
    %4274 = vadd.xlane.f32.xlu0 %v4243
    %v4275 = vpop.xlane.xlu0 %4274
    %4276 = vadd.xlane.f32.xlu0 %v4245
    %v4277 = vpop.xlane.xlu0 %4276
    %4278 = vadd.xlane.f32.xlu0 %v4247
    %v4279 = vpop.xlane.xlu0 %4278
    %4280 = vadd.xlane.f32.xlu0 %v4249
    %v4281 = vpop.xlane.xlu0 %4280
    %4282 = vadd.xlane.f32.xlu0 %v4251
    %v4283 = vpop.xlane.xlu0 %4282
    %4284 = vadd.xlane.f32.xlu0 %v4253
    %v4285 = vpop.xlane.xlu0 %4284
    %4286 = vadd.xlane.f32.xlu0 %v4255
    %v4287 = vpop.xlane.xlu0 %4286
    %4288 = vadd.xlane.f32.xlu0 %v4257
    %v4289 = vpop.xlane.xlu0 %4288
    %4290 = vadd.xlane.f32.xlu0 %v4259
    %v4291 = vpop.xlane.xlu0 %4290
    %v4292 = vlog2.pop %v4261
    %v4293 = vmul.f32 %v4292, 0.6931472
    %v4294 = vlog2.pop %v4263
    %v4295 = vmul.f32 %v4294, 0.6931472
    %v4296 = vlog2.pop %v4265
    %v4297 = vmul.f32 %v4296, 0.6931472
    %v4298 = vlog2.pop %v4267
    %v4299 = vmul.f32 %v4298, 0.6931472
    %v4300 = vlog2.pop %v4269
    %v4301 = vmul.f32 %v4300, 0.6931472
    %v4302 = vlog2.pop %v4271
    %v4303 = vmul.f32 %v4302, 0.6931472
    %v4304 = vlog2.pop %v4273
    %v4305 = vmul.f32 %v4304, 0.6931472
    %v4306 = vlog2.pop %v4275
    %v4307 = vmul.f32 %v4306, 0.6931472
    %v4308 = vlog2.pop %v4277
    %v4309 = vmul.f32 %v4308, 0.6931472
    %v4310 = vlog2.pop %v4279
    %v4311 = vmul.f32 %v4310, 0.6931472
    %v4312 = vlog2.pop %v4281
    %v4313 = vmul.f32 %v4312, 0.6931472
    %v4314 = vlog2.pop %v4283
    %v4315 = vmul.f32 %v4314, 0.6931472
    %v4316 = vlog2.pop %v4285
    %v4317 = vmul.f32 %v4316, 0.6931472
    %v4318 = vlog2.pop %v4287
    %v4319 = vmul.f32 %v4318, 0.6931472
    %v4320 = vlog2.pop %v4289
    %v4321 = vmul.f32 %v4320, 0.6931472
    %v4322 = vlog2.pop %v4291
    %v4323 = vmul.f32 %v4322, 0.6931472
    %v4324 = vsub.f32 %v4212, %v4293
    %v4325 = vsub.f32 %v4213, %v4295
    %v4326 = vsub.f32 %v4214, %v4297
    %v4327 = vsub.f32 %v4215, %v4299
    %v4328 = vsub.f32 %v4216, %v4301
    %v4329 = vsub.f32 %v4217, %v4303
    %v4330 = vsub.f32 %v4218, %v4305
    %v4331 = vsub.f32 %v4219, %v4307
    %v4332 = vsub.f32 %v4220, %v4309
    %v4333 = vsub.f32 %v4221, %v4311
    %v4334 = vsub.f32 %v4222, %v4313
    %v4335 = vsub.f32 %v4223, %v4315
    %v4336 = vsub.f32 %v4224, %v4317
    %v4337 = vsub.f32 %v4225, %v4319
    %v4338 = vsub.f32 %v4226, %v4321
    %v4339 = vsub.f32 %v4227, %v4323
    %4340 = vst [vmem:[#allocation13] sm:$0xff] %v4324
    %4341 = vst [vmem:[#allocation13 + $0x8] sm:$0xff] %v4325
    %4342 = vst [vmem:[#allocation13 + $0x10] sm:$0xff] %v4326
    %4343 = vst [vmem:[#allocation13 + $0x18] sm:$0xff] %v4327
    %4344 = vst [vmem:[#allocation13 + $0x20] sm:$0xff] %v4328
    %4345 = vst [vmem:[#allocation13 + $0x28] sm:$0xff] %v4329
    %4346 = vst [vmem:[#allocation13 + $0x30] sm:$0xff] %v4330
    %4347 = vst [vmem:[#allocation13 + $0x38] sm:$0xff] %v4331
    %4348 = vst [vmem:[#allocation13 + $0x40] sm:$0xff] %v4332
    %4349 = vst [vmem:[#allocation13 + $0x48] sm:$0xff] %v4333
    %4350 = vst [vmem:[#allocation13 + $0x50] sm:$0xff] %v4334
    %4351 = vst [vmem:[#allocation13 + $0x58] sm:$0xff] %v4335
    %4352 = vst [vmem:[#allocation13 + $0x60] sm:$0xff] %v4336
    %4353 = vst [vmem:[#allocation13 + $0x68] sm:$0xff] %v4337
    %4354 = vst [vmem:[#allocation13 + $0x70] sm:$0xff] %v4338
    %4355 = vst [vmem:[#allocation13 + $0x78] sm:$0xff] %v4339
    // Predicated region
    $region70: #{tpu_custom_call.1} parent=1 // pred_check
      _
    $region71: #{tpu_custom_call.1} parent=1 // pred_check_branch
      %4357 = sbr.rel (0) target = $region73
    $region72: #{tpu_custom_call.1} parent=1 // pred_region
      %s4359 = ssub.s32 2048, 2048
      %4360 = vsyncadd [#allocation4], %s4359
      %s4361 = sshll.u32 [#allocation13], 4
      %s4362 = int_to_ptr.vmem [resolvable:$true] %s4361
      %4367 = dma.vmem_to_hbm [thread:$0]  %s4362, 2048, %s11, [#allocation4], 128, 128, 8
    $region73: #{tpu_custom_call.1} parent=1 // pred_fallthru
      _
    // Predicated region
    $region74: #{tpu_custom_call.1} parent=1 // pred_check
      _
    $region75: #{tpu_custom_call.1} parent=1 // pred_check_branch
      %4369 = sbr.rel (0) target = $region77
    $region76: #{tpu_custom_call.1} parent=1 // pred_region
      %4370 = dma.done [#allocation4], 2048
    $region77: #{tpu_custom_call.1} parent=1 // pred_fallthru
      _
    %4371 = vsyncpa [#allocation3], 1
    %4372 = vsyncpa [#allocation6], 1
    %4373 = vsyncpa [#allocation9], 1
    %4374 = vsyncpa [#allocation12], 1
    %4375 = vsyncpa [#allocation4], 1

</llo_original>
